<compile_context>
chip_gen: v6e
topology: v6e:2x2x1
jax: 0.10.0
libtpu: 0.0.40
codegen_flags: <defaults>
</compile_context>

<pallas_src>
import math

import jax
import jax.numpy as jnp
from jax.experimental import pallas as pl
from jax.experimental.pallas import tpu as pltpu


# ----------------------------- configuration ------------------------------- #
class Cfg:
    # synthetic small Wav2Vec2Bert config
    hidden = 32          # hidden_size
    heads = 4            # num_attention_heads
    head_dim = 8         # hidden // heads
    ffn = 64             # intermediate_size
    layers = 2           # num_hidden_layers
    conv_kernel = 5      # conv_depthwise_kernel_size (causal, left pad K-1)
    left_max = 8         # left_max_position_embeddings (relative_key)
    right_max = 8        # right_max_position_embeddings
    mel = 8              # num_mel_bins
    feat_dim = 16        # feature_projection_input_dim = 2 * mel (stride-2 stacking)
    frame_len = 64       # analysis window (samples)
    hop = 32             # hop length (samples)
    n_fft = 64
    sr = 16000
    ln_eps = 1e-5


# ------------------------- helpers (traced, usable in/out of kernel) -------- #
def _ln(x, g, b):
    mu = jnp.mean(x, axis=-1, keepdims=True)
    var = jnp.mean((x - mu) ** 2, axis=-1, keepdims=True)
    return (x - mu) * jax.lax.rsqrt(var + Cfg.ln_eps) * g + b


# Row layout of the packed per-layer "vec" slab (shape (L, NV, W), f32).
_R_F1G, _R_F1B, _R_F1B1, _R_F1B2 = 0, 1, 2, 3          # FFN1 LN g/b, biases
_R_ATG, _R_ATB, _R_BQKV, _R_BO = 4, 5, 6, 7             # attn LN g/b, qkv bias, out bias
_R_CVG, _R_CVB, _R_DWG, _R_DWB = 8, 9, 10, 11           # conv LN g/b, depthwise LN g/b
_R_F2G, _R_F2B, _R_F2B1, _R_F2B2 = 12, 13, 14, 15       # FFN2 LN g/b, biases
_R_FNG, _R_FNB, _R_DW0 = 16, 17, 18                     # final LN g/b, depthwise taps start


# ------------------------- fused encoder-stack kernel ----------------------- #
def _encoder_stack_kernel(x0_ref, mh_ref, mf_ref, vec_ref, rel_ref, o_ref, conv_buf):
    l = pl.program_id(1)                       # layer index (inner, "arbitrary")
    H, FF, nh, dh, K = Cfg.hidden, Cfg.ffn, Cfg.heads, Cfg.head_dim, Cfg.conv_kernel
    nb = Cfg.left_max + Cfg.right_max + 1
    T = o_ref.shape[1]
    scale = 1.0 / math.sqrt(dh)

    # Initialize the VMEM-resident hidden state from the (pre-projected) features.
    @pl.when(l == 0)
    def _():
        o_ref[0] = x0_ref[0]

    x = o_ref[0]          # (T, H) f32 hidden state, resident in VMEM across layers
    vec = vec_ref[0]      # (NV, W)    f32 packed per-layer vectors
    mh = mh_ref[0]        # (H, 7H+2FF) bf16 packed row-H matrices
    mf = mf_ref[0]        # (FF, 2H)   bf16 packed row-FF matrices
    rel = rel_ref[0]      # (dh, nb)   f32 relative-position distance table (pre-transposed)

    def bdot(a, w):       # bf16 MXU inputs, f32 accumulation
        return jnp.dot(a.astype(jnp.bfloat16), w, preferred_element_type=jnp.float32)

    # column offsets into the packed mat_h slab
    c_wo, c_pw1, c_pw2, c_f1, c_f2 = 3 * H, 4 * H, 6 * H, 7 * H, 7 * H + FF

    # --- FFN1 (half-step residual), LayerNorm fused in ---
    # TODO(synk): at production FF (4096) tile these matmuls over the FF dim
    # (256-multiples on v6e/v7x) so per-layer slabs fit v7x's 64 MiB VMEM.
    h = _ln(x, vec[_R_F1G, :H], vec[_R_F1B, :H])
    h = bdot(h, mh[:, c_f1:c_f1 + FF]) + vec[_R_F1B1, :FF]
    h = h * jax.nn.sigmoid(h)                                   # swish (f32 VPU/EUP)
    h = bdot(h, mf[:, :H]) + vec[_R_F1B2, :H]
    x = x + 0.5 * h

    # --- self-attention (relative_key position bias) ---
    h = _ln(x, vec[_R_ATG, :H], vec[_R_ATB, :H])
    qkv = bdot(h, mh[:, :3 * H]) + vec[_R_BQKV, :3 * H]         # fused QKV, (T, 3H)

    # Key-axis selection matrix, computed in-kernel (no O(T^2*dh) HBM slab).
    # dist = key_pos - query_pos, matching HF Wav2Vec2BertSelfAttention's
    # `position_ids_r - position_ids_l` convention.
    qpos = jax.lax.broadcasted_iota(jnp.int32, (T, T), 0)
    kpos = jax.lax.broadcasted_iota(jnp.int32, (T, T), 1)
    dist = jnp.clip(kpos - qpos, -Cfg.left_max, Cfg.right_max) + Cfg.left_max
    buck = jax.lax.broadcasted_iota(jnp.int32, (T, T, nb), 2)
    sel = (dist[:, :, None] == buck).astype(jnp.float32)        # (T, T, nb)

    # TODO(synk): at production head counts / sequence lengths, batch the
    # per-head matmuls into one dot_general over a leading head axis and block
    # over KV (flash-style online softmax) instead of materializing (T, T).
    ctx_heads = []
    for hh in range(nh):                       # static unroll (nh tiny)
        q = qkv[:, hh * dh:(hh + 1) * dh]                       # (T, dh)
        k = qkv[:, H + hh * dh:H + (hh + 1) * dh]
        v = qkv[:, 2 * H + hh * dh:2 * H + (hh + 1) * dh]
        s = jax.lax.dot_general(q, k, (((1,), (1,)), ((), ())),
                                preferred_element_type=jnp.float32)     # q @ k.T
        proj = jnp.dot(q, rel, preferred_element_type=jnp.float32)      # (T, nb) MXU
        rb = jnp.sum(proj[:, None, :] * sel, axis=-1)                   # key-axis select
        s = (s + rb) * scale
        m = jnp.max(s, axis=-1, keepdims=True)
        p = jnp.exp(s - m)
        # approx reciprocal (EUP): ~1e-3 rel. error vs torch.softmax, fine for inference
        p = p * pl.reciprocal(jnp.sum(p, axis=-1, keepdims=True), approx=True)
        ctx_heads.append(jnp.dot(p, v, preferred_element_type=jnp.float32))
    ctx = jnp.concatenate(ctx_heads, axis=-1)                   # (T, H)
    attn = bdot(ctx, mh[:, c_wo:c_wo + H]) + vec[_R_BO, :H]     # ONE output projection
    x = x + attn
    # TODO(synk): no attention_mask / padding handling (padded frames would be attended to).

    # --- conformer convolution module ---
    h = _ln(x, vec[_R_CVG, :H], vec[_R_CVB, :H])
    h = bdot(h, mh[:, c_pw1:c_pw1 + 2 * H])                     # pointwise_conv1 (no bias)
    g = h[:, :H] * jax.nn.sigmoid(h[:, H:2 * H])                # GLU over channels
    # Causal depthwise conv via shifted views of one zero-padded scratch buffer
    # (no concatenate materialization of a (T+K-1, H) temporary).
    conv_buf[...] = jnp.zeros((T + K - 1, H), jnp.float32)
    conv_buf[K - 1:K - 1 + T, :] = g
    acc = jnp.zeros((T, H), jnp.float32)
    for kk in range(K):                                         # static unrolled taps
        acc = acc + conv_buf[kk:kk + T, :] * vec[_R_DW0 + kk, :H]
    h = _ln(acc, vec[_R_DWG, :H], vec[_R_DWB, :H])              # depthwise_layer_norm
    h = h * jax.nn.sigmoid(h)                                   # swish
    h = bdot(h, mh[:, c_pw2:c_pw2 + H])                         # pointwise_conv2 (no bias)
    x = x + h

    # --- FFN2 (half-step residual) ---
    h = _ln(x, vec[_R_F2G, :H], vec[_R_F2B, :H])
    h = bdot(h, mh[:, c_f2:c_f2 + FF]) + vec[_R_F2B1, :FF]
    h = h * jax.nn.sigmoid(h)
    h = bdot(h, mf[:, H:2 * H]) + vec[_R_F2B2, :H]
    x = x + 0.5 * h

    o_ref[0] = _ln(x, vec[_R_FNG, :H], vec[_R_FNB, :H])         # final_layer_norm


# --------------------------- feature extraction ----------------------------- #
def _mel_filterbank(n_freq, n_mel, sr, n_fft):
    def hz_to_mel(f):
        return 2595.0 * jnp.log10(1.0 + f / 700.0)

    def mel_to_hz(m):
        return 700.0 * (10.0 ** (m / 2595.0) - 1.0)

    mel_pts = jnp.linspace(hz_to_mel(0.0), hz_to_mel(sr / 2.0), n_mel + 2)
    hz_pts = mel_to_hz(mel_pts)
    bins = hz_pts / (sr / 2.0) * (n_freq - 1)
    freqs = jnp.arange(n_freq, dtype=jnp.float32)[:, None]
    lower, center, upper = bins[None, :-2], bins[None, 1:-1], bins[None, 2:]
    up = (freqs - lower) / jnp.maximum(center - lower, 1e-5)
    down = (upper - freqs) / jnp.maximum(upper - center, 1e-5)
    return jnp.maximum(0.0, jnp.minimum(up, down)).astype(jnp.float32)  # (n_freq, n_mel)


def extract_features(wav, cfg):
    # TODO(synk): exact SeamlessM4TFeatureExtractor (kaldi povey window, dither,
    # pre-emphasis, exact mel scale) has no clean Pallas equivalent; approximated
    # with a Hann-window rfft log-mel + per-utterance normalization in plain JAX
    # (shapes are tiny; a pallas_call here was pure launch/DMA overhead).
    B, L = wav.shape
    F = 1 + (L - cfg.frame_len) // cfg.hop
    idx = jnp.arange(F)[:, None] * cfg.hop + jnp.arange(cfg.frame_len)[None, :]
    frames = wav[:, idx]                                              # (B, F, frame_len)
    n = jnp.arange(cfg.frame_len, dtype=jnp.float32)
    window = 0.5 - 0.5 * jnp.cos(2.0 * jnp.pi * n / (cfg.frame_len - 1))
    frames = frames * window
    spec = jnp.fft.rfft(frames, n=cfg.n_fft, axis=-1)
    power = (jnp.abs(spec) ** 2).astype(jnp.float32)                  # (B, F, n_fft//2+1)
    mel_fb = _mel_filterbank(cfg.n_fft // 2 + 1, cfg.mel, cfg.sr, cfg.n_fft)
    mel = jnp.matmul(power, mel_fb)
    logmel = jnp.log(mel + 1e-6)
    mu = jnp.mean(logmel, axis=1, keepdims=True)
    sd = jnp.std(logmel, axis=1, keepdims=True) + 1e-5
    logmel = (logmel - mu) / sd
    # TODO(synk): verify stride-2 frame stacking matches the HF stacking/stride convention.
    T = F // 2
    return logmel[:, : 2 * T, :].reshape(B, T, 2 * cfg.mel)           # (B, T, feat_dim)


# ------------------------------- model forward ------------------------------ #
def w2vbert_forward(wav, pp, cfg):
    feats = extract_features(wav, cfg)                                # (B, T, feat_dim)
    B, T, _ = feats.shape
    H, FF, L = cfg.hidden, cfg.ffn, cfg.layers
    nb = cfg.left_max + cfg.right_max + 1
    dh, K = cfg.head_dim, cfg.conv_kernel

    # Feature projection (LayerNorm -> Linear) hoisted out of the kernel (tiny;
    # XLA fuses it); its result is the kernel's initial hidden state.
    x0 = jnp.einsum("btf,fh->bth",
                    _ln(feats, pp["fp_ln_g"], pp["fp_ln_b"]),
                    pp["fp_w"]) + pp["fp_b"]                          # (B, T, H) f32

    NV, W = pp["vec"].shape[1], pp["vec"].shape[2]
    Wh = pp["mat_h"].shape[2]

    out = pl.pallas_call(
        _encoder_stack_kernel,
        out_shape=jax.ShapeDtypeStruct((B, T, H), jnp.float32),
        grid=(B, L),                                                  # batch outer, layers inner
        in_specs=[
            pl.BlockSpec((1, T, H), lambda b, l: (b, 0, 0)),          # initial hidden state
            pl.BlockSpec((1, H, Wh), lambda b, l: (l, 0, 0)),         # packed row-H matrices (bf16)
            pl.BlockSpec((1, FF, 2 * H), lambda b, l: (l, 0, 0)),     # packed row-FF matrices (bf16)
            pl.BlockSpec((1, NV, W), lambda b, l: (l, 0, 0)),         # packed vectors (f32)
            pl.BlockSpec((1, dh, nb), lambda b, l: (l, 0, 0)),        # relative-pos table (f32)
        ],
        # constant block index across the layer axis => hidden state stays
        # resident in VMEM across layers (accumulator pattern)
        out_specs=pl.BlockSpec((1, T, H), lambda b, l: (b, 0, 0)),
        scratch_shapes=[pltpu.VMEM((T + K - 1, H), jnp.float32)],     # causal-pad conv buffer
        compiler_params=pltpu.CompilerParams(
            dimension_semantics=("parallel", "arbitrary"),
            vmem_limit_bytes=48 * 1024 * 1024,
        ),
    )(x0, pp["mat_h"], pp["mat_f"], pp["vec"], pp["rel"])

    # matches torch: last_hidden_state.transpose(1, 2) -> (B, hidden, T)
    return jnp.transpose(out, (0, 2, 1))


# ------------------------------ parameter init ------------------------------ #
def init_params(key, cfg):
    keys = iter(jax.random.split(key, 256))

    def Wm(shape):
        return 0.02 * jax.random.normal(next(keys), shape, jnp.float32)

    def Z(shape):
        return jnp.zeros(shape, jnp.float32)

    def O(shape):
        return jnp.ones(shape, jnp.float32)

    H, F, FF = cfg.hidden, cfg.feat_dim, cfg.ffn
    dh, K = cfg.head_dim, cfg.conv_kernel
    params = dict(
        fp_ln_g=O((1, F)), fp_ln_b=Z((1, F)),
        fp_w=Wm((F, H)), fp_b=Z((1, H)),
        layers=[],
    )
    for _ in range(cfg.layers):
        params["layers"].append(dict(
            ffn1_ln_g=O((1, H)), ffn1_ln_b=Z((1, H)),
            ffn1_w1=Wm((H, FF)), ffn1_b1=Z((1, FF)),
            ffn1_w2=Wm((FF, H)), ffn1_b2=Z((1, H)),
            attn_ln_g=O((1, H)), attn_ln_b=Z((1, H)),
            wq=Wm((H, H)), bq=Z((1, H)),
            wk=Wm((H, H)), bk=Z((1, H)),
            wv=Wm((H, H)), bv=Z((1, H)),
            wo=Wm((H, H)), bo=Z((1, H)),
            rel_emb=Wm((cfg.left_max + cfg.right_max + 1, dh)),
            conv_ln_g=O((1, H)), conv_ln_b=Z((1, H)),
            pw1_w=Wm((H, 2 * H)),
            dw_w=Wm((K, H)),
            dw_ln_g=O((1, H)), dw_ln_b=Z((1, H)),
            pw2_w=Wm((H, H)),
            ffn2_ln_g=O((1, H)), ffn2_ln_b=Z((1, H)),
            ffn2_w1=Wm((H, FF)), ffn2_b1=Z((1, FF)),
            ffn2_w2=Wm((FF, H)), ffn2_b2=Z((1, H)),
            final_ln_g=O((1, H)), final_ln_b=Z((1, H)),
        ))
    return params


def prepare_params(params, cfg):
    """Pack per-layer weights into a few stacked slabs (bf16 matrices, f32 vectors)."""
    H, FF, K = cfg.hidden, cfg.ffn, cfg.conv_kernel
    W = max(3 * H, FF)

    def pad(v):
        v = v.reshape(-1)
        return jnp.pad(v, (0, W - v.shape[0]))

    vec_rows, mat_h_rows, mat_f_rows, rel_rows = [], [], [], []
    for lp in params["layers"]:
        rows = [
            lp["ffn1_ln_g"], lp["ffn1_ln_b"], lp["ffn1_b1"], lp["ffn1_b2"],
            lp["attn_ln_g"], lp["attn_ln_b"],
            jnp.concatenate([lp["bq"].reshape(-1), lp["bk"].reshape(-1), lp["bv"].reshape(-1)]),
            lp["bo"],
            lp["conv_ln_g"], lp["conv_ln_b"], lp["dw_ln_g"], lp["dw_ln_b"],
            lp["ffn2_ln_g"], lp["ffn2_ln_b"], lp["ffn2_b1"], lp["ffn2_b2"],
            lp["final_ln_g"], lp["final_ln_b"],
        ] + [lp["dw_w"][k] for k in range(K)]
        vec_rows.append(jnp.stack([pad(r) for r in rows]))
        wqkv = jnp.concatenate([lp["wq"], lp["wk"], lp["wv"]], axis=1)          # (H, 3H)
        mat_h_rows.append(jnp.concatenate(
            [wqkv, lp["wo"], lp["pw1_w"], lp["pw2_w"], lp["ffn1_w1"], lp["ffn2_w1"]], axis=1))
        mat_f_rows.append(jnp.concatenate([lp["ffn1_w2"], lp["ffn2_w2"]], axis=1))
        rel_rows.append(lp["rel_emb"].T)                                        # (dh, nb)
    return dict(
        fp_ln_g=params["fp_ln_g"].reshape(-1), fp_ln_b=params["fp_ln_b"].reshape(-1),
        fp_w=params["fp_w"], fp_b=params["fp_b"].reshape(-1),
        vec=jnp.stack(vec_rows).astype(jnp.float32),       # (L, 18+K, W)
        mat_h=jnp.stack(mat_h_rows).astype(jnp.bfloat16),  # (L, H, 7H+2FF)
        mat_f=jnp.stack(mat_f_rows).astype(jnp.bfloat16),  # (L, FF, 2H)
        rel=jnp.stack(rel_rows).astype(jnp.float32),       # (L, dh, nb)
    )


# ----------------------------------- main ----------------------------------- #
if __name__ == "__main__":
    cfg = Cfg()
    key = jax.random.PRNGKey(0)
    kp, kw = jax.random.split(key)
    params = init_params(kp, cfg)
    pp = prepare_params(params, cfg)

    # 16 analysis frames -> T = 8 after stride-2 stacking
    wav_len = cfg.frame_len + 15 * cfg.hop  # 544 samples
    wav = jax.random.normal(kw, (2, wav_len), jnp.float32)

    fwd = jax.jit(lambda w, p: w2vbert_forward(w, p, cfg))
    out = jax.block_until_ready(fwd(wav, pp))
    assert out.shape == (2, cfg.hidden, 8), out.shape
    assert bool(jnp.all(jnp.isfinite(out)))
    print("KERNEL_OK")
</pallas_src>

<mosaic_0001>
module attributes {stable_mosaic.version = 11 : i64} {
  func.func @_encoder_stack_kernel(%arg0: i32, %arg1: i32, %arg2: memref<1x8x32xf32, #tpu.memory_space<vmem>>, %arg3: memref<1x32x352xbf16, #tpu.memory_space<vmem>>, %arg4: memref<1x64x64xbf16, #tpu.memory_space<vmem>>, %arg5: memref<1x23x96xf32, #tpu.memory_space<vmem>>, %arg6: memref<1x8x17xf32, #tpu.memory_space<vmem>>, %arg7: memref<1x8x32xf32, #tpu.memory_space<vmem>>, %arg8: memref<12x32xf32, #tpu.memory_space<vmem>>) attributes {dimension_semantics = [#tpu.dimension_semantics<parallel>, #tpu.dimension_semantics<arbitrary>], iteration_bounds = array<i64: 2, 2>, scalar_prefetch = 0 : i64, scratch_operands = 1 : i64, tpu.core_type = #tpu.core_type<tc>, window_params = [{transform_indices = @transform_0, window_bounds = array<i64: 1, 8, 32>}, {transform_indices = @transform_1, window_bounds = array<i64: 1, 32, 352>}, {transform_indices = @transform_2, window_bounds = array<i64: 1, 64, 64>}, {transform_indices = @transform_3, window_bounds = array<i64: 1, 23, 96>}, {transform_indices = @transform_4, window_bounds = array<i64: 1, 8, 17>}, {transform_indices = @transform_5, window_bounds = array<i64: 1, 8, 32>}]} {
    %c0_i32 = arith.constant 0 : i32
    %0 = arith.cmpi eq, %arg1, %c0_i32 : i32
    %1 = arith.extui %0 : i1 to i32
    %c0_i32_0 = arith.constant 0 : i32
    %2 = arith.cmpi ne, %1, %c0_i32_0 : i32
    scf.if %2 {
      %c0_102 = arith.constant 0 : index
      %c0_103 = arith.constant 0 : index
      %c0_104 = arith.constant 0 : index
      %419 = vector.load %arg2[%c0_102, %c0_103, %c0_104] : memref<1x8x32xf32, #tpu.memory_space<vmem>>, vector<1x8x32xf32>
      %420 = vector.shape_cast %419 : vector<1x8x32xf32> to vector<8x32xf32>
      %c0_105 = arith.constant 0 : index
      %c0_106 = arith.constant 0 : index
      %c0_107 = arith.constant 0 : index
      %421 = vector.load %arg7[%c0_105, %c0_106, %c0_107] : memref<1x8x32xf32, #tpu.memory_space<vmem>>, vector<1x8x32xf32>
      %422 = vector.shape_cast %421 : vector<1x8x32xf32> to vector<8x32xf32>
      %423 = vector.shape_cast %420 : vector<8x32xf32> to vector<1x8x32xf32>
      tpu.vector_store %arg7[%c0_105, %c0_106, %c0_107], %423 {strides = array<i32>} : memref<1x8x32xf32, #tpu.memory_space<vmem>>, vector<1x8x32xf32>,
    } else {
    }
    %c0 = arith.constant 0 : index
    %c0_1 = arith.constant 0 : index
    %c0_2 = arith.constant 0 : index
    %3 = vector.load %arg7[%c0, %c0_1, %c0_2] : memref<1x8x32xf32, #tpu.memory_space<vmem>>, vector<1x8x32xf32>
    %4 = vector.shape_cast %3 : vector<1x8x32xf32> to vector<8x32xf32>
    %c0_3 = arith.constant 0 : index
    %c0_4 = arith.constant 0 : index
    %c0_5 = arith.constant 0 : index
    %5 = vector.load %arg5[%c0_3, %c0_4, %c0_5] : memref<1x23x96xf32, #tpu.memory_space<vmem>>, vector<1x23x96xf32>
    %6 = vector.shape_cast %5 : vector<1x23x96xf32> to vector<23x96xf32>
    %c0_6 = arith.constant 0 : index
    %c0_7 = arith.constant 0 : index
    %c0_8 = arith.constant 0 : index
    %7 = vector.load %arg3[%c0_6, %c0_7, %c0_8] : memref<1x32x352xbf16, #tpu.memory_space<vmem>>, vector<1x32x352xbf16>
    %8 = vector.shape_cast %7 : vector<1x32x352xbf16> to vector<32x352xbf16>
    %c0_9 = arith.constant 0 : index
    %c0_10 = arith.constant 0 : index
    %c0_11 = arith.constant 0 : index
    %9 = vector.load %arg4[%c0_9, %c0_10, %c0_11] : memref<1x64x64xbf16, #tpu.memory_space<vmem>>, vector<1x64x64xbf16>
    %10 = vector.shape_cast %9 : vector<1x64x64xbf16> to vector<64x64xbf16>
    %c0_12 = arith.constant 0 : index
    %c0_13 = arith.constant 0 : index
    %c0_14 = arith.constant 0 : index
    %11 = vector.load %arg6[%c0_12, %c0_13, %c0_14] : memref<1x8x17xf32, #tpu.memory_space<vmem>>, vector<1x8x17xf32>
    %12 = vector.shape_cast %11 : vector<1x8x17xf32> to vector<8x17xf32>
    %13 = vector.extract_strided_slice %6 {offsets = [0, 0], sizes = [1, 32], strides = [1, 1]} : vector<23x96xf32> to vector<1x32xf32>
    %14 = vector.shape_cast %13 : vector<1x32xf32> to vector<32xf32>
    %15 = vector.extract_strided_slice %6 {offsets = [1, 0], sizes = [1, 32], strides = [1, 1]} : vector<23x96xf32> to vector<1x32xf32>
    %16 = vector.shape_cast %15 : vector<1x32xf32> to vector<32xf32>
    %cst = arith.constant dense<0.000000e+00> : vector<8xf32>
    %17 = vector.multi_reduction <add>, %4, %cst [1] : vector<8x32xf32> to vector<8xf32>
    %18 = vector.shape_cast %17 : vector<8xf32> to vector<8x1xf32>
    %cst_15 = arith.constant 3.200000e+01 : f32
    %19 = vector.broadcast %cst_15 : f32 to vector<8x1xf32>
    %20 = arith.divf %18, %19 : vector<8x1xf32>
    %21 = vector.broadcast %20 : vector<8x1xf32> to vector<8x32xf32>
    %22 = arith.subf %4, %21 : vector<8x32xf32>
    %23 = arith.mulf %22, %22 : vector<8x32xf32>
    %cst_16 = arith.constant dense<0.000000e+00> : vector<8xf32>
    %24 = vector.multi_reduction <add>, %23, %cst_16 [1] : vector<8x32xf32> to vector<8xf32>
    %25 = vector.shape_cast %24 : vector<8xf32> to vector<8x1xf32>
    %cst_17 = arith.constant 3.200000e+01 : f32
    %26 = vector.broadcast %cst_17 : f32 to vector<8x1xf32>
    %27 = arith.divf %25, %26 : vector<8x1xf32>
    %28 = vector.broadcast %20 : vector<8x1xf32> to vector<8x32xf32>
    %29 = arith.subf %4, %28 : vector<8x32xf32>
    %cst_18 = arith.constant 9.99999974E-6 : f32
    %30 = vector.broadcast %cst_18 : f32 to vector<8x1xf32>
    %31 = arith.addf %27, %30 : vector<8x1xf32>
    %32 = math.rsqrt %31 : vector<8x1xf32>
    %33 = vector.broadcast %32 : vector<8x1xf32> to vector<8x32xf32>
    %34 = arith.mulf %29, %33 : vector<8x32xf32>
    %35 = vector.shape_cast %14 : vector<32xf32> to vector<1x32xf32>
    %36 = vector.broadcast %35 : vector<1x32xf32> to vector<8x32xf32>
    %37 = arith.mulf %34, %36 : vector<8x32xf32>
    %38 = vector.shape_cast %16 : vector<32xf32> to vector<1x32xf32>
    %39 = vector.broadcast %38 : vector<1x32xf32> to vector<8x32xf32>
    %40 = arith.addf %37, %39 : vector<8x32xf32>
    %41 = vector.extract_strided_slice %8 {offsets = [0, 224], sizes = [32, 64], strides = [1, 1]} : vector<32x352xbf16> to vector<32x64xbf16>
    %42 = arith.truncf %40 : vector<8x32xf32> to vector<8x32xbf16>
    %cst_19 = arith.constant dense<0.000000e+00> : vector<8x64xf32>
    %43 = tpu.matmul %42, %41, %cst_19 {dimension_numbers = #tpu.dot_dimension_numbers<[1], [0], [0], [1], [0, 0, 1, 1], [], []>} : vector<8x32xbf16>, vector<32x64xbf16>, vector<8x64xf32> -> vector<8x64xf32>
    %44 = vector.extract_strided_slice %6 {offsets = [2, 0], sizes = [1, 64], strides = [1, 1]} : vector<23x96xf32> to vector<1x64xf32>
    %45 = vector.shape_cast %44 : vector<1x64xf32> to vector<64xf32>
    %46 = vector.shape_cast %45 : vector<64xf32> to vector<1x64xf32>
    %47 = vector.broadcast %46 : vector<1x64xf32> to vector<8x64xf32>
    %48 = arith.addf %43, %47 : vector<8x64xf32>
    %49 = arith.negf %48 : vector<8x64xf32>
    %50 = math.exp %49 : vector<8x64xf32>
    %cst_20 = arith.constant 1.000000e+00 : f32
    %51 = vector.broadcast %cst_20 : f32 to vector<8x64xf32>
    %52 = arith.addf %51, %50 : vector<8x64xf32>
    %53 = arith.divf %51, %52 : vector<8x64xf32>
    %54 = arith.mulf %48, %53 : vector<8x64xf32>
    %55 = vector.extract_strided_slice %10 {offsets = [0, 0], sizes = [64, 32], strides = [1, 1]} : vector<64x64xbf16> to vector<64x32xbf16>
    %56 = arith.truncf %54 : vector<8x64xf32> to vector<8x64xbf16>
    %cst_21 = arith.constant dense<0.000000e+00> : vector<8x32xf32>
    %57 = tpu.matmul %56, %55, %cst_21 {dimension_numbers = #tpu.dot_dimension_numbers<[1], [0], [0], [1], [0, 0, 1, 1], [], []>} : vector<8x64xbf16>, vector<64x32xbf16>, vector<8x32xf32> -> vector<8x32xf32>
    %58 = vector.extract_strided_slice %6 {offsets = [3, 0], sizes = [1, 32], strides = [1, 1]} : vector<23x96xf32> to vector<1x32xf32>
    %59 = vector.shape_cast %58 : vector<1x32xf32> to vector<32xf32>
    %60 = vector.shape_cast %59 : vector<32xf32> to vector<1x32xf32>
    %61 = vector.broadcast %60 : vector<1x32xf32> to vector<8x32xf32>
    %62 = arith.addf %57, %61 : vector<8x32xf32>
    %cst_22 = arith.constant 5.000000e-01 : f32
    %63 = vector.broadcast %cst_22 : f32 to vector<8x32xf32>
    %64 = arith.mulf %63, %62 : vector<8x32xf32>
    %65 = arith.addf %4, %64 : vector<8x32xf32>
    %66 = vector.extract_strided_slice %6 {offsets = [4, 0], sizes = [1, 32], strides = [1, 1]} : vector<23x96xf32> to vector<1x32xf32>
    %67 = vector.shape_cast %66 : vector<1x32xf32> to vector<32xf32>
    %68 = vector.extract_strided_slice %6 {offsets = [5, 0], sizes = [1, 32], strides = [1, 1]} : vector<23x96xf32> to vector<1x32xf32>
    %69 = vector.shape_cast %68 : vector<1x32xf32> to vector<32xf32>
    %cst_23 = arith.constant dense<0.000000e+00> : vector<8xf32>
    %70 = vector.multi_reduction <add>, %65, %cst_23 [1] : vector<8x32xf32> to vector<8xf32>
    %71 = vector.shape_cast %70 : vector<8xf32> to vector<8x1xf32>
    %cst_24 = arith.constant 3.200000e+01 : f32
    %72 = vector.broadcast %cst_24 : f32 to vector<8x1xf32>
    %73 = arith.divf %71, %72 : vector<8x1xf32>
    %74 = vector.broadcast %73 : vector<8x1xf32> to vector<8x32xf32>
    %75 = arith.subf %65, %74 : vector<8x32xf32>
    %76 = arith.mulf %75, %75 : vector<8x32xf32>
    %cst_25 = arith.constant dense<0.000000e+00> : vector<8xf32>
    %77 = vector.multi_reduction <add>, %76, %cst_25 [1] : vector<8x32xf32> to vector<8xf32>
    %78 = vector.shape_cast %77 : vector<8xf32> to vector<8x1xf32>
    %cst_26 = arith.constant 3.200000e+01 : f32
    %79 = vector.broadcast %cst_26 : f32 to vector<8x1xf32>
    %80 = arith.divf %78, %79 : vector<8x1xf32>
    %81 = vector.broadcast %73 : vector<8x1xf32> to vector<8x32xf32>
    %82 = arith.subf %65, %81 : vector<8x32xf32>
    %cst_27 = arith.constant 9.99999974E-6 : f32
    %83 = vector.broadcast %cst_27 : f32 to vector<8x1xf32>
    %84 = arith.addf %80, %83 : vector<8x1xf32>
    %85 = math.rsqrt %84 : vector<8x1xf32>
    %86 = vector.broadcast %85 : vector<8x1xf32> to vector<8x32xf32>
    %87 = arith.mulf %82, %86 : vector<8x32xf32>
    %88 = vector.shape_cast %67 : vector<32xf32> to vector<1x32xf32>
    %89 = vector.broadcast %88 : vector<1x32xf32> to vector<8x32xf32>
    %90 = arith.mulf %87, %89 : vector<8x32xf32>
    %91 = vector.shape_cast %69 : vector<32xf32> to vector<1x32xf32>
    %92 = vector.broadcast %91 : vector<1x32xf32> to vector<8x32xf32>
    %93 = arith.addf %90, %92 : vector<8x32xf32>
    %94 = vector.extract_strided_slice %8 {offsets = [0, 0], sizes = [32, 96], strides = [1, 1]} : vector<32x352xbf16> to vector<32x96xbf16>
    %95 = arith.truncf %93 : vector<8x32xf32> to vector<8x32xbf16>
    %cst_28 = arith.constant dense<0.000000e+00> : vector<8x96xf32>
    %96 = tpu.matmul %95, %94, %cst_28 {dimension_numbers = #tpu.dot_dimension_numbers<[1], [0], [0], [1], [0, 0, 1, 1], [], []>} : vector<8x32xbf16>, vector<32x96xbf16>, vector<8x96xf32> -> vector<8x96xf32>
    %97 = vector.extract_strided_slice %6 {offsets = [6, 0], sizes = [1, 96], strides = [1, 1]} : vector<23x96xf32> to vector<1x96xf32>
    %98 = vector.shape_cast %97 : vector<1x96xf32> to vector<96xf32>
    %99 = vector.shape_cast %98 : vector<96xf32> to vector<1x96xf32>
    %100 = vector.broadcast %99 : vector<1x96xf32> to vector<8x96xf32>
    %101 = arith.addf %96, %100 : vector<8x96xf32>
    %102 = tpu.iota {dimensions = array<i32: 0>} : vector<8x8xi32>
    %103 = tpu.iota {dimensions = array<i32: 1>} : vector<8x8xi32>
    %104 = arith.subi %103, %102 : vector<8x8xi32>
    %c-8_i32 = arith.constant -8 : i32
    %c8_i32 = arith.constant 8 : i32
    %105 = vector.broadcast %c-8_i32 : i32 to vector<8x8xi32>
    %106 = arith.maxsi %105, %104 : vector<8x8xi32>
    %107 = vector.broadcast %c8_i32 : i32 to vector<8x8xi32>
    %108 = arith.minsi %107, %106 : vector<8x8xi32>
    %c8_i32_29 = arith.constant 8 : i32
    %109 = vector.broadcast %c8_i32_29 : i32 to vector<8x8xi32>
    %110 = arith.addi %108, %109 : vector<8x8xi32>
    %111 = tpu.iota {dimensions = array<i32: 2>} : vector<8x8x17xi32>
    %112 = vector.shape_cast %110 : vector<8x8xi32> to vector<8x8x1xi32>
    %113 = vector.broadcast %112 : vector<8x8x1xi32> to vector<8x8x17xi32>
    %114 = arith.cmpi eq, %113, %111 : vector<8x8x17xi32>
    %115 = arith.extui %114 : vector<8x8x17xi1> to vector<8x8x17xi32>
    %116 = arith.sitofp %115 : vector<8x8x17xi32> to vector<8x8x17xf32>
    %117 = vector.extract_strided_slice %101 {offsets = [0, 0], sizes = [8, 8], strides = [1, 1]} : vector<8x96xf32> to vector<8x8xf32>
    %118 = vector.extract_strided_slice %101 {offsets = [0, 32], sizes = [8, 8], strides = [1, 1]} : vector<8x96xf32> to vector<8x8xf32>
    %119 = vector.extract_strided_slice %101 {offsets = [0, 64], sizes = [8, 8], strides = [1, 1]} : vector<8x96xf32> to vector<8x8xf32>
    %cst_30 = arith.constant dense<0.000000e+00> : vector<8x8xf32>
    %120 = tpu.matmul %117, %118, %cst_30 {dimension_numbers = #tpu.dot_dimension_numbers<[1], [1], [0], [0], [0, 0, 1, 0], [], []>} : vector<8x8xf32>, vector<8x8xf32>, vector<8x8xf32> -> vector<8x8xf32>
    %cst_31 = arith.constant dense<0.000000e+00> : vector<8x17xf32>
    %121 = tpu.matmul %117, %12, %cst_31 {dimension_numbers = #tpu.dot_dimension_numbers<[1], [0], [0], [1], [0, 0, 1, 1], [], []>} : vector<8x8xf32>, vector<8x17xf32>, vector<8x17xf32> -> vector<8x17xf32>
    %122 = vector.shape_cast %121 : vector<8x17xf32> to vector<8x1x17xf32>
    %123 = vector.broadcast %122 : vector<8x1x17xf32> to vector<8x8x17xf32>
    %124 = arith.mulf %123, %116 : vector<8x8x17xf32>
    %cst_32 = arith.constant dense<0.000000e+00> : vector<8x8xf32>
    %125 = vector.multi_reduction <add>, %124, %cst_32 [2] : vector<8x8x17xf32> to vector<8x8xf32>
    %126 = arith.addf %120, %125 : vector<8x8xf32>
    %cst_33 = arith.constant 0.353553385 : f32
    %127 = vector.broadcast %cst_33 : f32 to vector<8x8xf32>
    %128 = arith.mulf %126, %127 : vector<8x8xf32>
    %cst_34 = arith.constant dense<0xFF800000> : vector<8xf32>
    %129 = vector.multi_reduction <maximumf>, %128, %cst_34 [1] : vector<8x8xf32> to vector<8xf32>
    %130 = vector.shape_cast %129 : vector<8xf32> to vector<8x1xf32>
    %131 = vector.broadcast %130 : vector<8x1xf32> to vector<8x8xf32>
    %132 = arith.subf %128, %131 : vector<8x8xf32>
    %133 = math.exp %132 : vector<8x8xf32>
    %cst_35 = arith.constant dense<0.000000e+00> : vector<8xf32>
    %134 = vector.multi_reduction <add>, %133, %cst_35 [1] : vector<8x8xf32> to vector<8xf32>
    %135 = vector.shape_cast %134 : vector<8xf32> to vector<8x1xf32>
    %136 = tpu.reciprocal %135 {approx = true} : vector<8x1xf32> -> vector<8x1xf32>
    %137 = vector.broadcast %136 : vector<8x1xf32> to vector<8x8xf32>
    %138 = arith.mulf %133, %137 : vector<8x8xf32>
    %cst_36 = arith.constant dense<0.000000e+00> : vector<8x8xf32>
    %139 = tpu.matmul %138, %119, %cst_36 {dimension_numbers = #tpu.dot_dimension_numbers<[1], [0], [0], [1], [0, 0, 1, 1], [], []>} : vector<8x8xf32>, vector<8x8xf32>, vector<8x8xf32> -> vector<8x8xf32>
    %140 = vector.extract_strided_slice %101 {offsets = [0, 8], sizes = [8, 8], strides = [1, 1]} : vector<8x96xf32> to vector<8x8xf32>
    %141 = vector.extract_strided_slice %101 {offsets = [0, 40], sizes = [8, 8], strides = [1, 1]} : vector<8x96xf32> to vector<8x8xf32>
    %142 = vector.extract_strided_slice %101 {offsets = [0, 72], sizes = [8, 8], strides = [1, 1]} : vector<8x96xf32> to vector<8x8xf32>
    %cst_37 = arith.constant dense<0.000000e+00> : vector<8x8xf32>
    %143 = tpu.matmul %140, %141, %cst_37 {dimension_numbers = #tpu.dot_dimension_numbers<[1], [1], [0], [0], [0, 0, 1, 0], [], []>} : vector<8x8xf32>, vector<8x8xf32>, vector<8x8xf32> -> vector<8x8xf32>
    %cst_38 = arith.constant dense<0.000000e+00> : vector<8x17xf32>
    %144 = tpu.matmul %140, %12, %cst_38 {dimension_numbers = #tpu.dot_dimension_numbers<[1], [0], [0], [1], [0, 0, 1, 1], [], []>} : vector<8x8xf32>, vector<8x17xf32>, vector<8x17xf32> -> vector<8x17xf32>
    %145 = vector.shape_cast %144 : vector<8x17xf32> to vector<8x1x17xf32>
    %146 = vector.broadcast %145 : vector<8x1x17xf32> to vector<8x8x17xf32>
    %147 = arith.mulf %146, %116 : vector<8x8x17xf32>
    %cst_39 = arith.constant dense<0.000000e+00> : vector<8x8xf32>
    %148 = vector.multi_reduction <add>, %147, %cst_39 [2] : vector<8x8x17xf32> to vector<8x8xf32>
    %149 = arith.addf %143, %148 : vector<8x8xf32>
    %cst_40 = arith.constant 0.353553385 : f32
    %150 = vector.broadcast %cst_40 : f32 to vector<8x8xf32>
    %151 = arith.mulf %149, %150 : vector<8x8xf32>
    %cst_41 = arith.constant dense<0xFF800000> : vector<8xf32>
    %152 = vector.multi_reduction <maximumf>, %151, %cst_41 [1] : vector<8x8xf32> to vector<8xf32>
    %153 = vector.shape_cast %152 : vector<8xf32> to vector<8x1xf32>
    %154 = vector.broadcast %153 : vector<8x1xf32> to vector<8x8xf32>
    %155 = arith.subf %151, %154 : vector<8x8xf32>
    %156 = math.exp %155 : vector<8x8xf32>
    %cst_42 = arith.constant dense<0.000000e+00> : vector<8xf32>
    %157 = vector.multi_reduction <add>, %156, %cst_42 [1] : vector<8x8xf32> to vector<8xf32>
    %158 = vector.shape_cast %157 : vector<8xf32> to vector<8x1xf32>
    %159 = tpu.reciprocal %158 {approx = true} : vector<8x1xf32> -> vector<8x1xf32>
    %160 = vector.broadcast %159 : vector<8x1xf32> to vector<8x8xf32>
    %161 = arith.mulf %156, %160 : vector<8x8xf32>
    %cst_43 = arith.constant dense<0.000000e+00> : vector<8x8xf32>
    %162 = tpu.matmul %161, %142, %cst_43 {dimension_numbers = #tpu.dot_dimension_numbers<[1], [0], [0], [1], [0, 0, 1, 1], [], []>} : vector<8x8xf32>, vector<8x8xf32>, vector<8x8xf32> -> vector<8x8xf32>
    %163 = vector.extract_strided_slice %101 {offsets = [0, 16], sizes = [8, 8], strides = [1, 1]} : vector<8x96xf32> to vector<8x8xf32>
    %164 = vector.extract_strided_slice %101 {offsets = [0, 48], sizes = [8, 8], strides = [1, 1]} : vector<8x96xf32> to vector<8x8xf32>
    %165 = vector.extract_strided_slice %101 {offsets = [0, 80], sizes = [8, 8], strides = [1, 1]} : vector<8x96xf32> to vector<8x8xf32>
    %cst_44 = arith.constant dense<0.000000e+00> : vector<8x8xf32>
    %166 = tpu.matmul %163, %164, %cst_44 {dimension_numbers = #tpu.dot_dimension_numbers<[1], [1], [0], [0], [0, 0, 1, 0], [], []>} : vector<8x8xf32>, vector<8x8xf32>, vector<8x8xf32> -> vector<8x8xf32>
    %cst_45 = arith.constant dense<0.000000e+00> : vector<8x17xf32>
    %167 = tpu.matmul %163, %12, %cst_45 {dimension_numbers = #tpu.dot_dimension_numbers<[1], [0], [0], [1], [0, 0, 1, 1], [], []>} : vector<8x8xf32>, vector<8x17xf32>, vector<8x17xf32> -> vector<8x17xf32>
    %168 = vector.shape_cast %167 : vector<8x17xf32> to vector<8x1x17xf32>
    %169 = vector.broadcast %168 : vector<8x1x17xf32> to vector<8x8x17xf32>
    %170 = arith.mulf %169, %116 : vector<8x8x17xf32>
    %cst_46 = arith.constant dense<0.000000e+00> : vector<8x8xf32>
    %171 = vector.multi_reduction <add>, %170, %cst_46 [2] : vector<8x8x17xf32> to vector<8x8xf32>
    %172 = arith.addf %166, %171 : vector<8x8xf32>
    %cst_47 = arith.constant 0.353553385 : f32
    %173 = vector.broadcast %cst_47 : f32 to vector<8x8xf32>
    %174 = arith.mulf %172, %173 : vector<8x8xf32>
    %cst_48 = arith.constant dense<0xFF800000> : vector<8xf32>
    %175 = vector.multi_reduction <maximumf>, %174, %cst_48 [1] : vector<8x8xf32> to vector<8xf32>
    %176 = vector.shape_cast %175 : vector<8xf32> to vector<8x1xf32>
    %177 = vector.broadcast %176 : vector<8x1xf32> to vector<8x8xf32>
    %178 = arith.subf %174, %177 : vector<8x8xf32>
    %179 = math.exp %178 : vector<8x8xf32>
    %cst_49 = arith.constant dense<0.000000e+00> : vector<8xf32>
    %180 = vector.multi_reduction <add>, %179, %cst_49 [1] : vector<8x8xf32> to vector<8xf32>
    %181 = vector.shape_cast %180 : vector<8xf32> to vector<8x1xf32>
    %182 = tpu.reciprocal %181 {approx = true} : vector<8x1xf32> -> vector<8x1xf32>
    %183 = vector.broadcast %182 : vector<8x1xf32> to vector<8x8xf32>
    %184 = arith.mulf %179, %183 : vector<8x8xf32>
    %cst_50 = arith.constant dense<0.000000e+00> : vector<8x8xf32>
    %185 = tpu.matmul %184, %165, %cst_50 {dimension_numbers = #tpu.dot_dimension_numbers<[1], [0], [0], [1], [0, 0, 1, 1], [], []>} : vector<8x8xf32>, vector<8x8xf32>, vector<8x8xf32> -> vector<8x8xf32>
    %186 = vector.extract_strided_slice %101 {offsets = [0, 24], sizes = [8, 8], strides = [1, 1]} : vector<8x96xf32> to vector<8x8xf32>
    %187 = vector.extract_strided_slice %101 {offsets = [0, 56], sizes = [8, 8], strides = [1, 1]} : vector<8x96xf32> to vector<8x8xf32>
    %188 = vector.extract_strided_slice %101 {offsets = [0, 88], sizes = [8, 8], strides = [1, 1]} : vector<8x96xf32> to vector<8x8xf32>
    %cst_51 = arith.constant dense<0.000000e+00> : vector<8x8xf32>
    %189 = tpu.matmul %186, %187, %cst_51 {dimension_numbers = #tpu.dot_dimension_numbers<[1], [1], [0], [0], [0, 0, 1, 0], [], []>} : vector<8x8xf32>, vector<8x8xf32>, vector<8x8xf32> -> vector<8x8xf32>
    %cst_52 = arith.constant dense<0.000000e+00> : vector<8x17xf32>
    %190 = tpu.matmul %186, %12, %cst_52 {dimension_numbers = #tpu.dot_dimension_numbers<[1], [0], [0], [1], [0, 0, 1, 1], [], []>} : vector<8x8xf32>, vector<8x17xf32>, vector<8x17xf32> -> vector<8x17xf32>
    %191 = vector.shape_cast %190 : vector<8x17xf32> to vector<8x1x17xf32>
    %192 = vector.broadcast %191 : vector<8x1x17xf32> to vector<8x8x17xf32>
    %193 = arith.mulf %192, %116 : vector<8x8x17xf32>
    %cst_53 = arith.constant dense<0.000000e+00> : vector<8x8xf32>
    %194 = vector.multi_reduction <add>, %193, %cst_53 [2] : vector<8x8x17xf32> to vector<8x8xf32>
    %195 = arith.addf %189, %194 : vector<8x8xf32>
    %cst_54 = arith.constant 0.353553385 : f32
    %196 = vector.broadcast %cst_54 : f32 to vector<8x8xf32>
    %197 = arith.mulf %195, %196 : vector<8x8xf32>
    %cst_55 = arith.constant dense<0xFF800000> : vector<8xf32>
    %198 = vector.multi_reduction <maximumf>, %197, %cst_55 [1] : vector<8x8xf32> to vector<8xf32>
    %199 = vector.shape_cast %198 : vector<8xf32> to vector<8x1xf32>
    %200 = vector.broadcast %199 : vector<8x1xf32> to vector<8x8xf32>
    %201 = arith.subf %197, %200 : vector<8x8xf32>
    %202 = math.exp %201 : vector<8x8xf32>
    %cst_56 = arith.constant dense<0.000000e+00> : vector<8xf32>
    %203 = vector.multi_reduction <add>, %202, %cst_56 [1] : vector<8x8xf32> to vector<8xf32>
    %204 = vector.shape_cast %203 : vector<8xf32> to vector<8x1xf32>
    %205 = tpu.reciprocal %204 {approx = true} : vector<8x1xf32> -> vector<8x1xf32>
    %206 = vector.broadcast %205 : vector<8x1xf32> to vector<8x8xf32>
    %207 = arith.mulf %202, %206 : vector<8x8xf32>
    %cst_57 = arith.constant dense<0.000000e+00> : vector<8x8xf32>
    %208 = tpu.matmul %207, %188, %cst_57 {dimension_numbers = #tpu.dot_dimension_numbers<[1], [0], [0], [1], [0, 0, 1, 1], [], []>} : vector<8x8xf32>, vector<8x8xf32>, vector<8x8xf32> -> vector<8x8xf32>
    %209 = tpu.concatenate %139, %162, %185, %208 in 1 : vector<8x8xf32>, vector<8x8xf32>, vector<8x8xf32>, vector<8x8xf32> -> vector<8x32xf32>
    %210 = vector.extract_strided_slice %8 {offsets = [0, 96], sizes = [32, 32], strides = [1, 1]} : vector<32x352xbf16> to vector<32x32xbf16>
    %211 = arith.truncf %209 : vector<8x32xf32> to vector<8x32xbf16>
    %cst_58 = arith.constant dense<0.000000e+00> : vector<8x32xf32>
    %212 = tpu.matmul %211, %210, %cst_58 {dimension_numbers = #tpu.dot_dimension_numbers<[1], [0], [0], [1], [0, 0, 1, 1], [], []>} : vector<8x32xbf16>, vector<32x32xbf16>, vector<8x32xf32> -> vector<8x32xf32>
    %213 = vector.extract_strided_slice %6 {offsets = [7, 0], sizes = [1, 32], strides = [1, 1]} : vector<23x96xf32> to vector<1x32xf32>
    %214 = vector.shape_cast %213 : vector<1x32xf32> to vector<32xf32>
    %215 = vector.shape_cast %214 : vector<32xf32> to vector<1x32xf32>
    %216 = vector.broadcast %215 : vector<1x32xf32> to vector<8x32xf32>
    %217 = arith.addf %212, %216 : vector<8x32xf32>
    %218 = arith.addf %65, %217 : vector<8x32xf32>
    %219 = vector.extract_strided_slice %6 {offsets = [8, 0], sizes = [1, 32], strides = [1, 1]} : vector<23x96xf32> to vector<1x32xf32>
    %220 = vector.shape_cast %219 : vector<1x32xf32> to vector<32xf32>
    %221 = vector.extract_strided_slice %6 {offsets = [9, 0], sizes = [1, 32], strides = [1, 1]} : vector<23x96xf32> to vector<1x32xf32>
    %222 = vector.shape_cast %221 : vector<1x32xf32> to vector<32xf32>
    %cst_59 = arith.constant dense<0.000000e+00> : vector<8xf32>
    %223 = vector.multi_reduction <add>, %218, %cst_59 [1] : vector<8x32xf32> to vector<8xf32>
    %224 = vector.shape_cast %223 : vector<8xf32> to vector<8x1xf32>
    %cst_60 = arith.constant 3.200000e+01 : f32
    %225 = vector.broadcast %cst_60 : f32 to vector<8x1xf32>
    %226 = arith.divf %224, %225 : vector<8x1xf32>
    %227 = vector.broadcast %226 : vector<8x1xf32> to vector<8x32xf32>
    %228 = arith.subf %218, %227 : vector<8x32xf32>
    %229 = arith.mulf %228, %228 : vector<8x32xf32>
    %cst_61 = arith.constant dense<0.000000e+00> : vector<8xf32>
    %230 = vector.multi_reduction <add>, %229, %cst_61 [1] : vector<8x32xf32> to vector<8xf32>
    %231 = vector.shape_cast %230 : vector<8xf32> to vector<8x1xf32>
    %cst_62 = arith.constant 3.200000e+01 : f32
    %232 = vector.broadcast %cst_62 : f32 to vector<8x1xf32>
    %233 = arith.divf %231, %232 : vector<8x1xf32>
    %234 = vector.broadcast %226 : vector<8x1xf32> to vector<8x32xf32>
    %235 = arith.subf %218, %234 : vector<8x32xf32>
    %cst_63 = arith.constant 9.99999974E-6 : f32
    %236 = vector.broadcast %cst_63 : f32 to vector<8x1xf32>
    %237 = arith.addf %233, %236 : vector<8x1xf32>
    %238 = math.rsqrt %237 : vector<8x1xf32>
    %239 = vector.broadcast %238 : vector<8x1xf32> to vector<8x32xf32>
    %240 = arith.mulf %235, %239 : vector<8x32xf32>
    %241 = vector.shape_cast %220 : vector<32xf32> to vector<1x32xf32>
    %242 = vector.broadcast %241 : vector<1x32xf32> to vector<8x32xf32>
    %243 = arith.mulf %240, %242 : vector<8x32xf32>
    %244 = vector.shape_cast %222 : vector<32xf32> to vector<1x32xf32>
    %245 = vector.broadcast %244 : vector<1x32xf32> to vector<8x32xf32>
    %246 = arith.addf %243, %245 : vector<8x32xf32>
    %247 = vector.extract_strided_slice %8 {offsets = [0, 128], sizes = [32, 64], strides = [1, 1]} : vector<32x352xbf16> to vector<32x64xbf16>
    %248 = arith.truncf %246 : vector<8x32xf32> to vector<8x32xbf16>
    %cst_64 = arith.constant dense<0.000000e+00> : vector<8x64xf32>
    %249 = tpu.matmul %248, %247, %cst_64 {dimension_numbers = #tpu.dot_dimension_numbers<[1], [0], [0], [1], [0, 0, 1, 1], [], []>} : vector<8x32xbf16>, vector<32x64xbf16>, vector<8x64xf32> -> vector<8x64xf32>
    %250 = vector.extract_strided_slice %249 {offsets = [0, 0], sizes = [8, 32], strides = [1, 1]} : vector<8x64xf32> to vector<8x32xf32>
    %251 = vector.extract_strided_slice %249 {offsets = [0, 32], sizes = [8, 32], strides = [1, 1]} : vector<8x64xf32> to vector<8x32xf32>
    %252 = arith.negf %251 : vector<8x32xf32>
    %253 = math.exp %252 : vector<8x32xf32>
    %cst_65 = arith.constant 1.000000e+00 : f32
    %254 = vector.broadcast %cst_65 : f32 to vector<8x32xf32>
    %255 = arith.addf %254, %253 : vector<8x32xf32>
    %256 = arith.divf %254, %255 : vector<8x32xf32>
    %257 = arith.mulf %250, %256 : vector<8x32xf32>
    %cst_66 = arith.constant 0.000000e+00 : f32
    %258 = vector.broadcast %cst_66 : f32 to vector<12x32xf32>
    %c0_67 = arith.constant 0 : index
    %c0_68 = arith.constant 0 : index
    %259 = vector.load %arg8[%c0_67, %c0_68] : memref<12x32xf32, #tpu.memory_space<vmem>>, vector<12x32xf32>
    tpu.vector_store %arg8[%c0_67, %c0_68], %258 {strides = array<i32>} : memref<12x32xf32, #tpu.memory_space<vmem>>, vector<12x32xf32>,
    %c4 = arith.constant 4 : index
    %c0_69 = arith.constant 0 : index
    %260 = vector.load %arg8[%c4, %c0_69] : memref<12x32xf32, #tpu.memory_space<vmem>>, vector<8x32xf32>
    tpu.vector_store %arg8[%c4, %c0_69], %257 {strides = array<i32>} : memref<12x32xf32, #tpu.memory_space<vmem>>, vector<8x32xf32>,
    %cst_70 = arith.constant 0.000000e+00 : f32
    %261 = vector.broadcast %cst_70 : f32 to vector<8x32xf32>
    %c0_71 = arith.constant 0 : index
    %c0_72 = arith.constant 0 : index
    %262 = vector.load %arg8[%c0_71, %c0_72] : memref<12x32xf32, #tpu.memory_space<vmem>>, vector<8x32xf32>
    %263 = vector.extract_strided_slice %6 {offsets = [18, 0], sizes = [1, 32], strides = [1, 1]} : vector<23x96xf32> to vector<1x32xf32>
    %264 = vector.shape_cast %263 : vector<1x32xf32> to vector<32xf32>
    %265 = vector.shape_cast %264 : vector<32xf32> to vector<1x32xf32>
    %266 = vector.broadcast %265 : vector<1x32xf32> to vector<8x32xf32>
    %267 = arith.mulf %262, %266 : vector<8x32xf32>
    %268 = arith.addf %261, %267 : vector<8x32xf32>
    %c1 = arith.constant 1 : index
    %c0_73 = arith.constant 0 : index
    %269 = vector.load %arg8[%c1, %c0_73] : memref<12x32xf32, #tpu.memory_space<vmem>>, vector<8x32xf32>
    %270 = vector.extract_strided_slice %6 {offsets = [19, 0], sizes = [1, 32], strides = [1, 1]} : vector<23x96xf32> to vector<1x32xf32>
    %271 = vector.shape_cast %270 : vector<1x32xf32> to vector<32xf32>
    %272 = vector.shape_cast %271 : vector<32xf32> to vector<1x32xf32>
    %273 = vector.broadcast %272 : vector<1x32xf32> to vector<8x32xf32>
    %274 = arith.mulf %269, %273 : vector<8x32xf32>
    %275 = arith.addf %268, %274 : vector<8x32xf32>
    %c2 = arith.constant 2 : index
    %c0_74 = arith.constant 0 : index
    %276 = vector.load %arg8[%c2, %c0_74] : memref<12x32xf32, #tpu.memory_space<vmem>>, vector<8x32xf32>
    %277 = vector.extract_strided_slice %6 {offsets = [20, 0], sizes = [1, 32], strides = [1, 1]} : vector<23x96xf32> to vector<1x32xf32>
    %278 = vector.shape_cast %277 : vector<1x32xf32> to vector<32xf32>
    %279 = vector.shape_cast %278 : vector<32xf32> to vector<1x32xf32>
    %280 = vector.broadcast %279 : vector<1x32xf32> to vector<8x32xf32>
    %281 = arith.mulf %276, %280 : vector<8x32xf32>
    %282 = arith.addf %275, %281 : vector<8x32xf32>
    %c3 = arith.constant 3 : index
    %c0_75 = arith.constant 0 : index
    %283 = vector.load %arg8[%c3, %c0_75] : memref<12x32xf32, #tpu.memory_space<vmem>>, vector<8x32xf32>
    %284 = vector.extract_strided_slice %6 {offsets = [21, 0], sizes = [1, 32], strides = [1, 1]} : vector<23x96xf32> to vector<1x32xf32>
    %285 = vector.shape_cast %284 : vector<1x32xf32> to vector<32xf32>
    %286 = vector.shape_cast %285 : vector<32xf32> to vector<1x32xf32>
    %287 = vector.broadcast %286 : vector<1x32xf32> to vector<8x32xf32>
    %288 = arith.mulf %283, %287 : vector<8x32xf32>
    %289 = arith.addf %282, %288 : vector<8x32xf32>
    %c4_76 = arith.constant 4 : index
    %c0_77 = arith.constant 0 : index
    %290 = vector.load %arg8[%c4_76, %c0_77] : memref<12x32xf32, #tpu.memory_space<vmem>>, vector<8x32xf32>
    %291 = vector.extract_strided_slice %6 {offsets = [22, 0], sizes = [1, 32], strides = [1, 1]} : vector<23x96xf32> to vector<1x32xf32>
    %292 = vector.shape_cast %291 : vector<1x32xf32> to vector<32xf32>
    %293 = vector.shape_cast %292 : vector<32xf32> to vector<1x32xf32>
    %294 = vector.broadcast %293 : vector<1x32xf32> to vector<8x32xf32>
    %295 = arith.mulf %290, %294 : vector<8x32xf32>
    %296 = arith.addf %289, %295 : vector<8x32xf32>
    %297 = vector.extract_strided_slice %6 {offsets = [10, 0], sizes = [1, 32], strides = [1, 1]} : vector<23x96xf32> to vector<1x32xf32>
    %298 = vector.shape_cast %297 : vector<1x32xf32> to vector<32xf32>
    %299 = vector.extract_strided_slice %6 {offsets = [11, 0], sizes = [1, 32], strides = [1, 1]} : vector<23x96xf32> to vector<1x32xf32>
    %300 = vector.shape_cast %299 : vector<1x32xf32> to vector<32xf32>
    %cst_78 = arith.constant dense<0.000000e+00> : vector<8xf32>
    %301 = vector.multi_reduction <add>, %296, %cst_78 [1] : vector<8x32xf32> to vector<8xf32>
    %302 = vector.shape_cast %301 : vector<8xf32> to vector<8x1xf32>
    %cst_79 = arith.constant 3.200000e+01 : f32
    %303 = vector.broadcast %cst_79 : f32 to vector<8x1xf32>
    %304 = arith.divf %302, %303 : vector<8x1xf32>
    %305 = vector.broadcast %304 : vector<8x1xf32> to vector<8x32xf32>
    %306 = arith.subf %296, %305 : vector<8x32xf32>
    %307 = arith.mulf %306, %306 : vector<8x32xf32>
    %cst_80 = arith.constant dense<0.000000e+00> : vector<8xf32>
    %308 = vector.multi_reduction <add>, %307, %cst_80 [1] : vector<8x32xf32> to vector<8xf32>
    %309 = vector.shape_cast %308 : vector<8xf32> to vector<8x1xf32>
    %cst_81 = arith.constant 3.200000e+01 : f32
    %310 = vector.broadcast %cst_81 : f32 to vector<8x1xf32>
    %311 = arith.divf %309, %310 : vector<8x1xf32>
    %312 = vector.broadcast %304 : vector<8x1xf32> to vector<8x32xf32>
    %313 = arith.subf %296, %312 : vector<8x32xf32>
    %cst_82 = arith.constant 9.99999974E-6 : f32
    %314 = vector.broadcast %cst_82 : f32 to vector<8x1xf32>
    %315 = arith.addf %311, %314 : vector<8x1xf32>
    %316 = math.rsqrt %315 : vector<8x1xf32>
    %317 = vector.broadcast %316 : vector<8x1xf32> to vector<8x32xf32>
    %318 = arith.mulf %313, %317 : vector<8x32xf32>
    %319 = vector.shape_cast %298 : vector<32xf32> to vector<1x32xf32>
    %320 = vector.broadcast %319 : vector<1x32xf32> to vector<8x32xf32>
    %321 = arith.mulf %318, %320 : vector<8x32xf32>
    %322 = vector.shape_cast %300 : vector<32xf32> to vector<1x32xf32>
    %323 = vector.broadcast %322 : vector<1x32xf32> to vector<8x32xf32>
    %324 = arith.addf %321, %323 : vector<8x32xf32>
    %325 = arith.negf %324 : vector<8x32xf32>
    %326 = math.exp %325 : vector<8x32xf32>
    %cst_83 = arith.constant 1.000000e+00 : f32
    %327 = vector.broadcast %cst_83 : f32 to vector<8x32xf32>
    %328 = arith.addf %327, %326 : vector<8x32xf32>
    %329 = arith.divf %327, %328 : vector<8x32xf32>
    %330 = arith.mulf %324, %329 : vector<8x32xf32>
    %331 = vector.extract_strided_slice %8 {offsets = [0, 192], sizes = [32, 32], strides = [1, 1]} : vector<32x352xbf16> to vector<32x32xbf16>
    %332 = arith.truncf %330 : vector<8x32xf32> to vector<8x32xbf16>
    %cst_84 = arith.constant dense<0.000000e+00> : vector<8x32xf32>
    %333 = tpu.matmul %332, %331, %cst_84 {dimension_numbers = #tpu.dot_dimension_numbers<[1], [0], [0], [1], [0, 0, 1, 1], [], []>} : vector<8x32xbf16>, vector<32x32xbf16>, vector<8x32xf32> -> vector<8x32xf32>
    %334 = arith.addf %218, %333 : vector<8x32xf32>
    %335 = vector.extract_strided_slice %6 {offsets = [12, 0], sizes = [1, 32], strides = [1, 1]} : vector<23x96xf32> to vector<1x32xf32>
    %336 = vector.shape_cast %335 : vector<1x32xf32> to vector<32xf32>
    %337 = vector.extract_strided_slice %6 {offsets = [13, 0], sizes = [1, 32], strides = [1, 1]} : vector<23x96xf32> to vector<1x32xf32>
    %338 = vector.shape_cast %337 : vector<1x32xf32> to vector<32xf32>
    %cst_85 = arith.constant dense<0.000000e+00> : vector<8xf32>
    %339 = vector.multi_reduction <add>, %334, %cst_85 [1] : vector<8x32xf32> to vector<8xf32>
    %340 = vector.shape_cast %339 : vector<8xf32> to vector<8x1xf32>
    %cst_86 = arith.constant 3.200000e+01 : f32
    %341 = vector.broadcast %cst_86 : f32 to vector<8x1xf32>
    %342 = arith.divf %340, %341 : vector<8x1xf32>
    %343 = vector.broadcast %342 : vector<8x1xf32> to vector<8x32xf32>
    %344 = arith.subf %334, %343 : vector<8x32xf32>
    %345 = arith.mulf %344, %344 : vector<8x32xf32>
    %cst_87 = arith.constant dense<0.000000e+00> : vector<8xf32>
    %346 = vector.multi_reduction <add>, %345, %cst_87 [1] : vector<8x32xf32> to vector<8xf32>
    %347 = vector.shape_cast %346 : vector<8xf32> to vector<8x1xf32>
    %cst_88 = arith.constant 3.200000e+01 : f32
    %348 = vector.broadcast %cst_88 : f32 to vector<8x1xf32>
    %349 = arith.divf %347, %348 : vector<8x1xf32>
    %350 = vector.broadcast %342 : vector<8x1xf32> to vector<8x32xf32>
    %351 = arith.subf %334, %350 : vector<8x32xf32>
    %cst_89 = arith.constant 9.99999974E-6 : f32
    %352 = vector.broadcast %cst_89 : f32 to vector<8x1xf32>
    %353 = arith.addf %349, %352 : vector<8x1xf32>
    %354 = math.rsqrt %353 : vector<8x1xf32>
    %355 = vector.broadcast %354 : vector<8x1xf32> to vector<8x32xf32>
    %356 = arith.mulf %351, %355 : vector<8x32xf32>
    %357 = vector.shape_cast %336 : vector<32xf32> to vector<1x32xf32>
    %358 = vector.broadcast %357 : vector<1x32xf32> to vector<8x32xf32>
    %359 = arith.mulf %356, %358 : vector<8x32xf32>
    %360 = vector.shape_cast %338 : vector<32xf32> to vector<1x32xf32>
    %361 = vector.broadcast %360 : vector<1x32xf32> to vector<8x32xf32>
    %362 = arith.addf %359, %361 : vector<8x32xf32>
    %363 = vector.extract_strided_slice %8 {offsets = [0, 288], sizes = [32, 64], strides = [1, 1]} : vector<32x352xbf16> to vector<32x64xbf16>
    %364 = arith.truncf %362 : vector<8x32xf32> to vector<8x32xbf16>
    %cst_90 = arith.constant dense<0.000000e+00> : vector<8x64xf32>
    %365 = tpu.matmul %364, %363, %cst_90 {dimension_numbers = #tpu.dot_dimension_numbers<[1], [0], [0], [1], [0, 0, 1, 1], [], []>} : vector<8x32xbf16>, vector<32x64xbf16>, vector<8x64xf32> -> vector<8x64xf32>
    %366 = vector.extract_strided_slice %6 {offsets = [14, 0], sizes = [1, 64], strides = [1, 1]} : vector<23x96xf32> to vector<1x64xf32>
    %367 = vector.shape_cast %366 : vector<1x64xf32> to vector<64xf32>
    %368 = vector.shape_cast %367 : vector<64xf32> to vector<1x64xf32>
    %369 = vector.broadcast %368 : vector<1x64xf32> to vector<8x64xf32>
    %370 = arith.addf %365, %369 : vector<8x64xf32>
    %371 = arith.negf %370 : vector<8x64xf32>
    %372 = math.exp %371 : vector<8x64xf32>
    %cst_91 = arith.constant 1.000000e+00 : f32
    %373 = vector.broadcast %cst_91 : f32 to vector<8x64xf32>
    %374 = arith.addf %373, %372 : vector<8x64xf32>
    %375 = arith.divf %373, %374 : vector<8x64xf32>
    %376 = arith.mulf %370, %375 : vector<8x64xf32>
    %377 = vector.extract_strided_slice %10 {offsets = [0, 32], sizes = [64, 32], strides = [1, 1]} : vector<64x64xbf16> to vector<64x32xbf16>
    %378 = arith.truncf %376 : vector<8x64xf32> to vector<8x64xbf16>
    %cst_92 = arith.constant dense<0.000000e+00> : vector<8x32xf32>
    %379 = tpu.matmul %378, %377, %cst_92 {dimension_numbers = #tpu.dot_dimension_numbers<[1], [0], [0], [1], [0, 0, 1, 1], [], []>} : vector<8x64xbf16>, vector<64x32xbf16>, vector<8x32xf32> -> vector<8x32xf32>
    %380 = vector.extract_strided_slice %6 {offsets = [15, 0], sizes = [1, 32], strides = [1, 1]} : vector<23x96xf32> to vector<1x32xf32>
    %381 = vector.shape_cast %380 : vector<1x32xf32> to vector<32xf32>
    %382 = vector.shape_cast %381 : vector<32xf32> to vector<1x32xf32>
    %383 = vector.broadcast %382 : vector<1x32xf32> to vector<8x32xf32>
    %384 = arith.addf %379, %383 : vector<8x32xf32>
    %cst_93 = arith.constant 5.000000e-01 : f32
    %385 = vector.broadcast %cst_93 : f32 to vector<8x32xf32>
    %386 = arith.mulf %385, %384 : vector<8x32xf32>
    %387 = arith.addf %334, %386 : vector<8x32xf32>
    %388 = vector.extract_strided_slice %6 {offsets = [16, 0], sizes = [1, 32], strides = [1, 1]} : vector<23x96xf32> to vector<1x32xf32>
    %389 = vector.shape_cast %388 : vector<1x32xf32> to vector<32xf32>
    %390 = vector.extract_strided_slice %6 {offsets = [17, 0], sizes = [1, 32], strides = [1, 1]} : vector<23x96xf32> to vector<1x32xf32>
    %391 = vector.shape_cast %390 : vector<1x32xf32> to vector<32xf32>
    %cst_94 = arith.constant dense<0.000000e+00> : vector<8xf32>
    %392 = vector.multi_reduction <add>, %387, %cst_94 [1] : vector<8x32xf32> to vector<8xf32>
    %393 = vector.shape_cast %392 : vector<8xf32> to vector<8x1xf32>
    %cst_95 = arith.constant 3.200000e+01 : f32
    %394 = vector.broadcast %cst_95 : f32 to vector<8x1xf32>
    %395 = arith.divf %393, %394 : vector<8x1xf32>
    %396 = vector.broadcast %395 : vector<8x1xf32> to vector<8x32xf32>
    %397 = arith.subf %387, %396 : vector<8x32xf32>
    %398 = arith.mulf %397, %397 : vector<8x32xf32>
    %cst_96 = arith.constant dense<0.000000e+00> : vector<8xf32>
    %399 = vector.multi_reduction <add>, %398, %cst_96 [1] : vector<8x32xf32> to vector<8xf32>
    %400 = vector.shape_cast %399 : vector<8xf32> to vector<8x1xf32>
    %cst_97 = arith.constant 3.200000e+01 : f32
    %401 = vector.broadcast %cst_97 : f32 to vector<8x1xf32>
    %402 = arith.divf %400, %401 : vector<8x1xf32>
    %403 = vector.broadcast %395 : vector<8x1xf32> to vector<8x32xf32>
    %404 = arith.subf %387, %403 : vector<8x32xf32>
    %cst_98 = arith.constant 9.99999974E-6 : f32
    %405 = vector.broadcast %cst_98 : f32 to vector<8x1xf32>
    %406 = arith.addf %402, %405 : vector<8x1xf32>
    %407 = math.rsqrt %406 : vector<8x1xf32>
    %408 = vector.broadcast %407 : vector<8x1xf32> to vector<8x32xf32>
    %409 = arith.mulf %404, %408 : vector<8x32xf32>
    %410 = vector.shape_cast %389 : vector<32xf32> to vector<1x32xf32>
    %411 = vector.broadcast %410 : vector<1x32xf32> to vector<8x32xf32>
    %412 = arith.mulf %409, %411 : vector<8x32xf32>
    %413 = vector.shape_cast %391 : vector<32xf32> to vector<1x32xf32>
    %414 = vector.broadcast %413 : vector<1x32xf32> to vector<8x32xf32>
    %415 = arith.addf %412, %414 : vector<8x32xf32>
    %c0_99 = arith.constant 0 : index
    %c0_100 = arith.constant 0 : index
    %c0_101 = arith.constant 0 : index
    %416 = vector.load %arg7[%c0_99, %c0_100, %c0_101] : memref<1x8x32xf32, #tpu.memory_space<vmem>>, vector<1x8x32xf32>
    %417 = vector.shape_cast %416 : vector<1x8x32xf32> to vector<8x32xf32>
    %418 = vector.shape_cast %415 : vector<8x32xf32> to vector<1x8x32xf32>
    tpu.vector_store %arg7[%c0_99, %c0_100, %c0_101], %418 {strides = array<i32>} : memref<1x8x32xf32, #tpu.memory_space<vmem>>, vector<1x8x32xf32>,
    return
  }
  func.func @transform_0(%arg0: i32, %arg1: i32) -> (i32, i32, i32) {
    %c0_i32 = arith.constant 0 : i32
    %c0_i32_0 = arith.constant 0 : i32
    %c0_i32_1 = arith.constant 0 : i32
    return %arg0, %c0_i32, %c0_i32_0 : i32, i32, i32
  }
  func.func @transform_1(%arg0: i32, %arg1: i32) -> (i32, i32, i32) {
    %c0_i32 = arith.constant 0 : i32
    %c0_i32_0 = arith.constant 0 : i32
    %c0_i32_1 = arith.constant 0 : i32
    return %arg1, %c0_i32, %c0_i32_0 : i32, i32, i32
  }
  func.func @transform_2(%arg0: i32, %arg1: i32) -> (i32, i32, i32) {
    %c0_i32 = arith.constant 0 : i32
    %c0_i32_0 = arith.constant 0 : i32
    %c0_i32_1 = arith.constant 0 : i32
    return %arg1, %c0_i32, %c0_i32_0 : i32, i32, i32
  }
  func.func @transform_3(%arg0: i32, %arg1: i32) -> (i32, i32, i32) {
    %c0_i32 = arith.constant 0 : i32
    %c0_i32_0 = arith.constant 0 : i32
    %c0_i32_1 = arith.constant 0 : i32
    return %arg1, %c0_i32, %c0_i32_0 : i32, i32, i32
  }
  func.func @transform_4(%arg0: i32, %arg1: i32) -> (i32, i32, i32) {
    %c0_i32 = arith.constant 0 : i32
    %c0_i32_0 = arith.constant 0 : i32
    %c0_i32_1 = arith.constant 0 : i32
    return %arg1, %c0_i32, %c0_i32_0 : i32, i32, i32
  }
  func.func @transform_5(%arg0: i32, %arg1: i32) -> (i32, i32, i32) {
    %c0_i32 = arith.constant 0 : i32
    %c0_i32_0 = arith.constant 0 : i32
    %c0_i32_1 = arith.constant 0 : i32
    return %arg0, %c0_i32, %c0_i32_0 : i32, i32, i32
  }
}

</mosaic_0001>

<llo_original>
// kernel: _lambda_.1
$region0: #{_lambda_.1}
  #allocation0 [shape = 'u32[]', space=smem, size = 0x4, offset = 0x4, fixed_abs, tag = 'smem constant byte address 0x4 - core index']
  #allocation1 [shape = 'u32[144,128]{1,0:T(1,128)}', space=vmem, size = 0x12000, scoped, tag = 'internal scratch']
  #allocation2 [shape = 'f32[12,32]{1,0:T(8,128)}', space=vmem, size = 0x2000, scoped, tag = 'scratch operand']
  %s0 = inlined_call_operand.vmem [shape: f32[2,8,32], index: 0, kind: input, shape index: {}]
  %s1 = inlined_call_operand.vmem [shape: bf16[2,32,352], index: 1, kind: input, shape index: {}]
  %s2 = inlined_call_operand.vmem [shape: bf16[2,64,64], index: 2, kind: input, shape index: {}]
  %s3 = inlined_call_operand.vmem [shape: f32[2,23,96], index: 3, kind: input, shape index: {}]
  %s4 = inlined_call_operand.vmem [shape: f32[2,8,17], index: 4, kind: input, shape index: {}]
  %s5 = inlined_call_operand.hbm [shape: f32[2,8,32], index: 5, kind: output, shape index: {}]
  %s6 = sld [smem:[#allocation0]]
  $region57: #{_lambda_.1} parent=0
    _
  %s8 = ssub.s32 1, %s6
  %s9 = scalar_select 0, %s8, %s6
  $region1: #{_lambda_.1} parent=0
    #allocation3 [shape = 'u8[8192]{0}', space=vmem, size = 0x2000, scoped, tag = 'output window, operand 0']
    #allocation4 [shape = 's32[2]{0}', space=sflag, size = 0x8, scoped, tag = 'scoped memory for _lambda_.1']
    %10 = vsyncpa [#allocation4], 0
    %s11 = scalar_lea.sflag [#allocation4], 1
    %12 = vsyncpa %s11, 0
    loop: start=0, step=1, limit=6
    $region2: #{_lambda_.1} parent=1 // loop_pre_header
      _
    $region3: #{_lambda_.1} parent=1 // loop_header
      %s14 = sphi 0, %s18
      %p15 = scmp.ge.s32.totalorder %s14, 6
      %s21 = sphi 0, %s33
      %s22 = sphi 0, %s29
      %s23 = sphi 0, %s21
      %s24 = sphi 0, %s22
      %s25 = sphi 0, %s23
      %s26 = sphi 0, %s24
      %s36 = sphi 0, %s38
      %s39 = sphi 0, %s36
      %s40 = sphi 0, %s39
      %s56 = sphi 0, %s40
      %s62 = sphi 0, %s64
      %s65 = sphi 0, %s62
      %s66 = sphi 0, %s65
      %s82 = sphi 0, %s66
      %s88 = sphi 0, %s90
      %s91 = sphi 0, %s88
      %s92 = sphi 0, %s91
      %s108 = sphi 0, %s92
      %s114 = sphi 0, %s116
      %s117 = sphi 0, %s114
      %s118 = sphi 0, %s117
      %s134 = sphi 0, %s118
      %s140 = sphi 0, %s142
      %s143 = sphi 0, %s140
      %s144 = sphi 0, %s143
      %s160 = sphi 0, %s144
      %s166 = sphi 0, %s168
      %s169 = sphi 0, %s166
      %s170 = sphi 0, %s169
      %s186 = sphi 0, %s170
    $region4: #{_lambda_.1} parent=1 // loop_header_branch
      %17 = sbr.rel (%p15) target = $region8
    $region5: #{_lambda_.1} parent=1 // loop_body
      %s19 = ssub.s32 %s14, 1
      %s20 = ssub.s32 %s14, 2
      %s27 = sadd.s32 1, %s22
      %p28 = scmp.ge.s32.totalorder %s27, 2
      %s29 = scalar_select %p28, 0, %s27
      %s30 = sadd.s32 1, %s21
      %s31 = scalar_select %p28, %s30, %s21
      %p32 = scmp.ge.s32.totalorder %s31, 2
      %s33 = scalar_select %p32, 0, %s31
      %s34 = ssub.s32 %s21, %s33
      %p35 = scmp.eq.s32.totalorder %s34, 0
      %s37 = sadd.s32 %s36, 1
      %s38 = scalar_select %p35, %s36, %s37
      %p41 = pneg %p35
      %p42 = scmp.eq.s32.totalorder %s14, 3
      %p43 = por %p41, %p42
      %p44 = scmp.ne.s32.totalorder %s36, %s39
      %p45 = scmp.eq.s32.totalorder %s14, 0
      %p46 = por %p44, %p45
      %p47 = scmp.ne.s32.totalorder %s36, %s39
      %p48 = scmp.eq.s32.totalorder %s19, 3
      %p49 = por %p47, %p48
      %p50 = scmp.ne.s32.totalorder %s39, %s40
      %p51 = scmp.eq.s32.totalorder %s19, 0
      %p52 = por %p50, %p51
      %p53 = scmp.ne.s32.totalorder %s39, %s40
      %p54 = scmp.eq.s32.totalorder %s20, 3
      %p55 = por %p53, %p54
      %p57 = scmp.ne.s32.totalorder %s40, %s56
      %p58 = scmp.eq.s32.totalorder %s20, 0
      %p59 = por %p57, %p58
      %s60 = ssub.s32 %s22, %s29
      %p61 = scmp.eq.s32.totalorder %s60, 0
      %s63 = sadd.s32 %s62, 1
      %s64 = scalar_select %p61, %s62, %s63
      %p67 = pneg %p61
      %p68 = scmp.eq.s32.totalorder %s14, 3
      %p69 = por %p67, %p68
      %p70 = scmp.ne.s32.totalorder %s62, %s65
      %p71 = scmp.eq.s32.totalorder %s14, 0
      %p72 = por %p70, %p71
      %p73 = scmp.ne.s32.totalorder %s62, %s65
      %p74 = scmp.eq.s32.totalorder %s19, 3
      %p75 = por %p73, %p74
      %p76 = scmp.ne.s32.totalorder %s65, %s66
      %p77 = scmp.eq.s32.totalorder %s19, 0
      %p78 = por %p76, %p77
      %p79 = scmp.ne.s32.totalorder %s65, %s66
      %p80 = scmp.eq.s32.totalorder %s20, 3
      %p81 = por %p79, %p80
      %p83 = scmp.ne.s32.totalorder %s66, %s82
      %p84 = scmp.eq.s32.totalorder %s20, 0
      %p85 = por %p83, %p84
      %s86 = ssub.s32 %s22, %s29
      %p87 = scmp.eq.s32.totalorder %s86, 0
      %s89 = sadd.s32 %s88, 1
      %s90 = scalar_select %p87, %s88, %s89
      %p93 = pneg %p87
      %p94 = scmp.eq.s32.totalorder %s14, 3
      %p95 = por %p93, %p94
      %p96 = scmp.ne.s32.totalorder %s88, %s91
      %p97 = scmp.eq.s32.totalorder %s14, 0
      %p98 = por %p96, %p97
      %p99 = scmp.ne.s32.totalorder %s88, %s91
      %p100 = scmp.eq.s32.totalorder %s19, 3
      %p101 = por %p99, %p100
      %p102 = scmp.ne.s32.totalorder %s91, %s92
      %p103 = scmp.eq.s32.totalorder %s19, 0
      %p104 = por %p102, %p103
      %p105 = scmp.ne.s32.totalorder %s91, %s92
      %p106 = scmp.eq.s32.totalorder %s20, 3
      %p107 = por %p105, %p106
      %p109 = scmp.ne.s32.totalorder %s92, %s108
      %p110 = scmp.eq.s32.totalorder %s20, 0
      %p111 = por %p109, %p110
      %s112 = ssub.s32 %s22, %s29
      %p113 = scmp.eq.s32.totalorder %s112, 0
      %s115 = sadd.s32 %s114, 1
      %s116 = scalar_select %p113, %s114, %s115
      %p119 = pneg %p113
      %p120 = scmp.eq.s32.totalorder %s14, 3
      %p121 = por %p119, %p120
      %p122 = scmp.ne.s32.totalorder %s114, %s117
      %p123 = scmp.eq.s32.totalorder %s14, 0
      %p124 = por %p122, %p123
      %p125 = scmp.ne.s32.totalorder %s114, %s117
      %p126 = scmp.eq.s32.totalorder %s19, 3
      %p127 = por %p125, %p126
      %p128 = scmp.ne.s32.totalorder %s117, %s118
      %p129 = scmp.eq.s32.totalorder %s19, 0
      %p130 = por %p128, %p129
      %p131 = scmp.ne.s32.totalorder %s117, %s118
      %p132 = scmp.eq.s32.totalorder %s20, 3
      %p133 = por %p131, %p132
      %p135 = scmp.ne.s32.totalorder %s118, %s134
      %p136 = scmp.eq.s32.totalorder %s20, 0
      %p137 = por %p135, %p136
      %s138 = ssub.s32 %s22, %s29
      %p139 = scmp.eq.s32.totalorder %s138, 0
      %s141 = sadd.s32 %s140, 1
      %s142 = scalar_select %p139, %s140, %s141
      %p145 = pneg %p139
      %p146 = scmp.eq.s32.totalorder %s14, 3
      %p147 = por %p145, %p146
      %p148 = scmp.ne.s32.totalorder %s140, %s143
      %p149 = scmp.eq.s32.totalorder %s14, 0
      %p150 = por %p148, %p149
      %p151 = scmp.ne.s32.totalorder %s140, %s143
      %p152 = scmp.eq.s32.totalorder %s19, 3
      %p153 = por %p151, %p152
      %p154 = scmp.ne.s32.totalorder %s143, %s144
      %p155 = scmp.eq.s32.totalorder %s19, 0
      %p156 = por %p154, %p155
      %p157 = scmp.ne.s32.totalorder %s143, %s144
      %p158 = scmp.eq.s32.totalorder %s20, 3
      %p159 = por %p157, %p158
      %p161 = scmp.ne.s32.totalorder %s144, %s160
      %p162 = scmp.eq.s32.totalorder %s20, 0
      %p163 = por %p161, %p162
      %s164 = ssub.s32 %s21, %s33
      %p165 = scmp.eq.s32.totalorder %s164, 0
      %s167 = sadd.s32 %s166, 1
      %s168 = scalar_select %p165, %s166, %s167
      %p171 = pneg %p165
      %p172 = scmp.eq.s32.totalorder %s14, 3
      %p173 = por %p171, %p172
      %p174 = scmp.ne.s32.totalorder %s166, %s169
      %p175 = scmp.eq.s32.totalorder %s14, 0
      %p176 = por %p174, %p175
      %p177 = scmp.ne.s32.totalorder %s166, %s169
      %p178 = scmp.eq.s32.totalorder %s19, 3
      %p179 = por %p177, %p178
      %p180 = scmp.ne.s32.totalorder %s169, %s170
      %p181 = scmp.eq.s32.totalorder %s19, 0
      %p182 = por %p180, %p181
      %p183 = scmp.ne.s32.totalorder %s169, %s170
      %p184 = scmp.eq.s32.totalorder %s20, 3
      %p185 = por %p183, %p184
      %p187 = scmp.ne.s32.totalorder %s170, %s186
      %p188 = scmp.eq.s32.totalorder %s20, 0
      %p189 = por %p187, %p188
      %p190 = scmp.le.s32.totalorder 1, %s14
      %p191 = scmp.lt.s32.totalorder %s14, 5
      %p192 = pnand %p190, %p191
      %p193 = pneg %p192
      // Predicated region
      $region9: #{_lambda_.1} parent=5 // pred_check
        _
      $region10: #{_lambda_.1} parent=5 // pred_check_branch
        %195 = sbr.rel (%p192) target = $region12
      $region11: #{_lambda_.1} parent=5 // pred_region
        %s196 = ssub.s32 %s14, 1
      $region12: #{_lambda_.1} parent=5 // pred_fallthru
        _
      %p197 = scmp.lt.s32.totalorder %s14, 4
      // Predicated region
      $region13: #{_lambda_.1} parent=5 // pred_check
        %p198 = pneg %p197
      $region14: #{_lambda_.1} parent=5 // pred_check_branch
        %200 = sbr.rel (%p198) target = $region16
      $region15: #{_lambda_.1} parent=5 // pred_region
        // Predicated region
        $region17: #{_lambda_.1} parent=15 // pred_check
          %p201 = pneg %p46
        $region18: #{_lambda_.1} parent=15 // pred_check_branch
          %203 = sbr.rel (%p201) target = $region20
        $region19: #{_lambda_.1} parent=15 // pred_region
          %p204 = scmp.lt.s32.totalorder %s21, 1
          %s205 = scalar_select %p204, %s21, 1
          %s206 = smul.addr %s205, 8
          %s207 = scalar_lea.vmem %s0, %s206
        $region20: #{_lambda_.1} parent=15 // pred_fallthru
          _
        // Predicated region
        $region21: #{_lambda_.1} parent=15 // pred_check
          %p208 = pneg %p72
        $region22: #{_lambda_.1} parent=15 // pred_check_branch
          %210 = sbr.rel (%p208) target = $region24
        $region23: #{_lambda_.1} parent=15 // pred_region
          %p211 = scmp.lt.s32.totalorder %s22, 1
          %s212 = scalar_select %p211, %s22, 1
          %s213 = smul.addr %s212, 12
          %s214 = smul.addr %s213, 4
          %s215 = scalar_lea.vmem %s1, %s214
        $region24: #{_lambda_.1} parent=15 // pred_fallthru
          _
        // Predicated region
        $region25: #{_lambda_.1} parent=15 // pred_check
          %p216 = pneg %p98
        $region26: #{_lambda_.1} parent=15 // pred_check_branch
          %218 = sbr.rel (%p216) target = $region28
        $region27: #{_lambda_.1} parent=15 // pred_region
          %p219 = scmp.lt.s32.totalorder %s22, 1
          %s220 = scalar_select %p219, %s22, 1
          %s221 = smul.addr %s220, 8
          %s222 = smul.addr %s221, 4
          %s223 = scalar_lea.vmem %s2, %s222
        $region28: #{_lambda_.1} parent=15 // pred_fallthru
          _
        // Predicated region
        $region29: #{_lambda_.1} parent=15 // pred_check
          %p224 = pneg %p124
        $region30: #{_lambda_.1} parent=15 // pred_check_branch
          %226 = sbr.rel (%p224) target = $region32
        $region31: #{_lambda_.1} parent=15 // pred_region
          %p227 = scmp.lt.s32.totalorder %s22, 1
          %s228 = scalar_select %p227, %s22, 1
          %s229 = smul.addr %s228, 3
          %s230 = smul.addr %s229, 8
          %s231 = scalar_lea.vmem %s3, %s230
        $region32: #{_lambda_.1} parent=15 // pred_fallthru
          _
        // Predicated region
        $region33: #{_lambda_.1} parent=15 // pred_check
          %p232 = pneg %p150
        $region34: #{_lambda_.1} parent=15 // pred_check_branch
          %234 = sbr.rel (%p232) target = $region36
        $region35: #{_lambda_.1} parent=15 // pred_region
          %p235 = scmp.lt.s32.totalorder %s22, 1
          %s236 = scalar_select %p235, %s22, 1
          %s237 = smul.addr %s236, 8
          %s238 = scalar_lea.vmem %s4, %s237
        $region36: #{_lambda_.1} parent=15 // pred_fallthru
          _
      $region16: #{_lambda_.1} parent=5 // pred_fallthru
        _
      %p239 = scmp.le.s32.totalorder 1, %s14
      %p240 = scmp.lt.s32.totalorder %s14, 5
      %p241 = pnand %p239, %p240
      %p242 = pneg %p241
      // Predicated region
      $region37: #{_lambda_.1} parent=5 // pred_check
        _
      $region38: #{_lambda_.1} parent=5 // pred_check_branch
        %244 = sbr.rel (%p241) target = $region40
      $region39: #{_lambda_.1} parent=5 // pred_region
        %s245 = ssub.s32 %s14, 1
        %p246 = scmp.lt.s32.totalorder %s23, 1
        %s247 = scalar_select %p246, %s23, 1
        %s248 = smul.addr %s247, 8
        %s249 = scalar_lea.vmem %s0, %s248
        %p250 = pneg %p52
        %p251 = pneg %p49
        %p252 = scmp.lt.s32.totalorder %s24, 1
        %s253 = scalar_select %p252, %s24, 1
        %s254 = smul.addr %s253, 12
        %s255 = smul.addr %s254, 4
        %s256 = scalar_lea.vmem %s1, %s255
        %p257 = pneg %p78
        %p258 = pneg %p75
        %p259 = scmp.lt.s32.totalorder %s24, 1
        %s260 = scalar_select %p259, %s24, 1
        %s261 = smul.addr %s260, 8
        %s262 = smul.addr %s261, 4
        %s263 = scalar_lea.vmem %s2, %s262
        %p264 = pneg %p104
        %p265 = pneg %p101
        %p266 = scmp.lt.s32.totalorder %s24, 1
        %s267 = scalar_select %p266, %s24, 1
        %s268 = smul.addr %s267, 3
        %s269 = smul.addr %s268, 8
        %s270 = scalar_lea.vmem %s3, %s269
        %p271 = pneg %p130
        %p272 = pneg %p127
        %p273 = scmp.lt.s32.totalorder %s24, 1
        %s274 = scalar_select %p273, %s24, 1
        %s275 = smul.addr %s274, 8
        %s276 = scalar_lea.vmem %s4, %s275
        %p277 = pneg %p156
        %p278 = pneg %p153
        %p279 = pneg %p182
        %p280 = pneg %p179
        %s281 = sand.u32 %s169, 1
        %s282 = scalar_lea.sflag [#allocation4], %s281
        %s283 = sand.u32 %s169, 1
        %s284 = smul.addr %s283, 8
        %s285 = scalar_lea.vmem [#allocation3], %s284
        %p286 = scmp.lt.s32.totalorder %s23, 1
        %s287 = scalar_select %p286, %s23, 1
        %s288 = smul.addr %s287, 8
        %s289 = scalar_lea.vmem %s0, %s288
        %p290 = scmp.lt.s32.totalorder %s24, 1
        %s291 = scalar_select %p290, %s24, 1
        %s292 = smul.addr %s291, 12
        %s293 = smul.addr %s292, 4
        %s294 = scalar_lea.vmem %s1, %s293
        %p295 = scmp.lt.s32.totalorder %s24, 1
        %s296 = scalar_select %p295, %s24, 1
        %s297 = smul.addr %s296, 8
        %s298 = smul.addr %s297, 4
        %s299 = scalar_lea.vmem %s2, %s298
        %p300 = scmp.lt.s32.totalorder %s24, 1
        %s301 = scalar_select %p300, %s24, 1
        %s302 = smul.addr %s301, 3
        %s303 = smul.addr %s302, 8
        %s304 = scalar_lea.vmem %s3, %s303
        %p305 = scmp.lt.s32.totalorder %s24, 1
        %s306 = scalar_select %p305, %s24, 1
        %s307 = smul.addr %s306, 8
        %s308 = scalar_lea.vmem %s4, %s307
        %p310 = scmp.eq.s32.totalorder %s24, 0
        // Predicated region
        $region41: #{_lambda_.1} parent=39 // pred_check
          %p311 = pneg %p310
        $region42: #{_lambda_.1} parent=39 // pred_check_branch
          %313 = sbr.rel (%p311) target = $region44
        $region43: #{_lambda_.1} parent=39 // pred_region
          %v314 = vld [vmem:[%s289] sm:$0xff]
          %vm315 = vcmask 261120
          %316 = vst.msk [vmem:[%s285] sm:$0xff] %vm315, %v314
        $region44: #{_lambda_.1} parent=39 // pred_fallthru
          _
        %v317 = vld [vmem:[%s285] sm:$0xff]
        %v318 = vld [vmem:[%s304] sm:$0xff]
        %v319 = vld [vmem:[%s304 + $0x8] sm:$0xff]
        %v320 = vld [vmem:[%s304 + $0x10] sm:$0x7f]
        %v321 = vld [vmem:[%s294] sm:$0xff]
        %v322 = vld [vmem:[%s294 + $0x8] sm:$0xf]
        %v323 = vld [vmem:[%s294 + $0xc] sm:$0xff]
        %v324 = vld [vmem:[%s294 + $0x14] sm:$0xf]
        %v325 = vld [vmem:[%s294 + $0x18] sm:$0xff]
        %v326 = vld [vmem:[%s294 + $0x20] sm:$0xf]
        %v327 = vld [vmem:[%s294 + $0x24] sm:$0xff]
        %v328 = vld [vmem:[%s294 + $0x2c] sm:$0xf]
        %v329 = vld [vmem:[%s299] sm:$0xf]
        %v330 = vld [vmem:[%s299 + $0x4] sm:$0xf]
        %v331 = vld [vmem:[%s299 + $0x8] sm:$0xf]
        %v332 = vld [vmem:[%s299 + $0xc] sm:$0xf]
        %v333 = vld [vmem:[%s299 + $0x10] sm:$0xf]
        %v334 = vld [vmem:[%s299 + $0x14] sm:$0xf]
        %v335 = vld [vmem:[%s299 + $0x18] sm:$0xf]
        %v336 = vld [vmem:[%s299 + $0x1c] sm:$0xf]
        %v337 = vld [vmem:[%s308] sm:$0xff]
        %vm338 = vcmask 261120
        %v339 = vsel %vm338, %v317, 0.0
        %340 = vadd.xlane.f32.xlu0 %v339
        %v341 = vpop.xlane.xlu0 %340
        %v342 = vrcp.pop 32.0
        %v343 = vmul.f32 %v341, %v342
        %v344 = vsub.f32 %v317, %v343
        %v345 = vmul.f32 %v344, %v344
        %v346 = vsel %vm338, %v345, 0.0
        %347 = vadd.xlane.f32.xlu0 %v346
        %v348 = vpop.xlane.xlu0 %347
        %v349 = vmul.f32 %v348, %v342
        %v350 = vadd.f32 %v349, 1e-05
        %v351 = vrsqrt.pop %v350
        %v352 = vmul.f32 %v344, %v351
        %v353 = vlaneseq
        %v354 = vshrl.u32 %v353, 7
        %v355 = vsub.s32 0, %v354
        %v356 = vrot.slane %v318, %v355
        %v357 = vmul.f32 %v352, %v356
        %v358 = vlaneseq
        %v359 = vshrl.u32 %v358, 7
        %v360 = vsub.s32 1, %v359
        %v361 = vrot.slane %v318, %v360
        %v362 = vadd.f32 %v357, %v361
        %v363 = vpack.c.bf16 %v362, %v362
        %v364 = vlaneseq
        %v365 = vshrl.u32 %v364, 7
        %v366 = vsub.s32 2, %v365
        %v367 = vrot.slane %v318, %v366
        %v376 = vunpack.c.h.b16 %v321
        %v377 = vunpack.c.l.b16 %v322
        %v378 = vunpack.c.h.b16 %v323
        %v379 = vunpack.c.l.b16 %v324
        %v380 = vunpack.c.h.b16 %v325
        %v381 = vunpack.c.l.b16 %v326
        %v382 = vunpack.c.h.b16 %v327
        %v383 = vunpack.c.l.b16 %v328
        %v384 = vpack.c.b16 %v378, %v376
        %v385 = vpack.c.b16 %v379, %v377
        %v386 = vpack.c.b16 %v382, %v380
        %v387 = vpack.c.b16 %v383, %v381
        %388 = vrot.lane.b32.xlu0 %v384, 32
        %v389 = vpop.permute.xlu0 %388
        %390 = vrot.lane.b32.xlu0 %v385, 32
        %v391 = vpop.permute.xlu0 %390
        %392 = vrot.lane.b32.xlu0 %v386, 32
        %v393 = vpop.permute.xlu0 %392
        %394 = vrot.lane.b32.xlu0 %v387, 32
        %v395 = vpop.permute.xlu0 %394
        %vm396 = vcmask 261120
        %v397 = vsel %vm396, %v389, %v391
        %v398 = vsel %vm396, %v393, %v395
        %v402 = vsel %vm338, %v363, 0
        %404 = vmatprep.subr.bf16.mxu0 0
        %405 = vmatpush1.bf16.msra.mxu0 0
        %406 = vmatprep.subr.bf16.mxu0 0
        %407 = vmatpush1.bf16.msra.mxu0 0
        %408 = vmatprep.subr.bf16.mxu0 0
        %409 = vmatpush1.bf16.msra.mxu0 0
        %410 = vmatprep.subr.bf16.mxu0 0
        %411 = vmatpush1.bf16.msra.mxu0 0
        %412 = vmatprep.subr.bf16.mxu0 0
        %413 = vmatpush1.bf16.msra.mxu0 0
        %414 = vmatprep.subr.bf16.mxu0 0
        %415 = vmatpush1.bf16.msra.mxu0 0
        %416 = vmatprep.subr.bf16.mxu0 0
        %417 = vmatpush1.bf16.msra.mxu0 %v398
        %418 = vmatprep.subr.bf16.mxu0 0
        %419 = vmatpush1.bf16.msra.mxu0 %v397
        %420 = vmatprep.subr.bf16.mxu0 0
        %421 = vmatpush2.bf16.msra.mxu0 0
        %422 = vmatprep.subr.bf16.mxu0 0
        %423 = vmatpush2.bf16.msra.mxu0 0
        %424 = vmatprep.subr.bf16.mxu0 0
        %425 = vmatpush2.bf16.msra.mxu0 0
        %426 = vmatprep.subr.bf16.mxu0 0
        %427 = vmatpush2.bf16.msra.mxu0 0
        %428 = vmatprep.subr.bf16.mxu0 0
        %429 = vmatpush2.bf16.msra.mxu0 0
        %430 = vmatprep.subr.bf16.mxu0 0
        %431 = vmatpush2.bf16.msra.mxu0 0
        %432 = vmatprep.subr.bf16.mxu0 0
        %433 = vmatpush2.bf16.msra.mxu0 0
        %434 = vmatprep.subr.bf16.mxu0 0
        %435 = vmatpush2.bf16.msra.mxu0 0
        %436 = vmatprep.mubr.bf16.mxu0 0
        %437 = vmatmul.mubr.bf16.gmra.mxu0 %v402
        %v438 = vpop.f32.mrf.mxu0
        %v439 = vadd.f32 %v367, %v438
        %v440 = vpop.f32.mrf.mxu0
        %v441 = vpop.f32.mrf.mxu0
        %v442 = vpop.f32.mrf.mxu0
        %443 = vdwg.mxu0
        %v444 = vxor.u32 %v439, 2147483648
        %v445 = vmul.f32 %v444, 1.442695
        %v446 = vpow.pop %v445
        %v447 = vadd.f32 %v446, 1.0
        %v448 = vrcp.pop %v447
        %v449 = vmul.f32 1.0, %v448
        %v450 = vmul.f32 %v439, %v449
        %v451 = vpack.c.bf16 %v450, %v450
        %v452 = vlaneseq
        %v453 = vshrl.u32 %v452, 7
        %v454 = vsub.s32 3, %v453
        %v455 = vrot.slane %v318, %v454
        %v464 = vunpack.c.l.b16 %v329
        %v465 = vunpack.c.l.b16 %v330
        %v466 = vunpack.c.l.b16 %v331
        %v467 = vunpack.c.l.b16 %v332
        %v468 = vunpack.c.l.b16 %v333
        %v469 = vunpack.c.l.b16 %v334
        %v470 = vunpack.c.l.b16 %v335
        %v471 = vunpack.c.l.b16 %v336
        %v472 = vpack.c.b16 %v465, %v464
        %v473 = vpack.c.b16 %v467, %v466
        %v474 = vpack.c.b16 %v469, %v468
        %v475 = vpack.c.b16 %v471, %v470
        %vm480 = vcmask 523264
        %v482 = vsel %vm480, %v451, 0
        %484 = vmatprep.subr.bf16.mxu0 0
        %485 = vmatpush1.bf16.msra.mxu0 0
        %486 = vmatprep.subr.bf16.mxu0 0
        %487 = vmatpush1.bf16.msra.mxu0 0
        %488 = vmatprep.subr.bf16.mxu0 0
        %489 = vmatpush1.bf16.msra.mxu0 0
        %490 = vmatprep.subr.bf16.mxu0 0
        %491 = vmatpush1.bf16.msra.mxu0 0
        %492 = vmatprep.subr.bf16.mxu0 0
        %493 = vmatpush1.bf16.msra.mxu0 %v475
        %494 = vmatprep.subr.bf16.mxu0 0
        %495 = vmatpush1.bf16.msra.mxu0 %v474
        %496 = vmatprep.subr.bf16.mxu0 0
        %497 = vmatpush1.bf16.msra.mxu0 %v473
        %498 = vmatprep.subr.bf16.mxu0 0
        %499 = vmatpush1.bf16.msra.mxu0 %v472
        %500 = vmatprep.subr.bf16.mxu0 0
        %501 = vmatpush2.bf16.msra.mxu0 0
        %502 = vmatprep.subr.bf16.mxu0 0
        %503 = vmatpush2.bf16.msra.mxu0 0
        %504 = vmatprep.subr.bf16.mxu0 0
        %505 = vmatpush2.bf16.msra.mxu0 0
        %506 = vmatprep.subr.bf16.mxu0 0
        %507 = vmatpush2.bf16.msra.mxu0 0
        %508 = vmatprep.subr.bf16.mxu0 0
        %509 = vmatpush2.bf16.msra.mxu0 0
        %510 = vmatprep.subr.bf16.mxu0 0
        %511 = vmatpush2.bf16.msra.mxu0 0
        %512 = vmatprep.subr.bf16.mxu0 0
        %513 = vmatpush2.bf16.msra.mxu0 0
        %514 = vmatprep.subr.bf16.mxu0 0
        %515 = vmatpush2.bf16.msra.mxu0 0
        %516 = vmatprep.mubr.bf16.mxu0 0
        %517 = vmatmul.mubr.bf16.gmra.mxu0 %v482
        %v518 = vpop.f32.mrf.mxu0
        %v519 = vadd.f32 %v455, %v518
        %v520 = vpop.f32.mrf.mxu0
        %v521 = vpop.f32.mrf.mxu0
        %v522 = vpop.f32.mrf.mxu0
        %523 = vdwg.mxu0
        %v524 = vmul.f32 %v519, 0.5
        %v525 = vadd.f32 %v317, %v524
        %v526 = vsel %vm338, %v525, 0.0
        %527 = vadd.xlane.f32.xlu0 %v526
        %v528 = vpop.xlane.xlu0 %527
        %v529 = vmul.f32 %v528, %v342
        %v530 = vsub.f32 %v525, %v529
        %v531 = vmul.f32 %v530, %v530
        %v532 = vsel %vm338, %v531, 0.0
        %533 = vadd.xlane.f32.xlu0 %v532
        %v534 = vpop.xlane.xlu0 %533
        %v535 = vmul.f32 %v534, %v342
        %v536 = vadd.f32 %v535, 1e-05
        %v537 = vrsqrt.pop %v536
        %v538 = vmul.f32 %v530, %v537
        %v539 = vlaneseq
        %v540 = vshrl.u32 %v539, 7
        %v541 = vsub.s32 4, %v540
        %v542 = vrot.slane %v318, %v541
        %v543 = vmul.f32 %v538, %v542
        %v544 = vlaneseq
        %v545 = vshrl.u32 %v544, 7
        %v546 = vsub.s32 5, %v545
        %v547 = vrot.slane %v318, %v546
        %v548 = vadd.f32 %v543, %v547
        %v549 = vpack.c.bf16 %v548, %v548
        %v550 = vlaneseq
        %v551 = vshrl.u32 %v550, 7
        %v552 = vsub.s32 6, %v551
        %v553 = vrot.slane %v318, %v552
        %v554 = vunpack.c.l.b16 %v321
        %v555 = vunpack.c.l.b16 %v323
        %v556 = vunpack.c.l.b16 %v325
        %v557 = vunpack.c.l.b16 %v327
        %v558 = vpack.c.b16 %v555, %v554
        %v559 = vpack.c.b16 %v557, %v556
        %v563 = vsel %vm338, %v549, 0
        %565 = vmatprep.subr.bf16.mxu0 0
        %566 = vmatpush1.bf16.msra.mxu0 0
        %567 = vmatprep.subr.bf16.mxu0 0
        %568 = vmatpush1.bf16.msra.mxu0 0
        %569 = vmatprep.subr.bf16.mxu0 0
        %570 = vmatpush1.bf16.msra.mxu0 0
        %571 = vmatprep.subr.bf16.mxu0 0
        %572 = vmatpush1.bf16.msra.mxu0 0
        %573 = vmatprep.subr.bf16.mxu0 0
        %574 = vmatpush1.bf16.msra.mxu0 0
        %575 = vmatprep.subr.bf16.mxu0 0
        %576 = vmatpush1.bf16.msra.mxu0 0
        %577 = vmatprep.subr.bf16.mxu0 0
        %578 = vmatpush1.bf16.msra.mxu0 %v559
        %579 = vmatprep.subr.bf16.mxu0 0
        %580 = vmatpush1.bf16.msra.mxu0 %v558
        %581 = vmatprep.subr.bf16.mxu0 0
        %582 = vmatpush2.bf16.msra.mxu0 0
        %583 = vmatprep.subr.bf16.mxu0 0
        %584 = vmatpush2.bf16.msra.mxu0 0
        %585 = vmatprep.subr.bf16.mxu0 0
        %586 = vmatpush2.bf16.msra.mxu0 0
        %587 = vmatprep.subr.bf16.mxu0 0
        %588 = vmatpush2.bf16.msra.mxu0 0
        %589 = vmatprep.subr.bf16.mxu0 0
        %590 = vmatpush2.bf16.msra.mxu0 0
        %591 = vmatprep.subr.bf16.mxu0 0
        %592 = vmatpush2.bf16.msra.mxu0 0
        %593 = vmatprep.subr.bf16.mxu0 0
        %594 = vmatpush2.bf16.msra.mxu0 0
        %595 = vmatprep.subr.bf16.mxu0 0
        %596 = vmatpush2.bf16.msra.mxu0 0
        %597 = vmatprep.mubr.bf16.mxu0 0
        %598 = vmatmul.mubr.bf16.gmra.mxu0 %v563
        %v599 = vpop.f32.mrf.mxu0
        %v600 = vadd.f32 %v553, %v599
        %v601 = vpop.f32.mrf.mxu0
        %v602 = vpop.f32.mrf.mxu0
        %v603 = vpop.f32.mrf.mxu0
        %604 = vdwg.mxu0
        %v605 = vlaneseq
        %v606 = vshrl.u32 %v605, 7
        %v607 = vlaneseq
        %v608 = vand.u32 %v607, 127
        %v609 = vsub.s32 %v608, %v606
        %vm610 = vcmp.gt.s32.totalorder %v609, 4294967288
        %v611 = vsel %vm610, %v609, 4294967288
        %vm612 = vcmp.lt.s32.totalorder %v611, 8
        %v613 = vsel %vm612, %v611, 8
        %v614 = vadd.s32 %v613, 8
        %v615 = vlaneseq
        %v616 = vshrl.u32 %v615, 7
        %v617 = vsub.s32 0, %v616
        %v618 = vrot.slane %v614, %v617
        %620 = vbcast.lane.b32.xlu0 %v618, 256
        %v621 = vpop.permute.xlu0 %620
        %v622 = vlaneseq
        %v623 = vshrl.u32 %v622, 7
        %v624 = vsub.s32 1, %v623
        %v625 = vrot.slane %v614, %v624
        %627 = vbcast.lane.b32.xlu0 %v625, 256
        %v628 = vpop.permute.xlu0 %627
        %v629 = vlaneseq
        %v630 = vshrl.u32 %v629, 7
        %v631 = vsub.s32 2, %v630
        %v632 = vrot.slane %v614, %v631
        %634 = vbcast.lane.b32.xlu0 %v632, 256
        %v635 = vpop.permute.xlu0 %634
        %v636 = vlaneseq
        %v637 = vshrl.u32 %v636, 7
        %v638 = vsub.s32 3, %v637
        %v639 = vrot.slane %v614, %v638
        %641 = vbcast.lane.b32.xlu0 %v639, 256
        %v642 = vpop.permute.xlu0 %641
        %v643 = vlaneseq
        %v644 = vshrl.u32 %v643, 7
        %v645 = vsub.s32 4, %v644
        %v646 = vrot.slane %v614, %v645
        %648 = vbcast.lane.b32.xlu0 %v646, 256
        %v649 = vpop.permute.xlu0 %648
        %v650 = vlaneseq
        %v651 = vshrl.u32 %v650, 7
        %v652 = vsub.s32 5, %v651
        %v653 = vrot.slane %v614, %v652
        %655 = vbcast.lane.b32.xlu0 %v653, 256
        %v656 = vpop.permute.xlu0 %655
        %v657 = vlaneseq
        %v658 = vshrl.u32 %v657, 7
        %v659 = vsub.s32 6, %v658
        %v660 = vrot.slane %v614, %v659
        %662 = vbcast.lane.b32.xlu0 %v660, 256
        %v663 = vpop.permute.xlu0 %662
        %v664 = vlaneseq
        %v665 = vshrl.u32 %v664, 7
        %v666 = vsub.s32 7, %v665
        %v667 = vrot.slane %v614, %v666
        %669 = vbcast.lane.b32.xlu0 %v667, 256
        %v670 = vpop.permute.xlu0 %669
        %vm671 = vcmp.eq.s32.totalorder %v621, %v608
        %vm672 = vcmp.eq.s32.totalorder %v628, %v608
        %vm673 = vcmp.eq.s32.totalorder %v635, %v608
        %vm674 = vcmp.eq.s32.totalorder %v642, %v608
        %vm675 = vcmp.eq.s32.totalorder %v649, %v608
        %vm676 = vcmp.eq.s32.totalorder %v656, %v608
        %vm677 = vcmp.eq.s32.totalorder %v663, %v608
        %vm678 = vcmp.eq.s32.totalorder %v670, %v608
        %v679 = vsel %vm671, 1, 0
        %v680 = vsel %vm672, 1, 0
        %v681 = vsel %vm673, 1, 0
        %v682 = vsel %vm674, 1, 0
        %v683 = vsel %vm675, 1, 0
        %v684 = vsel %vm676, 1, 0
        %v685 = vsel %vm677, 1, 0
        %v686 = vsel %vm678, 1, 0
        %v687 = vcvt.s32.f32 %v679
        %v688 = vcvt.s32.f32 %v680
        %v689 = vcvt.s32.f32 %v681
        %v690 = vcvt.s32.f32 %v682
        %v691 = vcvt.s32.f32 %v683
        %v692 = vcvt.s32.f32 %v684
        %v693 = vcvt.s32.f32 %v685
        %v694 = vcvt.s32.f32 %v686
        %vm695 = vcmask 64512
        %v697 = vsel %vm695, %v600, 0
        %699 = vmatprep.subr.mxu0 0.0
        %700 = vmatpush1.msra.mxu0 0.0
        %701 = vmatprep.subr.mxu0 0.0
        %702 = vmatpush1.msra.mxu0 0.0
        %703 = vmatprep.subr.mxu0 0.0
        %704 = vmatpush1.msra.mxu0 0.0
        %705 = vmatprep.subr.mxu0 0.0
        %706 = vmatpush1.msra.mxu0 0.0
        %707 = vmatprep.subr.mxu0 0.0
        %708 = vmatpush1.msra.mxu0 0.0
        %709 = vmatprep.subr.mxu0 0.0
        %710 = vmatpush1.msra.mxu0 0.0
        %711 = vmatprep.subr.mxu0 0.0
        %712 = vmatpush1.msra.mxu0 0.0
        %713 = vmatprep.subr.mxu0 0.0
        %714 = vmatpush1.msra.mxu0 0.0
        %715 = vmatprep.subr.mxu0 0.0
        %716 = vmatpush1.msra.mxu0 0.0
        %717 = vmatprep.subr.mxu0 0.0
        %718 = vmatpush1.msra.mxu0 0.0
        %719 = vmatprep.subr.mxu0 0.0
        %720 = vmatpush1.msra.mxu0 0.0
        %721 = vmatprep.subr.mxu0 0.0
        %722 = vmatpush1.msra.mxu0 0.0
        %723 = vmatprep.subr.mxu0 0.0
        %724 = vmatpush1.msra.mxu0 0.0
        %725 = vmatprep.subr.mxu0 0.0
        %726 = vmatpush1.msra.mxu0 0.0
        %727 = vmatprep.subr.mxu0 0.0
        %728 = vmatpush1.msra.mxu0 0.0
        %729 = vmatprep.subr.mxu0 0.0
        %730 = vmatpush1.msra.mxu0 %v337
        %731 = vmatprep.subr.mxu0 0.0
        %732 = vmatpush2.msra.mxu0 0.0
        %733 = vmatprep.subr.mxu0 0.0
        %734 = vmatpush2.msra.mxu0 0.0
        %735 = vmatprep.subr.mxu0 0.0
        %736 = vmatpush2.msra.mxu0 0.0
        %737 = vmatprep.subr.mxu0 0.0
        %738 = vmatpush2.msra.mxu0 0.0
        %739 = vmatprep.subr.mxu0 0.0
        %740 = vmatpush2.msra.mxu0 0.0
        %741 = vmatprep.subr.mxu0 0.0
        %742 = vmatpush2.msra.mxu0 0.0
        %743 = vmatprep.subr.mxu0 0.0
        %744 = vmatpush2.msra.mxu0 0.0
        %745 = vmatprep.subr.mxu0 0.0
        %746 = vmatpush2.msra.mxu0 0.0
        %747 = vmatprep.subr.mxu0 0.0
        %748 = vmatpush2.msra.mxu0 0.0
        %749 = vmatprep.subr.mxu0 0.0
        %750 = vmatpush2.msra.mxu0 0.0
        %751 = vmatprep.subr.mxu0 0.0
        %752 = vmatpush2.msra.mxu0 0.0
        %753 = vmatprep.subr.mxu0 0.0
        %754 = vmatpush2.msra.mxu0 0.0
        %755 = vmatprep.subr.mxu0 0.0
        %756 = vmatpush2.msra.mxu0 0.0
        %757 = vmatprep.subr.mxu0 0.0
        %758 = vmatpush2.msra.mxu0 0.0
        %759 = vmatprep.subr.mxu0 0.0
        %760 = vmatpush2.msra.mxu0 0.0
        %761 = vmatprep.subr.mxu0 0.0
        %762 = vmatpush2.msra.mxu0 0.0
        %763 = vmatprep.mubr.f32.mxu0 0.0
        %764 = vmatmul.mubr.f32.gmra.mxu0 %v697
        %v765 = vpop.f32.mrf.mxu0
        %v766 = vadd.f32 0.0, %v765
        %v767 = vpop.f32.mrf.mxu0
        %768 = vdwg.mxu0
        %v770 = vcombine.high %v766, %v766
        %v772 = vunpack.c.l.s4 1966171168
        %v773 = vunpack.c.0.s8 %v772
        %v774 = vlaneseq
        %v775 = vshrl.u32 %v774, 7
        %v776 = vsub.s32 %v773, %v775
        %v777 = vrot.slane %v766, %v776
        %v779 = vunpack.c.l.s4 1966171168
        %v780 = vunpack.c.0.s8 %v779
        %v781 = vlaneseq
        %v782 = vshrl.u32 %v781, 7
        %v783 = vsub.s32 %v780, %v782
        %v784 = vrot.slane %v770, %v783
        %v785 = vcombine.high %v777, %v777
        %v786 = vcombine.high %v784, %v784
        %v788 = vunpack.c.l.s4 1966171168
        %v789 = vunpack.c.0.s8 %v788
        %v790 = vlaneseq
        %v791 = vshrl.u32 %v790, 7
        %v792 = vsub.s32 %v789, %v791
        %v793 = vrot.slane %v777, %v792
        %v795 = vunpack.c.l.s4 1966171168
        %v796 = vunpack.c.0.s8 %v795
        %v797 = vlaneseq
        %v798 = vshrl.u32 %v797, 7
        %v799 = vsub.s32 %v796, %v798
        %v800 = vrot.slane %v784, %v799
        %v802 = vunpack.c.l.s4 1966171168
        %v803 = vunpack.c.0.s8 %v802
        %v804 = vlaneseq
        %v805 = vshrl.u32 %v804, 7
        %v806 = vsub.s32 %v803, %v805
        %v807 = vrot.slane %v785, %v806
        %v809 = vunpack.c.l.s4 1966171168
        %v810 = vunpack.c.0.s8 %v809
        %v811 = vlaneseq
        %v812 = vshrl.u32 %v811, 7
        %v813 = vsub.s32 %v810, %v812
        %v814 = vrot.slane %v786, %v813
        %v815 = vcombine.high %v793, %v793
        %v816 = vcombine.high %v800, %v800
        %v817 = vcombine.high %v807, %v807
        %v818 = vcombine.high %v814, %v814
        %v819 = vlaneseq
        %v820 = vshrl.u32 %v819, 7
        %v821 = vsub.s32 0, %v820
        %v822 = vrot.slane %v793, %v821
        %v823 = vlaneseq
        %v824 = vshrl.u32 %v823, 7
        %v825 = vsub.s32 0, %v824
        %v826 = vrot.slane %v807, %v825
        %v827 = vlaneseq
        %v828 = vshrl.u32 %v827, 7
        %v829 = vsub.s32 0, %v828
        %v830 = vrot.slane %v815, %v829
        %v831 = vlaneseq
        %v832 = vshrl.u32 %v831, 7
        %v833 = vsub.s32 0, %v832
        %v834 = vrot.slane %v817, %v833
        %v835 = vlaneseq
        %v836 = vshrl.u32 %v835, 7
        %v837 = vsub.s32 0, %v836
        %v838 = vrot.slane %v800, %v837
        %v839 = vlaneseq
        %v840 = vshrl.u32 %v839, 7
        %v841 = vsub.s32 0, %v840
        %v842 = vrot.slane %v814, %v841
        %v843 = vlaneseq
        %v844 = vshrl.u32 %v843, 7
        %v845 = vsub.s32 0, %v844
        %v846 = vrot.slane %v816, %v845
        %v847 = vlaneseq
        %v848 = vshrl.u32 %v847, 7
        %v849 = vsub.s32 0, %v848
        %v850 = vrot.slane %v818, %v849
        %v859 = vmul.f32 %v822, %v687
        %v860 = vmul.f32 %v826, %v688
        %v861 = vmul.f32 %v830, %v689
        %v862 = vmul.f32 %v834, %v690
        %v863 = vmul.f32 %v838, %v691
        %v864 = vmul.f32 %v842, %v692
        %v865 = vmul.f32 %v846, %v693
        %v866 = vmul.f32 %v850, %v694
        %vm867 = vcmask 138240
        %v868 = vsel %vm867, %v859, 0.0
        %869 = vadd.xlane.f32.xlu0 %v868
        %v870 = vpop.xlane.xlu0 %869
        %v871 = vsel %vm867, %v860, 0.0
        %872 = vadd.xlane.f32.xlu0 %v871
        %v873 = vpop.xlane.xlu0 %872
        %v874 = vsel %vm867, %v861, 0.0
        %875 = vadd.xlane.f32.xlu0 %v874
        %v876 = vpop.xlane.xlu0 %875
        %v877 = vsel %vm867, %v862, 0.0
        %878 = vadd.xlane.f32.xlu0 %v877
        %v879 = vpop.xlane.xlu0 %878
        %v880 = vsel %vm867, %v863, 0.0
        %881 = vadd.xlane.f32.xlu0 %v880
        %v882 = vpop.xlane.xlu0 %881
        %v883 = vsel %vm867, %v864, 0.0
        %884 = vadd.xlane.f32.xlu0 %v883
        %v885 = vpop.xlane.xlu0 %884
        %v886 = vsel %vm867, %v865, 0.0
        %887 = vadd.xlane.f32.xlu0 %v886
        %v888 = vpop.xlane.xlu0 %887
        %v889 = vsel %vm867, %v866, 0.0
        %890 = vadd.xlane.f32.xlu0 %v889
        %v891 = vpop.xlane.xlu0 %890
        %892 = vrot.lane.b32.xlu0 %v600, 96
        %v893 = vpop.permute.xlu0 %892
        %v902 = vlaneseq
        %v903 = vshrl.u32 %v902, 7
        %v904 = vsub.s32 %v608, %v903
        %v905 = vrot.slane %v870, %v904
        %v906 = vlaneseq
        %v907 = vshrl.u32 %v906, 7
        %v908 = vsub.s32 %v608, %v907
        %v909 = vrot.slane %v873, %v908
        %v910 = vlaneseq
        %v911 = vshrl.u32 %v910, 7
        %v912 = vsub.s32 %v608, %v911
        %v913 = vrot.slane %v876, %v912
        %v914 = vlaneseq
        %v915 = vshrl.u32 %v914, 7
        %v916 = vsub.s32 %v608, %v915
        %v917 = vrot.slane %v879, %v916
        %v918 = vlaneseq
        %v919 = vshrl.u32 %v918, 7
        %v920 = vsub.s32 %v608, %v919
        %v921 = vrot.slane %v882, %v920
        %v922 = vlaneseq
        %v923 = vshrl.u32 %v922, 7
        %v924 = vsub.s32 %v608, %v923
        %v925 = vrot.slane %v885, %v924
        %v926 = vlaneseq
        %v927 = vshrl.u32 %v926, 7
        %v928 = vsub.s32 %v608, %v927
        %v929 = vrot.slane %v888, %v928
        %v930 = vlaneseq
        %v931 = vshrl.u32 %v930, 7
        %v932 = vsub.s32 %v608, %v931
        %v933 = vrot.slane %v891, %v932
        %vm934 = vcmask 1041409
        %v935 = vsel %vm934, %v909, %v905
        %vm936 = vcmask 1042434
        %v937 = vsel %vm936, %v913, %v935
        %vm938 = vcmask 1043459
        %v939 = vsel %vm938, %v917, %v937
        %vm940 = vcmask 1044484
        %v941 = vsel %vm940, %v921, %v939
        %vm942 = vcmask 1045509
        %v943 = vsel %vm942, %v925, %v941
        %vm944 = vcmask 1046534
        %v945 = vsel %vm944, %v929, %v943
        %vm946 = vcmask 1047559
        %v947 = vsel %vm946, %v933, %v945
        %v949 = vsel %vm695, %v893, 0
        %951 = vmatprep.subr.mxu0 0.0
        %952 = vmatpush1.xpose.msra.mxu0 0.0
        %953 = vmatprep.subr.mxu0 0.0
        %954 = vmatpush1.xpose.msra.mxu0 0.0
        %955 = vmatprep.subr.mxu0 0.0
        %956 = vmatpush1.xpose.msra.mxu0 0.0
        %957 = vmatprep.subr.mxu0 0.0
        %958 = vmatpush1.xpose.msra.mxu0 0.0
        %959 = vmatprep.subr.mxu0 0.0
        %960 = vmatpush1.xpose.msra.mxu0 0.0
        %961 = vmatprep.subr.mxu0 0.0
        %962 = vmatpush1.xpose.msra.mxu0 0.0
        %963 = vmatprep.subr.mxu0 0.0
        %964 = vmatpush1.xpose.msra.mxu0 0.0
        %965 = vmatprep.subr.mxu0 0.0
        %966 = vmatpush1.xpose.msra.mxu0 0.0
        %967 = vmatprep.subr.mxu0 0.0
        %968 = vmatpush1.xpose.msra.mxu0 0.0
        %969 = vmatprep.subr.mxu0 0.0
        %970 = vmatpush1.xpose.msra.mxu0 0.0
        %971 = vmatprep.subr.mxu0 0.0
        %972 = vmatpush1.xpose.msra.mxu0 0.0
        %973 = vmatprep.subr.mxu0 0.0
        %974 = vmatpush1.xpose.msra.mxu0 0.0
        %975 = vmatprep.subr.mxu0 0.0
        %976 = vmatpush1.xpose.msra.mxu0 0.0
        %977 = vmatprep.subr.mxu0 0.0
        %978 = vmatpush1.xpose.msra.mxu0 0.0
        %979 = vmatprep.subr.mxu0 0.0
        %980 = vmatpush1.xpose.msra.mxu0 0.0
        %981 = vmatprep.subr.mxu0 0.0
        %982 = vmatpush1.xpose.msra.mxu0 %v949
        %983 = vmatprep.subr.mxu0 0.0
        %984 = vmatpush2.xpose.msra.mxu0 0.0
        %985 = vmatprep.subr.mxu0 0.0
        %986 = vmatpush2.xpose.msra.mxu0 0.0
        %987 = vmatprep.subr.mxu0 0.0
        %988 = vmatpush2.xpose.msra.mxu0 0.0
        %989 = vmatprep.subr.mxu0 0.0
        %990 = vmatpush2.xpose.msra.mxu0 0.0
        %991 = vmatprep.subr.mxu0 0.0
        %992 = vmatpush2.xpose.msra.mxu0 0.0
        %993 = vmatprep.subr.mxu0 0.0
        %994 = vmatpush2.xpose.msra.mxu0 0.0
        %995 = vmatprep.subr.mxu0 0.0
        %996 = vmatpush2.xpose.msra.mxu0 0.0
        %997 = vmatprep.subr.mxu0 0.0
        %998 = vmatpush2.xpose.msra.mxu0 0.0
        %999 = vmatprep.subr.mxu0 0.0
        %1000 = vmatpush2.xpose.msra.mxu0 0.0
        %1001 = vmatprep.subr.mxu0 0.0
        %1002 = vmatpush2.xpose.msra.mxu0 0.0
        %1003 = vmatprep.subr.mxu0 0.0
        %1004 = vmatpush2.xpose.msra.mxu0 0.0
        %1005 = vmatprep.subr.mxu0 0.0
        %1006 = vmatpush2.xpose.msra.mxu0 0.0
        %1007 = vmatprep.subr.mxu0 0.0
        %1008 = vmatpush2.xpose.msra.mxu0 0.0
        %1009 = vmatprep.subr.mxu0 0.0
        %1010 = vmatpush2.xpose.msra.mxu0 0.0
        %1011 = vmatprep.subr.mxu0 0.0
        %1012 = vmatpush2.xpose.msra.mxu0 0.0
        %1013 = vmatprep.subr.mxu0 0.0
        %1014 = vmatpush2.xpose.msra.mxu0 0.0
        %1015 = vmatprep.mubr.f32.mxu0 0.0
        %1016 = vmatmul.mubr.f32.gmra.mxu0 %v697
        %v1017 = vpop.f32.mrf.mxu0
        %v1018 = vadd.f32 %v947, %v1017
        %v1019 = vpop.f32.mrf.mxu0
        %1020 = vdwg.mxu0
        %v1021 = vmul.f32 %v1018, 0.35355338
        %v1022 = vsel %vm695, %v1021, -inf
        %1023 = vmax.xlane.f32.xlu0 %v1022
        %v1024 = vpop.xlane.xlu0 %1023
        %v1025 = vsub.f32 %v1021, %v1024
        %v1026 = vmul.f32 %v1025, 1.442695
        %v1027 = vpow.pop %v1026
        %v1028 = vsel %vm695, %v1027, 0.0
        %1029 = vadd.xlane.f32.xlu0 %v1028
        %v1030 = vpop.xlane.xlu0 %1029
        %v1031 = vrcp.pop %v1030
        %v1032 = vmul.f32 %v1027, %v1031
        %1033 = vrot.lane.b32.xlu0 %v600, 64
        %v1034 = vpop.permute.xlu0 %1033
        %v1037 = vsel %vm695, %v1032, 0
        %1039 = vmatprep.subr.mxu0 0.0
        %1040 = vmatpush1.msra.mxu0 0.0
        %1041 = vmatprep.subr.mxu0 0.0
        %1042 = vmatpush1.msra.mxu0 0.0
        %1043 = vmatprep.subr.mxu0 0.0
        %1044 = vmatpush1.msra.mxu0 0.0
        %1045 = vmatprep.subr.mxu0 0.0
        %1046 = vmatpush1.msra.mxu0 0.0
        %1047 = vmatprep.subr.mxu0 0.0
        %1048 = vmatpush1.msra.mxu0 0.0
        %1049 = vmatprep.subr.mxu0 0.0
        %1050 = vmatpush1.msra.mxu0 0.0
        %1051 = vmatprep.subr.mxu0 0.0
        %1052 = vmatpush1.msra.mxu0 0.0
        %1053 = vmatprep.subr.mxu0 0.0
        %1054 = vmatpush1.msra.mxu0 0.0
        %1055 = vmatprep.subr.mxu0 0.0
        %1056 = vmatpush1.msra.mxu0 0.0
        %1057 = vmatprep.subr.mxu0 0.0
        %1058 = vmatpush1.msra.mxu0 0.0
        %1059 = vmatprep.subr.mxu0 0.0
        %1060 = vmatpush1.msra.mxu0 0.0
        %1061 = vmatprep.subr.mxu0 0.0
        %1062 = vmatpush1.msra.mxu0 0.0
        %1063 = vmatprep.subr.mxu0 0.0
        %1064 = vmatpush1.msra.mxu0 0.0
        %1065 = vmatprep.subr.mxu0 0.0
        %1066 = vmatpush1.msra.mxu0 0.0
        %1067 = vmatprep.subr.mxu0 0.0
        %1068 = vmatpush1.msra.mxu0 0.0
        %1069 = vmatprep.subr.mxu0 0.0
        %1070 = vmatpush1.msra.mxu0 %v1034
        %1071 = vmatprep.subr.mxu0 0.0
        %1072 = vmatpush2.msra.mxu0 0.0
        %1073 = vmatprep.subr.mxu0 0.0
        %1074 = vmatpush2.msra.mxu0 0.0
        %1075 = vmatprep.subr.mxu0 0.0
        %1076 = vmatpush2.msra.mxu0 0.0
        %1077 = vmatprep.subr.mxu0 0.0
        %1078 = vmatpush2.msra.mxu0 0.0
        %1079 = vmatprep.subr.mxu0 0.0
        %1080 = vmatpush2.msra.mxu0 0.0
        %1081 = vmatprep.subr.mxu0 0.0
        %1082 = vmatpush2.msra.mxu0 0.0
        %1083 = vmatprep.subr.mxu0 0.0
        %1084 = vmatpush2.msra.mxu0 0.0
        %1085 = vmatprep.subr.mxu0 0.0
        %1086 = vmatpush2.msra.mxu0 0.0
        %1087 = vmatprep.subr.mxu0 0.0
        %1088 = vmatpush2.msra.mxu0 0.0
        %1089 = vmatprep.subr.mxu0 0.0
        %1090 = vmatpush2.msra.mxu0 0.0
        %1091 = vmatprep.subr.mxu0 0.0
        %1092 = vmatpush2.msra.mxu0 0.0
        %1093 = vmatprep.subr.mxu0 0.0
        %1094 = vmatpush2.msra.mxu0 0.0
        %1095 = vmatprep.subr.mxu0 0.0
        %1096 = vmatpush2.msra.mxu0 0.0
        %1097 = vmatprep.subr.mxu0 0.0
        %1098 = vmatpush2.msra.mxu0 0.0
        %1099 = vmatprep.subr.mxu0 0.0
        %1100 = vmatpush2.msra.mxu0 0.0
        %1101 = vmatprep.subr.mxu0 0.0
        %1102 = vmatpush2.msra.mxu0 0.0
        %1103 = vmatprep.mubr.f32.mxu0 0.0
        %1104 = vmatmul.mubr.f32.gmra.mxu0 %v1037
        %v1105 = vpop.f32.mrf.mxu0
        %v1106 = vadd.f32 0.0, %v1105
        %v1107 = vpop.f32.mrf.mxu0
        %1108 = vdwg.mxu0
        %1109 = vrot.lane.b32.xlu0 %v600, 120
        %v1110 = vpop.permute.xlu0 %1109
        %v1111 = vsel %vm695, %v1110, 0
        %1113 = vmatprep.subr.mxu0 0.0
        %1114 = vmatpush1.msra.mxu0 0.0
        %1115 = vmatprep.subr.mxu0 0.0
        %1116 = vmatpush1.msra.mxu0 0.0
        %1117 = vmatprep.subr.mxu0 0.0
        %1118 = vmatpush1.msra.mxu0 0.0
        %1119 = vmatprep.subr.mxu0 0.0
        %1120 = vmatpush1.msra.mxu0 0.0
        %1121 = vmatprep.subr.mxu0 0.0
        %1122 = vmatpush1.msra.mxu0 0.0
        %1123 = vmatprep.subr.mxu0 0.0
        %1124 = vmatpush1.msra.mxu0 0.0
        %1125 = vmatprep.subr.mxu0 0.0
        %1126 = vmatpush1.msra.mxu0 0.0
        %1127 = vmatprep.subr.mxu0 0.0
        %1128 = vmatpush1.msra.mxu0 0.0
        %1129 = vmatprep.subr.mxu0 0.0
        %1130 = vmatpush1.msra.mxu0 0.0
        %1131 = vmatprep.subr.mxu0 0.0
        %1132 = vmatpush1.msra.mxu0 0.0
        %1133 = vmatprep.subr.mxu0 0.0
        %1134 = vmatpush1.msra.mxu0 0.0
        %1135 = vmatprep.subr.mxu0 0.0
        %1136 = vmatpush1.msra.mxu0 0.0
        %1137 = vmatprep.subr.mxu0 0.0
        %1138 = vmatpush1.msra.mxu0 0.0
        %1139 = vmatprep.subr.mxu0 0.0
        %1140 = vmatpush1.msra.mxu0 0.0
        %1141 = vmatprep.subr.mxu0 0.0
        %1142 = vmatpush1.msra.mxu0 0.0
        %1143 = vmatprep.subr.mxu0 0.0
        %1144 = vmatpush1.msra.mxu0 %v337
        %1145 = vmatprep.subr.mxu0 0.0
        %1146 = vmatpush2.msra.mxu0 0.0
        %1147 = vmatprep.subr.mxu0 0.0
        %1148 = vmatpush2.msra.mxu0 0.0
        %1149 = vmatprep.subr.mxu0 0.0
        %1150 = vmatpush2.msra.mxu0 0.0
        %1151 = vmatprep.subr.mxu0 0.0
        %1152 = vmatpush2.msra.mxu0 0.0
        %1153 = vmatprep.subr.mxu0 0.0
        %1154 = vmatpush2.msra.mxu0 0.0
        %1155 = vmatprep.subr.mxu0 0.0
        %1156 = vmatpush2.msra.mxu0 0.0
        %1157 = vmatprep.subr.mxu0 0.0
        %1158 = vmatpush2.msra.mxu0 0.0
        %1159 = vmatprep.subr.mxu0 0.0
        %1160 = vmatpush2.msra.mxu0 0.0
        %1161 = vmatprep.subr.mxu0 0.0
        %1162 = vmatpush2.msra.mxu0 0.0
        %1163 = vmatprep.subr.mxu0 0.0
        %1164 = vmatpush2.msra.mxu0 0.0
        %1165 = vmatprep.subr.mxu0 0.0
        %1166 = vmatpush2.msra.mxu0 0.0
        %1167 = vmatprep.subr.mxu0 0.0
        %1168 = vmatpush2.msra.mxu0 0.0
        %1169 = vmatprep.subr.mxu0 0.0
        %1170 = vmatpush2.msra.mxu0 0.0
        %1171 = vmatprep.subr.mxu0 0.0
        %1172 = vmatpush2.msra.mxu0 0.0
        %1173 = vmatprep.subr.mxu0 0.0
        %1174 = vmatpush2.msra.mxu0 0.0
        %1175 = vmatprep.subr.mxu0 0.0
        %1176 = vmatpush2.msra.mxu0 0.0
        %1177 = vmatprep.mubr.f32.mxu0 0.0
        %1178 = vmatmul.mubr.f32.gmra.mxu0 %v1111
        %v1179 = vpop.f32.mrf.mxu0
        %v1180 = vadd.f32 0.0, %v1179
        %v1181 = vpop.f32.mrf.mxu0
        %1182 = vdwg.mxu0
        %v1184 = vcombine.high %v1180, %v1180
        %v1186 = vunpack.c.l.s4 1966171168
        %v1187 = vunpack.c.0.s8 %v1186
        %v1188 = vlaneseq
        %v1189 = vshrl.u32 %v1188, 7
        %v1190 = vsub.s32 %v1187, %v1189
        %v1191 = vrot.slane %v1180, %v1190
        %v1193 = vunpack.c.l.s4 1966171168
        %v1194 = vunpack.c.0.s8 %v1193
        %v1195 = vlaneseq
        %v1196 = vshrl.u32 %v1195, 7
        %v1197 = vsub.s32 %v1194, %v1196
        %v1198 = vrot.slane %v1184, %v1197
        %v1199 = vcombine.high %v1191, %v1191
        %v1200 = vcombine.high %v1198, %v1198
        %v1202 = vunpack.c.l.s4 1966171168
        %v1203 = vunpack.c.0.s8 %v1202
        %v1204 = vlaneseq
        %v1205 = vshrl.u32 %v1204, 7
        %v1206 = vsub.s32 %v1203, %v1205
        %v1207 = vrot.slane %v1191, %v1206
        %v1209 = vunpack.c.l.s4 1966171168
        %v1210 = vunpack.c.0.s8 %v1209
        %v1211 = vlaneseq
        %v1212 = vshrl.u32 %v1211, 7
        %v1213 = vsub.s32 %v1210, %v1212
        %v1214 = vrot.slane %v1198, %v1213
        %v1216 = vunpack.c.l.s4 1966171168
        %v1217 = vunpack.c.0.s8 %v1216
        %v1218 = vlaneseq
        %v1219 = vshrl.u32 %v1218, 7
        %v1220 = vsub.s32 %v1217, %v1219
        %v1221 = vrot.slane %v1199, %v1220
        %v1223 = vunpack.c.l.s4 1966171168
        %v1224 = vunpack.c.0.s8 %v1223
        %v1225 = vlaneseq
        %v1226 = vshrl.u32 %v1225, 7
        %v1227 = vsub.s32 %v1224, %v1226
        %v1228 = vrot.slane %v1200, %v1227
        %v1229 = vcombine.high %v1207, %v1207
        %v1230 = vcombine.high %v1214, %v1214
        %v1231 = vcombine.high %v1221, %v1221
        %v1232 = vcombine.high %v1228, %v1228
        %v1233 = vlaneseq
        %v1234 = vshrl.u32 %v1233, 7
        %v1235 = vsub.s32 0, %v1234
        %v1236 = vrot.slane %v1207, %v1235
        %v1237 = vlaneseq
        %v1238 = vshrl.u32 %v1237, 7
        %v1239 = vsub.s32 0, %v1238
        %v1240 = vrot.slane %v1221, %v1239
        %v1241 = vlaneseq
        %v1242 = vshrl.u32 %v1241, 7
        %v1243 = vsub.s32 0, %v1242
        %v1244 = vrot.slane %v1229, %v1243
        %v1245 = vlaneseq
        %v1246 = vshrl.u32 %v1245, 7
        %v1247 = vsub.s32 0, %v1246
        %v1248 = vrot.slane %v1231, %v1247
        %v1249 = vlaneseq
        %v1250 = vshrl.u32 %v1249, 7
        %v1251 = vsub.s32 0, %v1250
        %v1252 = vrot.slane %v1214, %v1251
        %v1253 = vlaneseq
        %v1254 = vshrl.u32 %v1253, 7
        %v1255 = vsub.s32 0, %v1254
        %v1256 = vrot.slane %v1228, %v1255
        %v1257 = vlaneseq
        %v1258 = vshrl.u32 %v1257, 7
        %v1259 = vsub.s32 0, %v1258
        %v1260 = vrot.slane %v1230, %v1259
        %v1261 = vlaneseq
        %v1262 = vshrl.u32 %v1261, 7
        %v1263 = vsub.s32 0, %v1262
        %v1264 = vrot.slane %v1232, %v1263
        %v1273 = vmul.f32 %v1236, %v687
        %v1274 = vmul.f32 %v1240, %v688
        %v1275 = vmul.f32 %v1244, %v689
        %v1276 = vmul.f32 %v1248, %v690
        %v1277 = vmul.f32 %v1252, %v691
        %v1278 = vmul.f32 %v1256, %v692
        %v1279 = vmul.f32 %v1260, %v693
        %v1280 = vmul.f32 %v1264, %v694
        %v1281 = vsel %vm867, %v1273, 0.0
        %1282 = vadd.xlane.f32.xlu0 %v1281
        %v1283 = vpop.xlane.xlu0 %1282
        %v1284 = vsel %vm867, %v1274, 0.0
        %1285 = vadd.xlane.f32.xlu0 %v1284
        %v1286 = vpop.xlane.xlu0 %1285
        %v1287 = vsel %vm867, %v1275, 0.0
        %1288 = vadd.xlane.f32.xlu0 %v1287
        %v1289 = vpop.xlane.xlu0 %1288
        %v1290 = vsel %vm867, %v1276, 0.0
        %1291 = vadd.xlane.f32.xlu0 %v1290
        %v1292 = vpop.xlane.xlu0 %1291
        %v1293 = vsel %vm867, %v1277, 0.0
        %1294 = vadd.xlane.f32.xlu0 %v1293
        %v1295 = vpop.xlane.xlu0 %1294
        %v1296 = vsel %vm867, %v1278, 0.0
        %1297 = vadd.xlane.f32.xlu0 %v1296
        %v1298 = vpop.xlane.xlu0 %1297
        %v1299 = vsel %vm867, %v1279, 0.0
        %1300 = vadd.xlane.f32.xlu0 %v1299
        %v1301 = vpop.xlane.xlu0 %1300
        %v1302 = vsel %vm867, %v1280, 0.0
        %1303 = vadd.xlane.f32.xlu0 %v1302
        %v1304 = vpop.xlane.xlu0 %1303
        %1305 = vrot.lane.b32.xlu0 %v600, 88
        %v1306 = vpop.permute.xlu0 %1305
        %v1315 = vlaneseq
        %v1316 = vshrl.u32 %v1315, 7
        %v1317 = vsub.s32 %v608, %v1316
        %v1318 = vrot.slane %v1283, %v1317
        %v1319 = vlaneseq
        %v1320 = vshrl.u32 %v1319, 7
        %v1321 = vsub.s32 %v608, %v1320
        %v1322 = vrot.slane %v1286, %v1321
        %v1323 = vlaneseq
        %v1324 = vshrl.u32 %v1323, 7
        %v1325 = vsub.s32 %v608, %v1324
        %v1326 = vrot.slane %v1289, %v1325
        %v1327 = vlaneseq
        %v1328 = vshrl.u32 %v1327, 7
        %v1329 = vsub.s32 %v608, %v1328
        %v1330 = vrot.slane %v1292, %v1329
        %v1331 = vlaneseq
        %v1332 = vshrl.u32 %v1331, 7
        %v1333 = vsub.s32 %v608, %v1332
        %v1334 = vrot.slane %v1295, %v1333
        %v1335 = vlaneseq
        %v1336 = vshrl.u32 %v1335, 7
        %v1337 = vsub.s32 %v608, %v1336
        %v1338 = vrot.slane %v1298, %v1337
        %v1339 = vlaneseq
        %v1340 = vshrl.u32 %v1339, 7
        %v1341 = vsub.s32 %v608, %v1340
        %v1342 = vrot.slane %v1301, %v1341
        %v1343 = vlaneseq
        %v1344 = vshrl.u32 %v1343, 7
        %v1345 = vsub.s32 %v608, %v1344
        %v1346 = vrot.slane %v1304, %v1345
        %v1347 = vsel %vm934, %v1322, %v1318
        %v1348 = vsel %vm936, %v1326, %v1347
        %v1349 = vsel %vm938, %v1330, %v1348
        %v1350 = vsel %vm940, %v1334, %v1349
        %v1351 = vsel %vm942, %v1338, %v1350
        %v1352 = vsel %vm944, %v1342, %v1351
        %v1353 = vsel %vm946, %v1346, %v1352
        %v1355 = vsel %vm695, %v1306, 0
        %1357 = vmatprep.subr.mxu0 0.0
        %1358 = vmatpush1.xpose.msra.mxu0 0.0
        %1359 = vmatprep.subr.mxu0 0.0
        %1360 = vmatpush1.xpose.msra.mxu0 0.0
        %1361 = vmatprep.subr.mxu0 0.0
        %1362 = vmatpush1.xpose.msra.mxu0 0.0
        %1363 = vmatprep.subr.mxu0 0.0
        %1364 = vmatpush1.xpose.msra.mxu0 0.0
        %1365 = vmatprep.subr.mxu0 0.0
        %1366 = vmatpush1.xpose.msra.mxu0 0.0
        %1367 = vmatprep.subr.mxu0 0.0
        %1368 = vmatpush1.xpose.msra.mxu0 0.0
        %1369 = vmatprep.subr.mxu0 0.0
        %1370 = vmatpush1.xpose.msra.mxu0 0.0
        %1371 = vmatprep.subr.mxu0 0.0
        %1372 = vmatpush1.xpose.msra.mxu0 0.0
        %1373 = vmatprep.subr.mxu0 0.0
        %1374 = vmatpush1.xpose.msra.mxu0 0.0
        %1375 = vmatprep.subr.mxu0 0.0
        %1376 = vmatpush1.xpose.msra.mxu0 0.0
        %1377 = vmatprep.subr.mxu0 0.0
        %1378 = vmatpush1.xpose.msra.mxu0 0.0
        %1379 = vmatprep.subr.mxu0 0.0
        %1380 = vmatpush1.xpose.msra.mxu0 0.0
        %1381 = vmatprep.subr.mxu0 0.0
        %1382 = vmatpush1.xpose.msra.mxu0 0.0
        %1383 = vmatprep.subr.mxu0 0.0
        %1384 = vmatpush1.xpose.msra.mxu0 0.0
        %1385 = vmatprep.subr.mxu0 0.0
        %1386 = vmatpush1.xpose.msra.mxu0 0.0
        %1387 = vmatprep.subr.mxu0 0.0
        %1388 = vmatpush1.xpose.msra.mxu0 %v1355
        %1389 = vmatprep.subr.mxu0 0.0
        %1390 = vmatpush2.xpose.msra.mxu0 0.0
        %1391 = vmatprep.subr.mxu0 0.0
        %1392 = vmatpush2.xpose.msra.mxu0 0.0
        %1393 = vmatprep.subr.mxu0 0.0
        %1394 = vmatpush2.xpose.msra.mxu0 0.0
        %1395 = vmatprep.subr.mxu0 0.0
        %1396 = vmatpush2.xpose.msra.mxu0 0.0
        %1397 = vmatprep.subr.mxu0 0.0
        %1398 = vmatpush2.xpose.msra.mxu0 0.0
        %1399 = vmatprep.subr.mxu0 0.0
        %1400 = vmatpush2.xpose.msra.mxu0 0.0
        %1401 = vmatprep.subr.mxu0 0.0
        %1402 = vmatpush2.xpose.msra.mxu0 0.0
        %1403 = vmatprep.subr.mxu0 0.0
        %1404 = vmatpush2.xpose.msra.mxu0 0.0
        %1405 = vmatprep.subr.mxu0 0.0
        %1406 = vmatpush2.xpose.msra.mxu0 0.0
        %1407 = vmatprep.subr.mxu0 0.0
        %1408 = vmatpush2.xpose.msra.mxu0 0.0
        %1409 = vmatprep.subr.mxu0 0.0
        %1410 = vmatpush2.xpose.msra.mxu0 0.0
        %1411 = vmatprep.subr.mxu0 0.0
        %1412 = vmatpush2.xpose.msra.mxu0 0.0
        %1413 = vmatprep.subr.mxu0 0.0
        %1414 = vmatpush2.xpose.msra.mxu0 0.0
        %1415 = vmatprep.subr.mxu0 0.0
        %1416 = vmatpush2.xpose.msra.mxu0 0.0
        %1417 = vmatprep.subr.mxu0 0.0
        %1418 = vmatpush2.xpose.msra.mxu0 0.0
        %1419 = vmatprep.subr.mxu0 0.0
        %1420 = vmatpush2.xpose.msra.mxu0 0.0
        %1421 = vmatprep.mubr.f32.mxu0 0.0
        %1422 = vmatmul.mubr.f32.gmra.mxu0 %v1111
        %v1423 = vpop.f32.mrf.mxu0
        %v1424 = vadd.f32 %v1353, %v1423
        %v1425 = vpop.f32.mrf.mxu0
        %1426 = vdwg.mxu0
        %v1427 = vmul.f32 %v1424, 0.35355338
        %v1428 = vsel %vm695, %v1427, -inf
        %1429 = vmax.xlane.f32.xlu0 %v1428
        %v1430 = vpop.xlane.xlu0 %1429
        %v1431 = vsub.f32 %v1427, %v1430
        %v1432 = vmul.f32 %v1431, 1.442695
        %v1433 = vpow.pop %v1432
        %v1434 = vsel %vm695, %v1433, 0.0
        %1435 = vadd.xlane.f32.xlu0 %v1434
        %v1436 = vpop.xlane.xlu0 %1435
        %v1437 = vrcp.pop %v1436
        %v1438 = vmul.f32 %v1433, %v1437
        %1439 = vrot.lane.b32.xlu0 %v600, 56
        %v1440 = vpop.permute.xlu0 %1439
        %v1443 = vsel %vm695, %v1438, 0
        %1445 = vmatprep.subr.mxu0 0.0
        %1446 = vmatpush1.msra.mxu0 0.0
        %1447 = vmatprep.subr.mxu0 0.0
        %1448 = vmatpush1.msra.mxu0 0.0
        %1449 = vmatprep.subr.mxu0 0.0
        %1450 = vmatpush1.msra.mxu0 0.0
        %1451 = vmatprep.subr.mxu0 0.0
        %1452 = vmatpush1.msra.mxu0 0.0
        %1453 = vmatprep.subr.mxu0 0.0
        %1454 = vmatpush1.msra.mxu0 0.0
        %1455 = vmatprep.subr.mxu0 0.0
        %1456 = vmatpush1.msra.mxu0 0.0
        %1457 = vmatprep.subr.mxu0 0.0
        %1458 = vmatpush1.msra.mxu0 0.0
        %1459 = vmatprep.subr.mxu0 0.0
        %1460 = vmatpush1.msra.mxu0 0.0
        %1461 = vmatprep.subr.mxu0 0.0
        %1462 = vmatpush1.msra.mxu0 0.0
        %1463 = vmatprep.subr.mxu0 0.0
        %1464 = vmatpush1.msra.mxu0 0.0
        %1465 = vmatprep.subr.mxu0 0.0
        %1466 = vmatpush1.msra.mxu0 0.0
        %1467 = vmatprep.subr.mxu0 0.0
        %1468 = vmatpush1.msra.mxu0 0.0
        %1469 = vmatprep.subr.mxu0 0.0
        %1470 = vmatpush1.msra.mxu0 0.0
        %1471 = vmatprep.subr.mxu0 0.0
        %1472 = vmatpush1.msra.mxu0 0.0
        %1473 = vmatprep.subr.mxu0 0.0
        %1474 = vmatpush1.msra.mxu0 0.0
        %1475 = vmatprep.subr.mxu0 0.0
        %1476 = vmatpush1.msra.mxu0 %v1440
        %1477 = vmatprep.subr.mxu0 0.0
        %1478 = vmatpush2.msra.mxu0 0.0
        %1479 = vmatprep.subr.mxu0 0.0
        %1480 = vmatpush2.msra.mxu0 0.0
        %1481 = vmatprep.subr.mxu0 0.0
        %1482 = vmatpush2.msra.mxu0 0.0
        %1483 = vmatprep.subr.mxu0 0.0
        %1484 = vmatpush2.msra.mxu0 0.0
        %1485 = vmatprep.subr.mxu0 0.0
        %1486 = vmatpush2.msra.mxu0 0.0
        %1487 = vmatprep.subr.mxu0 0.0
        %1488 = vmatpush2.msra.mxu0 0.0
        %1489 = vmatprep.subr.mxu0 0.0
        %1490 = vmatpush2.msra.mxu0 0.0
        %1491 = vmatprep.subr.mxu0 0.0
        %1492 = vmatpush2.msra.mxu0 0.0
        %1493 = vmatprep.subr.mxu0 0.0
        %1494 = vmatpush2.msra.mxu0 0.0
        %1495 = vmatprep.subr.mxu0 0.0
        %1496 = vmatpush2.msra.mxu0 0.0
        %1497 = vmatprep.subr.mxu0 0.0
        %1498 = vmatpush2.msra.mxu0 0.0
        %1499 = vmatprep.subr.mxu0 0.0
        %1500 = vmatpush2.msra.mxu0 0.0
        %1501 = vmatprep.subr.mxu0 0.0
        %1502 = vmatpush2.msra.mxu0 0.0
        %1503 = vmatprep.subr.mxu0 0.0
        %1504 = vmatpush2.msra.mxu0 0.0
        %1505 = vmatprep.subr.mxu0 0.0
        %1506 = vmatpush2.msra.mxu0 0.0
        %1507 = vmatprep.subr.mxu0 0.0
        %1508 = vmatpush2.msra.mxu0 0.0
        %1509 = vmatprep.mubr.f32.mxu0 0.0
        %1510 = vmatmul.mubr.f32.gmra.mxu0 %v1443
        %v1511 = vpop.f32.mrf.mxu0
        %v1512 = vadd.f32 0.0, %v1511
        %v1513 = vpop.f32.mrf.mxu0
        %1514 = vdwg.mxu0
        %1515 = vrot.lane.b32.xlu0 %v600, 112
        %v1516 = vpop.permute.xlu0 %1515
        %v1517 = vsel %vm695, %v1516, 0
        %1519 = vmatprep.subr.mxu0 0.0
        %1520 = vmatpush1.msra.mxu0 0.0
        %1521 = vmatprep.subr.mxu0 0.0
        %1522 = vmatpush1.msra.mxu0 0.0
        %1523 = vmatprep.subr.mxu0 0.0
        %1524 = vmatpush1.msra.mxu0 0.0
        %1525 = vmatprep.subr.mxu0 0.0
        %1526 = vmatpush1.msra.mxu0 0.0
        %1527 = vmatprep.subr.mxu0 0.0
        %1528 = vmatpush1.msra.mxu0 0.0
        %1529 = vmatprep.subr.mxu0 0.0
        %1530 = vmatpush1.msra.mxu0 0.0
        %1531 = vmatprep.subr.mxu0 0.0
        %1532 = vmatpush1.msra.mxu0 0.0
        %1533 = vmatprep.subr.mxu0 0.0
        %1534 = vmatpush1.msra.mxu0 0.0
        %1535 = vmatprep.subr.mxu0 0.0
        %1536 = vmatpush1.msra.mxu0 0.0
        %1537 = vmatprep.subr.mxu0 0.0
        %1538 = vmatpush1.msra.mxu0 0.0
        %1539 = vmatprep.subr.mxu0 0.0
        %1540 = vmatpush1.msra.mxu0 0.0
        %1541 = vmatprep.subr.mxu0 0.0
        %1542 = vmatpush1.msra.mxu0 0.0
        %1543 = vmatprep.subr.mxu0 0.0
        %1544 = vmatpush1.msra.mxu0 0.0
        %1545 = vmatprep.subr.mxu0 0.0
        %1546 = vmatpush1.msra.mxu0 0.0
        %1547 = vmatprep.subr.mxu0 0.0
        %1548 = vmatpush1.msra.mxu0 0.0
        %1549 = vmatprep.subr.mxu0 0.0
        %1550 = vmatpush1.msra.mxu0 %v337
        %1551 = vmatprep.subr.mxu0 0.0
        %1552 = vmatpush2.msra.mxu0 0.0
        %1553 = vmatprep.subr.mxu0 0.0
        %1554 = vmatpush2.msra.mxu0 0.0
        %1555 = vmatprep.subr.mxu0 0.0
        %1556 = vmatpush2.msra.mxu0 0.0
        %1557 = vmatprep.subr.mxu0 0.0
        %1558 = vmatpush2.msra.mxu0 0.0
        %1559 = vmatprep.subr.mxu0 0.0
        %1560 = vmatpush2.msra.mxu0 0.0
        %1561 = vmatprep.subr.mxu0 0.0
        %1562 = vmatpush2.msra.mxu0 0.0
        %1563 = vmatprep.subr.mxu0 0.0
        %1564 = vmatpush2.msra.mxu0 0.0
        %1565 = vmatprep.subr.mxu0 0.0
        %1566 = vmatpush2.msra.mxu0 0.0
        %1567 = vmatprep.subr.mxu0 0.0
        %1568 = vmatpush2.msra.mxu0 0.0
        %1569 = vmatprep.subr.mxu0 0.0
        %1570 = vmatpush2.msra.mxu0 0.0
        %1571 = vmatprep.subr.mxu0 0.0
        %1572 = vmatpush2.msra.mxu0 0.0
        %1573 = vmatprep.subr.mxu0 0.0
        %1574 = vmatpush2.msra.mxu0 0.0
        %1575 = vmatprep.subr.mxu0 0.0
        %1576 = vmatpush2.msra.mxu0 0.0
        %1577 = vmatprep.subr.mxu0 0.0
        %1578 = vmatpush2.msra.mxu0 0.0
        %1579 = vmatprep.subr.mxu0 0.0
        %1580 = vmatpush2.msra.mxu0 0.0
        %1581 = vmatprep.subr.mxu0 0.0
        %1582 = vmatpush2.msra.mxu0 0.0
        %1583 = vmatprep.mubr.f32.mxu0 0.0
        %1584 = vmatmul.mubr.f32.gmra.mxu0 %v1517
        %v1585 = vpop.f32.mrf.mxu0
        %v1586 = vadd.f32 0.0, %v1585
        %v1587 = vpop.f32.mrf.mxu0
        %1588 = vdwg.mxu0
        %v1590 = vcombine.high %v1586, %v1586
        %v1592 = vunpack.c.l.s4 1966171168
        %v1593 = vunpack.c.0.s8 %v1592
        %v1594 = vlaneseq
        %v1595 = vshrl.u32 %v1594, 7
        %v1596 = vsub.s32 %v1593, %v1595
        %v1597 = vrot.slane %v1586, %v1596
        %v1599 = vunpack.c.l.s4 1966171168
        %v1600 = vunpack.c.0.s8 %v1599
        %v1601 = vlaneseq
        %v1602 = vshrl.u32 %v1601, 7
        %v1603 = vsub.s32 %v1600, %v1602
        %v1604 = vrot.slane %v1590, %v1603
        %v1605 = vcombine.high %v1597, %v1597
        %v1606 = vcombine.high %v1604, %v1604
        %v1608 = vunpack.c.l.s4 1966171168
        %v1609 = vunpack.c.0.s8 %v1608
        %v1610 = vlaneseq
        %v1611 = vshrl.u32 %v1610, 7
        %v1612 = vsub.s32 %v1609, %v1611
        %v1613 = vrot.slane %v1597, %v1612
        %v1615 = vunpack.c.l.s4 1966171168
        %v1616 = vunpack.c.0.s8 %v1615
        %v1617 = vlaneseq
        %v1618 = vshrl.u32 %v1617, 7
        %v1619 = vsub.s32 %v1616, %v1618
        %v1620 = vrot.slane %v1604, %v1619
        %v1622 = vunpack.c.l.s4 1966171168
        %v1623 = vunpack.c.0.s8 %v1622
        %v1624 = vlaneseq
        %v1625 = vshrl.u32 %v1624, 7
        %v1626 = vsub.s32 %v1623, %v1625
        %v1627 = vrot.slane %v1605, %v1626
        %v1629 = vunpack.c.l.s4 1966171168
        %v1630 = vunpack.c.0.s8 %v1629
        %v1631 = vlaneseq
        %v1632 = vshrl.u32 %v1631, 7
        %v1633 = vsub.s32 %v1630, %v1632
        %v1634 = vrot.slane %v1606, %v1633
        %v1635 = vcombine.high %v1613, %v1613
        %v1636 = vcombine.high %v1620, %v1620
        %v1637 = vcombine.high %v1627, %v1627
        %v1638 = vcombine.high %v1634, %v1634
        %v1639 = vlaneseq
        %v1640 = vshrl.u32 %v1639, 7
        %v1641 = vsub.s32 0, %v1640
        %v1642 = vrot.slane %v1613, %v1641
        %v1643 = vlaneseq
        %v1644 = vshrl.u32 %v1643, 7
        %v1645 = vsub.s32 0, %v1644
        %v1646 = vrot.slane %v1627, %v1645
        %v1647 = vlaneseq
        %v1648 = vshrl.u32 %v1647, 7
        %v1649 = vsub.s32 0, %v1648
        %v1650 = vrot.slane %v1635, %v1649
        %v1651 = vlaneseq
        %v1652 = vshrl.u32 %v1651, 7
        %v1653 = vsub.s32 0, %v1652
        %v1654 = vrot.slane %v1637, %v1653
        %v1655 = vlaneseq
        %v1656 = vshrl.u32 %v1655, 7
        %v1657 = vsub.s32 0, %v1656
        %v1658 = vrot.slane %v1620, %v1657
        %v1659 = vlaneseq
        %v1660 = vshrl.u32 %v1659, 7
        %v1661 = vsub.s32 0, %v1660
        %v1662 = vrot.slane %v1634, %v1661
        %v1663 = vlaneseq
        %v1664 = vshrl.u32 %v1663, 7
        %v1665 = vsub.s32 0, %v1664
        %v1666 = vrot.slane %v1636, %v1665
        %v1667 = vlaneseq
        %v1668 = vshrl.u32 %v1667, 7
        %v1669 = vsub.s32 0, %v1668
        %v1670 = vrot.slane %v1638, %v1669
        %v1679 = vmul.f32 %v1642, %v687
        %v1680 = vmul.f32 %v1646, %v688
        %v1681 = vmul.f32 %v1650, %v689
        %v1682 = vmul.f32 %v1654, %v690
        %v1683 = vmul.f32 %v1658, %v691
        %v1684 = vmul.f32 %v1662, %v692
        %v1685 = vmul.f32 %v1666, %v693
        %v1686 = vmul.f32 %v1670, %v694
        %v1687 = vsel %vm867, %v1679, 0.0
        %1688 = vadd.xlane.f32.xlu0 %v1687
        %v1689 = vpop.xlane.xlu0 %1688
        %v1690 = vsel %vm867, %v1680, 0.0
        %1691 = vadd.xlane.f32.xlu0 %v1690
        %v1692 = vpop.xlane.xlu0 %1691
        %v1693 = vsel %vm867, %v1681, 0.0
        %1694 = vadd.xlane.f32.xlu0 %v1693
        %v1695 = vpop.xlane.xlu0 %1694
        %v1696 = vsel %vm867, %v1682, 0.0
        %1697 = vadd.xlane.f32.xlu0 %v1696
        %v1698 = vpop.xlane.xlu0 %1697
        %v1699 = vsel %vm867, %v1683, 0.0
        %1700 = vadd.xlane.f32.xlu0 %v1699
        %v1701 = vpop.xlane.xlu0 %1700
        %v1702 = vsel %vm867, %v1684, 0.0
        %1703 = vadd.xlane.f32.xlu0 %v1702
        %v1704 = vpop.xlane.xlu0 %1703
        %v1705 = vsel %vm867, %v1685, 0.0
        %1706 = vadd.xlane.f32.xlu0 %v1705
        %v1707 = vpop.xlane.xlu0 %1706
        %v1708 = vsel %vm867, %v1686, 0.0
        %1709 = vadd.xlane.f32.xlu0 %v1708
        %v1710 = vpop.xlane.xlu0 %1709
        %1711 = vrot.lane.b32.xlu0 %v600, 80
        %v1712 = vpop.permute.xlu0 %1711
        %v1721 = vlaneseq
        %v1722 = vshrl.u32 %v1721, 7
        %v1723 = vsub.s32 %v608, %v1722
        %v1724 = vrot.slane %v1689, %v1723
        %v1725 = vlaneseq
        %v1726 = vshrl.u32 %v1725, 7
        %v1727 = vsub.s32 %v608, %v1726
        %v1728 = vrot.slane %v1692, %v1727
        %v1729 = vlaneseq
        %v1730 = vshrl.u32 %v1729, 7
        %v1731 = vsub.s32 %v608, %v1730
        %v1732 = vrot.slane %v1695, %v1731
        %v1733 = vlaneseq
        %v1734 = vshrl.u32 %v1733, 7
        %v1735 = vsub.s32 %v608, %v1734
        %v1736 = vrot.slane %v1698, %v1735
        %v1737 = vlaneseq
        %v1738 = vshrl.u32 %v1737, 7
        %v1739 = vsub.s32 %v608, %v1738
        %v1740 = vrot.slane %v1701, %v1739
        %v1741 = vlaneseq
        %v1742 = vshrl.u32 %v1741, 7
        %v1743 = vsub.s32 %v608, %v1742
        %v1744 = vrot.slane %v1704, %v1743
        %v1745 = vlaneseq
        %v1746 = vshrl.u32 %v1745, 7
        %v1747 = vsub.s32 %v608, %v1746
        %v1748 = vrot.slane %v1707, %v1747
        %v1749 = vlaneseq
        %v1750 = vshrl.u32 %v1749, 7
        %v1751 = vsub.s32 %v608, %v1750
        %v1752 = vrot.slane %v1710, %v1751
        %v1753 = vsel %vm934, %v1728, %v1724
        %v1754 = vsel %vm936, %v1732, %v1753
        %v1755 = vsel %vm938, %v1736, %v1754
        %v1756 = vsel %vm940, %v1740, %v1755
        %v1757 = vsel %vm942, %v1744, %v1756
        %v1758 = vsel %vm944, %v1748, %v1757
        %v1759 = vsel %vm946, %v1752, %v1758
        %v1761 = vsel %vm695, %v1712, 0
        %1763 = vmatprep.subr.mxu0 0.0
        %1764 = vmatpush1.xpose.msra.mxu0 0.0
        %1765 = vmatprep.subr.mxu0 0.0
        %1766 = vmatpush1.xpose.msra.mxu0 0.0
        %1767 = vmatprep.subr.mxu0 0.0
        %1768 = vmatpush1.xpose.msra.mxu0 0.0
        %1769 = vmatprep.subr.mxu0 0.0
        %1770 = vmatpush1.xpose.msra.mxu0 0.0
        %1771 = vmatprep.subr.mxu0 0.0
        %1772 = vmatpush1.xpose.msra.mxu0 0.0
        %1773 = vmatprep.subr.mxu0 0.0
        %1774 = vmatpush1.xpose.msra.mxu0 0.0
        %1775 = vmatprep.subr.mxu0 0.0
        %1776 = vmatpush1.xpose.msra.mxu0 0.0
        %1777 = vmatprep.subr.mxu0 0.0
        %1778 = vmatpush1.xpose.msra.mxu0 0.0
        %1779 = vmatprep.subr.mxu0 0.0
        %1780 = vmatpush1.xpose.msra.mxu0 0.0
        %1781 = vmatprep.subr.mxu0 0.0
        %1782 = vmatpush1.xpose.msra.mxu0 0.0
        %1783 = vmatprep.subr.mxu0 0.0
        %1784 = vmatpush1.xpose.msra.mxu0 0.0
        %1785 = vmatprep.subr.mxu0 0.0
        %1786 = vmatpush1.xpose.msra.mxu0 0.0
        %1787 = vmatprep.subr.mxu0 0.0
        %1788 = vmatpush1.xpose.msra.mxu0 0.0
        %1789 = vmatprep.subr.mxu0 0.0
        %1790 = vmatpush1.xpose.msra.mxu0 0.0
        %1791 = vmatprep.subr.mxu0 0.0
        %1792 = vmatpush1.xpose.msra.mxu0 0.0
        %1793 = vmatprep.subr.mxu0 0.0
        %1794 = vmatpush1.xpose.msra.mxu0 %v1761
        %1795 = vmatprep.subr.mxu0 0.0
        %1796 = vmatpush2.xpose.msra.mxu0 0.0
        %1797 = vmatprep.subr.mxu0 0.0
        %1798 = vmatpush2.xpose.msra.mxu0 0.0
        %1799 = vmatprep.subr.mxu0 0.0
        %1800 = vmatpush2.xpose.msra.mxu0 0.0
        %1801 = vmatprep.subr.mxu0 0.0
        %1802 = vmatpush2.xpose.msra.mxu0 0.0
        %1803 = vmatprep.subr.mxu0 0.0
        %1804 = vmatpush2.xpose.msra.mxu0 0.0
        %1805 = vmatprep.subr.mxu0 0.0
        %1806 = vmatpush2.xpose.msra.mxu0 0.0
        %1807 = vmatprep.subr.mxu0 0.0
        %1808 = vmatpush2.xpose.msra.mxu0 0.0
        %1809 = vmatprep.subr.mxu0 0.0
        %1810 = vmatpush2.xpose.msra.mxu0 0.0
        %1811 = vmatprep.subr.mxu0 0.0
        %1812 = vmatpush2.xpose.msra.mxu0 0.0
        %1813 = vmatprep.subr.mxu0 0.0
        %1814 = vmatpush2.xpose.msra.mxu0 0.0
        %1815 = vmatprep.subr.mxu0 0.0
        %1816 = vmatpush2.xpose.msra.mxu0 0.0
        %1817 = vmatprep.subr.mxu0 0.0
        %1818 = vmatpush2.xpose.msra.mxu0 0.0
        %1819 = vmatprep.subr.mxu0 0.0
        %1820 = vmatpush2.xpose.msra.mxu0 0.0
        %1821 = vmatprep.subr.mxu0 0.0
        %1822 = vmatpush2.xpose.msra.mxu0 0.0
        %1823 = vmatprep.subr.mxu0 0.0
        %1824 = vmatpush2.xpose.msra.mxu0 0.0
        %1825 = vmatprep.subr.mxu0 0.0
        %1826 = vmatpush2.xpose.msra.mxu0 0.0
        %1827 = vmatprep.mubr.f32.mxu0 0.0
        %1828 = vmatmul.mubr.f32.gmra.mxu0 %v1517
        %v1829 = vpop.f32.mrf.mxu0
        %v1830 = vadd.f32 %v1759, %v1829
        %v1831 = vpop.f32.mrf.mxu0
        %1832 = vdwg.mxu0
        %v1833 = vmul.f32 %v1830, 0.35355338
        %v1834 = vsel %vm695, %v1833, -inf
        %1835 = vmax.xlane.f32.xlu0 %v1834
        %v1836 = vpop.xlane.xlu0 %1835
        %v1837 = vsub.f32 %v1833, %v1836
        %v1838 = vmul.f32 %v1837, 1.442695
        %v1839 = vpow.pop %v1838
        %v1840 = vsel %vm695, %v1839, 0.0
        %1841 = vadd.xlane.f32.xlu0 %v1840
        %v1842 = vpop.xlane.xlu0 %1841
        %v1843 = vrcp.pop %v1842
        %v1844 = vmul.f32 %v1839, %v1843
        %1845 = vrot.lane.b32.xlu0 %v600, 48
        %v1846 = vpop.permute.xlu0 %1845
        %v1849 = vsel %vm695, %v1844, 0
        %1851 = vmatprep.subr.mxu0 0.0
        %1852 = vmatpush1.msra.mxu0 0.0
        %1853 = vmatprep.subr.mxu0 0.0
        %1854 = vmatpush1.msra.mxu0 0.0
        %1855 = vmatprep.subr.mxu0 0.0
        %1856 = vmatpush1.msra.mxu0 0.0
        %1857 = vmatprep.subr.mxu0 0.0
        %1858 = vmatpush1.msra.mxu0 0.0
        %1859 = vmatprep.subr.mxu0 0.0
        %1860 = vmatpush1.msra.mxu0 0.0
        %1861 = vmatprep.subr.mxu0 0.0
        %1862 = vmatpush1.msra.mxu0 0.0
        %1863 = vmatprep.subr.mxu0 0.0
        %1864 = vmatpush1.msra.mxu0 0.0
        %1865 = vmatprep.subr.mxu0 0.0
        %1866 = vmatpush1.msra.mxu0 0.0
        %1867 = vmatprep.subr.mxu0 0.0
        %1868 = vmatpush1.msra.mxu0 0.0
        %1869 = vmatprep.subr.mxu0 0.0
        %1870 = vmatpush1.msra.mxu0 0.0
        %1871 = vmatprep.subr.mxu0 0.0
        %1872 = vmatpush1.msra.mxu0 0.0
        %1873 = vmatprep.subr.mxu0 0.0
        %1874 = vmatpush1.msra.mxu0 0.0
        %1875 = vmatprep.subr.mxu0 0.0
        %1876 = vmatpush1.msra.mxu0 0.0
        %1877 = vmatprep.subr.mxu0 0.0
        %1878 = vmatpush1.msra.mxu0 0.0
        %1879 = vmatprep.subr.mxu0 0.0
        %1880 = vmatpush1.msra.mxu0 0.0
        %1881 = vmatprep.subr.mxu0 0.0
        %1882 = vmatpush1.msra.mxu0 %v1846
        %1883 = vmatprep.subr.mxu0 0.0
        %1884 = vmatpush2.msra.mxu0 0.0
        %1885 = vmatprep.subr.mxu0 0.0
        %1886 = vmatpush2.msra.mxu0 0.0
        %1887 = vmatprep.subr.mxu0 0.0
        %1888 = vmatpush2.msra.mxu0 0.0
        %1889 = vmatprep.subr.mxu0 0.0
        %1890 = vmatpush2.msra.mxu0 0.0
        %1891 = vmatprep.subr.mxu0 0.0
        %1892 = vmatpush2.msra.mxu0 0.0
        %1893 = vmatprep.subr.mxu0 0.0
        %1894 = vmatpush2.msra.mxu0 0.0
        %1895 = vmatprep.subr.mxu0 0.0
        %1896 = vmatpush2.msra.mxu0 0.0
        %1897 = vmatprep.subr.mxu0 0.0
        %1898 = vmatpush2.msra.mxu0 0.0
        %1899 = vmatprep.subr.mxu0 0.0
        %1900 = vmatpush2.msra.mxu0 0.0
        %1901 = vmatprep.subr.mxu0 0.0
        %1902 = vmatpush2.msra.mxu0 0.0
        %1903 = vmatprep.subr.mxu0 0.0
        %1904 = vmatpush2.msra.mxu0 0.0
        %1905 = vmatprep.subr.mxu0 0.0
        %1906 = vmatpush2.msra.mxu0 0.0
        %1907 = vmatprep.subr.mxu0 0.0
        %1908 = vmatpush2.msra.mxu0 0.0
        %1909 = vmatprep.subr.mxu0 0.0
        %1910 = vmatpush2.msra.mxu0 0.0
        %1911 = vmatprep.subr.mxu0 0.0
        %1912 = vmatpush2.msra.mxu0 0.0
        %1913 = vmatprep.subr.mxu0 0.0
        %1914 = vmatpush2.msra.mxu0 0.0
        %1915 = vmatprep.mubr.f32.mxu0 0.0
        %1916 = vmatmul.mubr.f32.gmra.mxu0 %v1849
        %v1917 = vpop.f32.mrf.mxu0
        %v1918 = vadd.f32 0.0, %v1917
        %v1919 = vpop.f32.mrf.mxu0
        %1920 = vdwg.mxu0
        %1921 = vrot.lane.b32.xlu0 %v600, 104
        %v1922 = vpop.permute.xlu0 %1921
        %v1923 = vsel %vm695, %v1922, 0
        %1925 = vmatprep.subr.mxu0 0.0
        %1926 = vmatpush1.msra.mxu0 0.0
        %1927 = vmatprep.subr.mxu0 0.0
        %1928 = vmatpush1.msra.mxu0 0.0
        %1929 = vmatprep.subr.mxu0 0.0
        %1930 = vmatpush1.msra.mxu0 0.0
        %1931 = vmatprep.subr.mxu0 0.0
        %1932 = vmatpush1.msra.mxu0 0.0
        %1933 = vmatprep.subr.mxu0 0.0
        %1934 = vmatpush1.msra.mxu0 0.0
        %1935 = vmatprep.subr.mxu0 0.0
        %1936 = vmatpush1.msra.mxu0 0.0
        %1937 = vmatprep.subr.mxu0 0.0
        %1938 = vmatpush1.msra.mxu0 0.0
        %1939 = vmatprep.subr.mxu0 0.0
        %1940 = vmatpush1.msra.mxu0 0.0
        %1941 = vmatprep.subr.mxu0 0.0
        %1942 = vmatpush1.msra.mxu0 0.0
        %1943 = vmatprep.subr.mxu0 0.0
        %1944 = vmatpush1.msra.mxu0 0.0
        %1945 = vmatprep.subr.mxu0 0.0
        %1946 = vmatpush1.msra.mxu0 0.0
        %1947 = vmatprep.subr.mxu0 0.0
        %1948 = vmatpush1.msra.mxu0 0.0
        %1949 = vmatprep.subr.mxu0 0.0
        %1950 = vmatpush1.msra.mxu0 0.0
        %1951 = vmatprep.subr.mxu0 0.0
        %1952 = vmatpush1.msra.mxu0 0.0
        %1953 = vmatprep.subr.mxu0 0.0
        %1954 = vmatpush1.msra.mxu0 0.0
        %1955 = vmatprep.subr.mxu0 0.0
        %1956 = vmatpush1.msra.mxu0 %v337
        %1957 = vmatprep.subr.mxu0 0.0
        %1958 = vmatpush2.msra.mxu0 0.0
        %1959 = vmatprep.subr.mxu0 0.0
        %1960 = vmatpush2.msra.mxu0 0.0
        %1961 = vmatprep.subr.mxu0 0.0
        %1962 = vmatpush2.msra.mxu0 0.0
        %1963 = vmatprep.subr.mxu0 0.0
        %1964 = vmatpush2.msra.mxu0 0.0
        %1965 = vmatprep.subr.mxu0 0.0
        %1966 = vmatpush2.msra.mxu0 0.0
        %1967 = vmatprep.subr.mxu0 0.0
        %1968 = vmatpush2.msra.mxu0 0.0
        %1969 = vmatprep.subr.mxu0 0.0
        %1970 = vmatpush2.msra.mxu0 0.0
        %1971 = vmatprep.subr.mxu0 0.0
        %1972 = vmatpush2.msra.mxu0 0.0
        %1973 = vmatprep.subr.mxu0 0.0
        %1974 = vmatpush2.msra.mxu0 0.0
        %1975 = vmatprep.subr.mxu0 0.0
        %1976 = vmatpush2.msra.mxu0 0.0
        %1977 = vmatprep.subr.mxu0 0.0
        %1978 = vmatpush2.msra.mxu0 0.0
        %1979 = vmatprep.subr.mxu0 0.0
        %1980 = vmatpush2.msra.mxu0 0.0
        %1981 = vmatprep.subr.mxu0 0.0
        %1982 = vmatpush2.msra.mxu0 0.0
        %1983 = vmatprep.subr.mxu0 0.0
        %1984 = vmatpush2.msra.mxu0 0.0
        %1985 = vmatprep.subr.mxu0 0.0
        %1986 = vmatpush2.msra.mxu0 0.0
        %1987 = vmatprep.subr.mxu0 0.0
        %1988 = vmatpush2.msra.mxu0 0.0
        %1989 = vmatprep.mubr.f32.mxu0 0.0
        %1990 = vmatmul.mubr.f32.gmra.mxu0 %v1923
        %v1991 = vpop.f32.mrf.mxu0
        %v1992 = vadd.f32 0.0, %v1991
        %v1993 = vpop.f32.mrf.mxu0
        %1994 = vdwg.mxu0
        %v1996 = vcombine.high %v1992, %v1992
        %v1998 = vunpack.c.l.s4 1966171168
        %v1999 = vunpack.c.0.s8 %v1998
        %v2000 = vlaneseq
        %v2001 = vshrl.u32 %v2000, 7
        %v2002 = vsub.s32 %v1999, %v2001
        %v2003 = vrot.slane %v1992, %v2002
        %v2005 = vunpack.c.l.s4 1966171168
        %v2006 = vunpack.c.0.s8 %v2005
        %v2007 = vlaneseq
        %v2008 = vshrl.u32 %v2007, 7
        %v2009 = vsub.s32 %v2006, %v2008
        %v2010 = vrot.slane %v1996, %v2009
        %v2011 = vcombine.high %v2003, %v2003
        %v2012 = vcombine.high %v2010, %v2010
        %v2014 = vunpack.c.l.s4 1966171168
        %v2015 = vunpack.c.0.s8 %v2014
        %v2016 = vlaneseq
        %v2017 = vshrl.u32 %v2016, 7
        %v2018 = vsub.s32 %v2015, %v2017
        %v2019 = vrot.slane %v2003, %v2018
        %v2021 = vunpack.c.l.s4 1966171168
        %v2022 = vunpack.c.0.s8 %v2021
        %v2023 = vlaneseq
        %v2024 = vshrl.u32 %v2023, 7
        %v2025 = vsub.s32 %v2022, %v2024
        %v2026 = vrot.slane %v2010, %v2025
        %v2028 = vunpack.c.l.s4 1966171168
        %v2029 = vunpack.c.0.s8 %v2028
        %v2030 = vlaneseq
        %v2031 = vshrl.u32 %v2030, 7
        %v2032 = vsub.s32 %v2029, %v2031
        %v2033 = vrot.slane %v2011, %v2032
        %v2035 = vunpack.c.l.s4 1966171168
        %v2036 = vunpack.c.0.s8 %v2035
        %v2037 = vlaneseq
        %v2038 = vshrl.u32 %v2037, 7
        %v2039 = vsub.s32 %v2036, %v2038
        %v2040 = vrot.slane %v2012, %v2039
        %v2041 = vcombine.high %v2019, %v2019
        %v2042 = vcombine.high %v2026, %v2026
        %v2043 = vcombine.high %v2033, %v2033
        %v2044 = vcombine.high %v2040, %v2040
        %v2045 = vlaneseq
        %v2046 = vshrl.u32 %v2045, 7
        %v2047 = vsub.s32 0, %v2046
        %v2048 = vrot.slane %v2019, %v2047
        %v2049 = vlaneseq
        %v2050 = vshrl.u32 %v2049, 7
        %v2051 = vsub.s32 0, %v2050
        %v2052 = vrot.slane %v2033, %v2051
        %v2053 = vlaneseq
        %v2054 = vshrl.u32 %v2053, 7
        %v2055 = vsub.s32 0, %v2054
        %v2056 = vrot.slane %v2041, %v2055
        %v2057 = vlaneseq
        %v2058 = vshrl.u32 %v2057, 7
        %v2059 = vsub.s32 0, %v2058
        %v2060 = vrot.slane %v2043, %v2059
        %v2061 = vlaneseq
        %v2062 = vshrl.u32 %v2061, 7
        %v2063 = vsub.s32 0, %v2062
        %v2064 = vrot.slane %v2026, %v2063
        %v2065 = vlaneseq
        %v2066 = vshrl.u32 %v2065, 7
        %v2067 = vsub.s32 0, %v2066
        %v2068 = vrot.slane %v2040, %v2067
        %v2069 = vlaneseq
        %v2070 = vshrl.u32 %v2069, 7
        %v2071 = vsub.s32 0, %v2070
        %v2072 = vrot.slane %v2042, %v2071
        %v2073 = vlaneseq
        %v2074 = vshrl.u32 %v2073, 7
        %v2075 = vsub.s32 0, %v2074
        %v2076 = vrot.slane %v2044, %v2075
        %v2085 = vmul.f32 %v2048, %v687
        %v2086 = vmul.f32 %v2052, %v688
        %v2087 = vmul.f32 %v2056, %v689
        %v2088 = vmul.f32 %v2060, %v690
        %v2089 = vmul.f32 %v2064, %v691
        %v2090 = vmul.f32 %v2068, %v692
        %v2091 = vmul.f32 %v2072, %v693
        %v2092 = vmul.f32 %v2076, %v694
        %v2093 = vsel %vm867, %v2085, 0.0
        %2094 = vadd.xlane.f32.xlu0 %v2093
        %v2095 = vpop.xlane.xlu0 %2094
        %v2096 = vsel %vm867, %v2086, 0.0
        %2097 = vadd.xlane.f32.xlu0 %v2096
        %v2098 = vpop.xlane.xlu0 %2097
        %v2099 = vsel %vm867, %v2087, 0.0
        %2100 = vadd.xlane.f32.xlu0 %v2099
        %v2101 = vpop.xlane.xlu0 %2100
        %v2102 = vsel %vm867, %v2088, 0.0
        %2103 = vadd.xlane.f32.xlu0 %v2102
        %v2104 = vpop.xlane.xlu0 %2103
        %v2105 = vsel %vm867, %v2089, 0.0
        %2106 = vadd.xlane.f32.xlu0 %v2105
        %v2107 = vpop.xlane.xlu0 %2106
        %v2108 = vsel %vm867, %v2090, 0.0
        %2109 = vadd.xlane.f32.xlu0 %v2108
        %v2110 = vpop.xlane.xlu0 %2109
        %v2111 = vsel %vm867, %v2091, 0.0
        %2112 = vadd.xlane.f32.xlu0 %v2111
        %v2113 = vpop.xlane.xlu0 %2112
        %v2114 = vsel %vm867, %v2092, 0.0
        %2115 = vadd.xlane.f32.xlu0 %v2114
        %v2116 = vpop.xlane.xlu0 %2115
        %2117 = vrot.lane.b32.xlu0 %v600, 72
        %v2118 = vpop.permute.xlu0 %2117
        %v2127 = vlaneseq
        %v2128 = vshrl.u32 %v2127, 7
        %v2129 = vsub.s32 %v608, %v2128
        %v2130 = vrot.slane %v2095, %v2129
        %v2131 = vlaneseq
        %v2132 = vshrl.u32 %v2131, 7
        %v2133 = vsub.s32 %v608, %v2132
        %v2134 = vrot.slane %v2098, %v2133
        %v2135 = vlaneseq
        %v2136 = vshrl.u32 %v2135, 7
        %v2137 = vsub.s32 %v608, %v2136
        %v2138 = vrot.slane %v2101, %v2137
        %v2139 = vlaneseq
        %v2140 = vshrl.u32 %v2139, 7
        %v2141 = vsub.s32 %v608, %v2140
        %v2142 = vrot.slane %v2104, %v2141
        %v2143 = vlaneseq
        %v2144 = vshrl.u32 %v2143, 7
        %v2145 = vsub.s32 %v608, %v2144
        %v2146 = vrot.slane %v2107, %v2145
        %v2147 = vlaneseq
        %v2148 = vshrl.u32 %v2147, 7
        %v2149 = vsub.s32 %v608, %v2148
        %v2150 = vrot.slane %v2110, %v2149
        %v2151 = vlaneseq
        %v2152 = vshrl.u32 %v2151, 7
        %v2153 = vsub.s32 %v608, %v2152
        %v2154 = vrot.slane %v2113, %v2153
        %v2155 = vlaneseq
        %v2156 = vshrl.u32 %v2155, 7
        %v2157 = vsub.s32 %v608, %v2156
        %v2158 = vrot.slane %v2116, %v2157
        %v2159 = vsel %vm934, %v2134, %v2130
        %v2160 = vsel %vm936, %v2138, %v2159
        %v2161 = vsel %vm938, %v2142, %v2160
        %v2162 = vsel %vm940, %v2146, %v2161
        %v2163 = vsel %vm942, %v2150, %v2162
        %v2164 = vsel %vm944, %v2154, %v2163
        %v2165 = vsel %vm946, %v2158, %v2164
        %v2167 = vsel %vm695, %v2118, 0
        %2169 = vmatprep.subr.mxu0 0.0
        %2170 = vmatpush1.xpose.msra.mxu0 0.0
        %2171 = vmatprep.subr.mxu0 0.0
        %2172 = vmatpush1.xpose.msra.mxu0 0.0
        %2173 = vmatprep.subr.mxu0 0.0
        %2174 = vmatpush1.xpose.msra.mxu0 0.0
        %2175 = vmatprep.subr.mxu0 0.0
        %2176 = vmatpush1.xpose.msra.mxu0 0.0
        %2177 = vmatprep.subr.mxu0 0.0
        %2178 = vmatpush1.xpose.msra.mxu0 0.0
        %2179 = vmatprep.subr.mxu0 0.0
        %2180 = vmatpush1.xpose.msra.mxu0 0.0
        %2181 = vmatprep.subr.mxu0 0.0
        %2182 = vmatpush1.xpose.msra.mxu0 0.0
        %2183 = vmatprep.subr.mxu0 0.0
        %2184 = vmatpush1.xpose.msra.mxu0 0.0
        %2185 = vmatprep.subr.mxu0 0.0
        %2186 = vmatpush1.xpose.msra.mxu0 0.0
        %2187 = vmatprep.subr.mxu0 0.0
        %2188 = vmatpush1.xpose.msra.mxu0 0.0
        %2189 = vmatprep.subr.mxu0 0.0
        %2190 = vmatpush1.xpose.msra.mxu0 0.0
        %2191 = vmatprep.subr.mxu0 0.0
        %2192 = vmatpush1.xpose.msra.mxu0 0.0
        %2193 = vmatprep.subr.mxu0 0.0
        %2194 = vmatpush1.xpose.msra.mxu0 0.0
        %2195 = vmatprep.subr.mxu0 0.0
        %2196 = vmatpush1.xpose.msra.mxu0 0.0
        %2197 = vmatprep.subr.mxu0 0.0
        %2198 = vmatpush1.xpose.msra.mxu0 0.0
        %2199 = vmatprep.subr.mxu0 0.0
        %2200 = vmatpush1.xpose.msra.mxu0 %v2167
        %2201 = vmatprep.subr.mxu0 0.0
        %2202 = vmatpush2.xpose.msra.mxu0 0.0
        %2203 = vmatprep.subr.mxu0 0.0
        %2204 = vmatpush2.xpose.msra.mxu0 0.0
        %2205 = vmatprep.subr.mxu0 0.0
        %2206 = vmatpush2.xpose.msra.mxu0 0.0
        %2207 = vmatprep.subr.mxu0 0.0
        %2208 = vmatpush2.xpose.msra.mxu0 0.0
        %2209 = vmatprep.subr.mxu0 0.0
        %2210 = vmatpush2.xpose.msra.mxu0 0.0
        %2211 = vmatprep.subr.mxu0 0.0
        %2212 = vmatpush2.xpose.msra.mxu0 0.0
        %2213 = vmatprep.subr.mxu0 0.0
        %2214 = vmatpush2.xpose.msra.mxu0 0.0
        %2215 = vmatprep.subr.mxu0 0.0
        %2216 = vmatpush2.xpose.msra.mxu0 0.0
        %2217 = vmatprep.subr.mxu0 0.0
        %2218 = vmatpush2.xpose.msra.mxu0 0.0
        %2219 = vmatprep.subr.mxu0 0.0
        %2220 = vmatpush2.xpose.msra.mxu0 0.0
        %2221 = vmatprep.subr.mxu0 0.0
        %2222 = vmatpush2.xpose.msra.mxu0 0.0
        %2223 = vmatprep.subr.mxu0 0.0
        %2224 = vmatpush2.xpose.msra.mxu0 0.0
        %2225 = vmatprep.subr.mxu0 0.0
        %2226 = vmatpush2.xpose.msra.mxu0 0.0
        %2227 = vmatprep.subr.mxu0 0.0
        %2228 = vmatpush2.xpose.msra.mxu0 0.0
        %2229 = vmatprep.subr.mxu0 0.0
        %2230 = vmatpush2.xpose.msra.mxu0 0.0
        %2231 = vmatprep.subr.mxu0 0.0
        %2232 = vmatpush2.xpose.msra.mxu0 0.0
        %2233 = vmatprep.mubr.f32.mxu0 0.0
        %2234 = vmatmul.mubr.f32.gmra.mxu0 %v1923
        %v2235 = vpop.f32.mrf.mxu0
        %v2236 = vadd.f32 %v2165, %v2235
        %v2237 = vpop.f32.mrf.mxu0
        %2238 = vdwg.mxu0
        %v2239 = vmul.f32 %v2236, 0.35355338
        %v2240 = vsel %vm695, %v2239, -inf
        %2241 = vmax.xlane.f32.xlu0 %v2240
        %v2242 = vpop.xlane.xlu0 %2241
        %v2243 = vsub.f32 %v2239, %v2242
        %v2244 = vmul.f32 %v2243, 1.442695
        %v2245 = vpow.pop %v2244
        %v2246 = vsel %vm695, %v2245, 0.0
        %2247 = vadd.xlane.f32.xlu0 %v2246
        %v2248 = vpop.xlane.xlu0 %2247
        %v2249 = vrcp.pop %v2248
        %v2250 = vmul.f32 %v2245, %v2249
        %2251 = vrot.lane.b32.xlu0 %v600, 40
        %v2252 = vpop.permute.xlu0 %2251
        %v2255 = vsel %vm695, %v2250, 0
        %2257 = vmatprep.subr.mxu0 0.0
        %2258 = vmatpush1.msra.mxu0 0.0
        %2259 = vmatprep.subr.mxu0 0.0
        %2260 = vmatpush1.msra.mxu0 0.0
        %2261 = vmatprep.subr.mxu0 0.0
        %2262 = vmatpush1.msra.mxu0 0.0
        %2263 = vmatprep.subr.mxu0 0.0
        %2264 = vmatpush1.msra.mxu0 0.0
        %2265 = vmatprep.subr.mxu0 0.0
        %2266 = vmatpush1.msra.mxu0 0.0
        %2267 = vmatprep.subr.mxu0 0.0
        %2268 = vmatpush1.msra.mxu0 0.0
        %2269 = vmatprep.subr.mxu0 0.0
        %2270 = vmatpush1.msra.mxu0 0.0
        %2271 = vmatprep.subr.mxu0 0.0
        %2272 = vmatpush1.msra.mxu0 0.0
        %2273 = vmatprep.subr.mxu0 0.0
        %2274 = vmatpush1.msra.mxu0 0.0
        %2275 = vmatprep.subr.mxu0 0.0
        %2276 = vmatpush1.msra.mxu0 0.0
        %2277 = vmatprep.subr.mxu0 0.0
        %2278 = vmatpush1.msra.mxu0 0.0
        %2279 = vmatprep.subr.mxu0 0.0
        %2280 = vmatpush1.msra.mxu0 0.0
        %2281 = vmatprep.subr.mxu0 0.0
        %2282 = vmatpush1.msra.mxu0 0.0
        %2283 = vmatprep.subr.mxu0 0.0
        %2284 = vmatpush1.msra.mxu0 0.0
        %2285 = vmatprep.subr.mxu0 0.0
        %2286 = vmatpush1.msra.mxu0 0.0
        %2287 = vmatprep.subr.mxu0 0.0
        %2288 = vmatpush1.msra.mxu0 %v2252
        %2289 = vmatprep.subr.mxu0 0.0
        %2290 = vmatpush2.msra.mxu0 0.0
        %2291 = vmatprep.subr.mxu0 0.0
        %2292 = vmatpush2.msra.mxu0 0.0
        %2293 = vmatprep.subr.mxu0 0.0
        %2294 = vmatpush2.msra.mxu0 0.0
        %2295 = vmatprep.subr.mxu0 0.0
        %2296 = vmatpush2.msra.mxu0 0.0
        %2297 = vmatprep.subr.mxu0 0.0
        %2298 = vmatpush2.msra.mxu0 0.0
        %2299 = vmatprep.subr.mxu0 0.0
        %2300 = vmatpush2.msra.mxu0 0.0
        %2301 = vmatprep.subr.mxu0 0.0
        %2302 = vmatpush2.msra.mxu0 0.0
        %2303 = vmatprep.subr.mxu0 0.0
        %2304 = vmatpush2.msra.mxu0 0.0
        %2305 = vmatprep.subr.mxu0 0.0
        %2306 = vmatpush2.msra.mxu0 0.0
        %2307 = vmatprep.subr.mxu0 0.0
        %2308 = vmatpush2.msra.mxu0 0.0
        %2309 = vmatprep.subr.mxu0 0.0
        %2310 = vmatpush2.msra.mxu0 0.0
        %2311 = vmatprep.subr.mxu0 0.0
        %2312 = vmatpush2.msra.mxu0 0.0
        %2313 = vmatprep.subr.mxu0 0.0
        %2314 = vmatpush2.msra.mxu0 0.0
        %2315 = vmatprep.subr.mxu0 0.0
        %2316 = vmatpush2.msra.mxu0 0.0
        %2317 = vmatprep.subr.mxu0 0.0
        %2318 = vmatpush2.msra.mxu0 0.0
        %2319 = vmatprep.subr.mxu0 0.0
        %2320 = vmatpush2.msra.mxu0 0.0
        %2321 = vmatprep.mubr.f32.mxu0 0.0
        %2322 = vmatmul.mubr.f32.gmra.mxu0 %v2255
        %v2323 = vpop.f32.mrf.mxu0
        %v2324 = vadd.f32 0.0, %v2323
        %v2325 = vpop.f32.mrf.mxu0
        %2326 = vdwg.mxu0
        %2328 = vrot.lane.b32.xlu0 %v1512, 8
        %v2329 = vpop.permute.xlu0 %2328
        %2332 = vrot.lane.b32.xlu0 %v1918, 16
        %v2333 = vpop.permute.xlu0 %2332
        %2336 = vrot.lane.b32.xlu0 %v2324, 24
        %v2337 = vpop.permute.xlu0 %2336
        %v2339 = vsel %vm695, %v1106, %v2329
        %vm2340 = vcmask 130048
        %v2341 = vsel %vm2340, %v2339, %v2333
        %vm2342 = vcmask 195584
        %v2343 = vsel %vm2342, %v2341, %v2337
        %v2344 = vpack.c.bf16 %v2343, %v2343
        %v2345 = vlaneseq
        %v2346 = vshrl.u32 %v2345, 7
        %v2347 = vsub.s32 7, %v2346
        %v2348 = vrot.slane %v318, %v2347
        %2349 = vrot.lane.b32.xlu0 %v558, 32
        %v2350 = vpop.permute.xlu0 %2349
        %2351 = vrot.lane.b32.xlu0 %v559, 32
        %v2352 = vpop.permute.xlu0 %2351
        %v2356 = vsel %vm338, %v2344, 0
        %2358 = vmatprep.subr.bf16.mxu0 0
        %2359 = vmatpush1.bf16.msra.mxu0 0
        %2360 = vmatprep.subr.bf16.mxu0 0
        %2361 = vmatpush1.bf16.msra.mxu0 0
        %2362 = vmatprep.subr.bf16.mxu0 0
        %2363 = vmatpush1.bf16.msra.mxu0 0
        %2364 = vmatprep.subr.bf16.mxu0 0
        %2365 = vmatpush1.bf16.msra.mxu0 0
        %2366 = vmatprep.subr.bf16.mxu0 0
        %2367 = vmatpush1.bf16.msra.mxu0 0
        %2368 = vmatprep.subr.bf16.mxu0 0
        %2369 = vmatpush1.bf16.msra.mxu0 0
        %2370 = vmatprep.subr.bf16.mxu0 0
        %2371 = vmatpush1.bf16.msra.mxu0 %v2352
        %2372 = vmatprep.subr.bf16.mxu0 0
        %2373 = vmatpush1.bf16.msra.mxu0 %v2350
        %2374 = vmatprep.subr.bf16.mxu0 0
        %2375 = vmatpush2.bf16.msra.mxu0 0
        %2376 = vmatprep.subr.bf16.mxu0 0
        %2377 = vmatpush2.bf16.msra.mxu0 0
        %2378 = vmatprep.subr.bf16.mxu0 0
        %2379 = vmatpush2.bf16.msra.mxu0 0
        %2380 = vmatprep.subr.bf16.mxu0 0
        %2381 = vmatpush2.bf16.msra.mxu0 0
        %2382 = vmatprep.subr.bf16.mxu0 0
        %2383 = vmatpush2.bf16.msra.mxu0 0
        %2384 = vmatprep.subr.bf16.mxu0 0
        %2385 = vmatpush2.bf16.msra.mxu0 0
        %2386 = vmatprep.subr.bf16.mxu0 0
        %2387 = vmatpush2.bf16.msra.mxu0 0
        %2388 = vmatprep.subr.bf16.mxu0 0
        %2389 = vmatpush2.bf16.msra.mxu0 0
        %2390 = vmatprep.mubr.bf16.mxu0 0
        %2391 = vmatmul.mubr.bf16.gmra.mxu0 %v2356
        %v2392 = vpop.f32.mrf.mxu0
        %v2393 = vadd.f32 %v2348, %v2392
        %v2394 = vpop.f32.mrf.mxu0
        %v2395 = vpop.f32.mrf.mxu0
        %v2396 = vpop.f32.mrf.mxu0
        %2397 = vdwg.mxu0
        %v2398 = vadd.f32 %v525, %v2393
        %v2399 = vsel %vm338, %v2398, 0.0
        %2400 = vadd.xlane.f32.xlu0 %v2399
        %v2401 = vpop.xlane.xlu0 %2400
        %v2402 = vmul.f32 %v2401, %v342
        %v2403 = vsub.f32 %v2398, %v2402
        %v2404 = vmul.f32 %v2403, %v2403
        %v2405 = vsel %vm338, %v2404, 0.0
        %2406 = vadd.xlane.f32.xlu0 %v2405
        %v2407 = vpop.xlane.xlu0 %2406
        %v2408 = vmul.f32 %v2407, %v342
        %v2409 = vadd.f32 %v2408, 1e-05
        %v2410 = vrsqrt.pop %v2409
        %v2411 = vmul.f32 %v2403, %v2410
        %v2412 = vlaneseq
        %v2413 = vshrl.u32 %v2412, 7
        %v2414 = vsub.s32 0, %v2413
        %v2415 = vrot.slane %v319, %v2414
        %v2416 = vmul.f32 %v2411, %v2415
        %v2417 = vlaneseq
        %v2418 = vshrl.u32 %v2417, 7
        %v2419 = vsub.s32 1, %v2418
        %v2420 = vrot.slane %v319, %v2419
        %v2421 = vadd.f32 %v2416, %v2420
        %v2422 = vpack.c.bf16 %v2421, %v2421
        %v2426 = vsel %vm338, %v2422, 0
        %2428 = vmatprep.subr.bf16.mxu0 0
        %2429 = vmatpush1.bf16.msra.mxu0 0
        %2430 = vmatprep.subr.bf16.mxu0 0
        %2431 = vmatpush1.bf16.msra.mxu0 0
        %2432 = vmatprep.subr.bf16.mxu0 0
        %2433 = vmatpush1.bf16.msra.mxu0 0
        %2434 = vmatprep.subr.bf16.mxu0 0
        %2435 = vmatpush1.bf16.msra.mxu0 0
        %2436 = vmatprep.subr.bf16.mxu0 0
        %2437 = vmatpush1.bf16.msra.mxu0 0
        %2438 = vmatprep.subr.bf16.mxu0 0
        %2439 = vmatpush1.bf16.msra.mxu0 0
        %2440 = vmatprep.subr.bf16.mxu0 0
        %2441 = vmatpush1.bf16.msra.mxu0 %v386
        %2442 = vmatprep.subr.bf16.mxu0 0
        %2443 = vmatpush1.bf16.msra.mxu0 %v384
        %2444 = vmatprep.subr.bf16.mxu0 0
        %2445 = vmatpush2.bf16.msra.mxu0 0
        %2446 = vmatprep.subr.bf16.mxu0 0
        %2447 = vmatpush2.bf16.msra.mxu0 0
        %2448 = vmatprep.subr.bf16.mxu0 0
        %2449 = vmatpush2.bf16.msra.mxu0 0
        %2450 = vmatprep.subr.bf16.mxu0 0
        %2451 = vmatpush2.bf16.msra.mxu0 0
        %2452 = vmatprep.subr.bf16.mxu0 0
        %2453 = vmatpush2.bf16.msra.mxu0 0
        %2454 = vmatprep.subr.bf16.mxu0 0
        %2455 = vmatpush2.bf16.msra.mxu0 0
        %2456 = vmatprep.subr.bf16.mxu0 0
        %2457 = vmatpush2.bf16.msra.mxu0 0
        %2458 = vmatprep.subr.bf16.mxu0 0
        %2459 = vmatpush2.bf16.msra.mxu0 0
        %2460 = vmatprep.mubr.bf16.mxu0 0
        %2461 = vmatmul.mubr.bf16.gmra.mxu0 %v2426
        %v2462 = vpop.f32.mrf.mxu0
        %v2463 = vadd.f32 0.0, %v2462
        %v2464 = vpop.f32.mrf.mxu0
        %v2465 = vpop.f32.mrf.mxu0
        %v2466 = vpop.f32.mrf.mxu0
        %2467 = vdwg.mxu0
        %v2468 = vxor.u32 %v2463, 2147483648
        %v2469 = vmul.f32 %v2468, 1.442695
        %v2470 = vpow.pop %v2469
        %v2471 = vadd.f32 %v2470, 1.0
        %v2472 = vrcp.pop %v2471
        %v2473 = vmul.f32 1.0, %v2472
        %2475 = vrot.lane.b32.xlu0 %v2473, 96
        %v2476 = vpop.permute.xlu0 %2475
        %v2478 = vmul.f32 %v2463, %v2476
        %2479 = vst.msk [vmem:[#allocation2] sm:$0xff] %vm338, 0.0
        %vm2480 = vcmask 257024
        %2481 = vst.msk [vmem:[#allocation2 + $0x8] sm:$0xf] %vm2480, 0.0
        %2482 = vst.msk [vmem:[#allocation2 + $0x4] sm:$0xff] %vm338, %v2478
        %v2483 = vld [vmem:[#allocation2] sm:$0xff]
        %v2484 = vlaneseq
        %v2485 = vshrl.u32 %v2484, 7
        %v2486 = vsub.s32 2, %v2485
        %v2487 = vrot.slane %v320, %v2486
        %v2488 = vmul.f32 %v2483, %v2487
        %v2489 = vadd.f32 %v2488, 0.0
        %v2490 = vld [vmem:[#allocation2 + $0x1] sm:$0xff]
        %v2491 = vlaneseq
        %v2492 = vshrl.u32 %v2491, 7
        %v2493 = vsub.s32 3, %v2492
        %v2494 = vrot.slane %v320, %v2493
        %v2495 = vmul.f32 %v2490, %v2494
        %v2496 = vadd.f32 %v2489, %v2495
        %v2497 = vld [vmem:[#allocation2 + $0x2] sm:$0xff]
        %v2498 = vlaneseq
        %v2499 = vshrl.u32 %v2498, 7
        %v2500 = vsub.s32 4, %v2499
        %v2501 = vrot.slane %v320, %v2500
        %v2502 = vmul.f32 %v2497, %v2501
        %v2503 = vadd.f32 %v2496, %v2502
        %v2504 = vld [vmem:[#allocation2 + $0x3] sm:$0xff]
        %v2505 = vlaneseq
        %v2506 = vshrl.u32 %v2505, 7
        %v2507 = vsub.s32 5, %v2506
        %v2508 = vrot.slane %v320, %v2507
        %v2509 = vmul.f32 %v2504, %v2508
        %v2510 = vadd.f32 %v2503, %v2509
        %v2511 = vld [vmem:[#allocation2 + $0x4] sm:$0xff]
        %v2512 = vlaneseq
        %v2513 = vshrl.u32 %v2512, 7
        %v2514 = vsub.s32 6, %v2513
        %v2515 = vrot.slane %v320, %v2514
        %v2516 = vmul.f32 %v2511, %v2515
        %v2517 = vadd.f32 %v2510, %v2516
        %v2518 = vsel %vm338, %v2517, 0.0
        %2519 = vadd.xlane.f32.xlu0 %v2518
        %v2520 = vpop.xlane.xlu0 %2519
        %v2521 = vmul.f32 %v2520, %v342
        %v2522 = vsub.f32 %v2517, %v2521
        %v2523 = vmul.f32 %v2522, %v2522
        %v2524 = vsel %vm338, %v2523, 0.0
        %2525 = vadd.xlane.f32.xlu0 %v2524
        %v2526 = vpop.xlane.xlu0 %2525
        %v2527 = vmul.f32 %v2526, %v342
        %v2528 = vadd.f32 %v2527, 1e-05
        %v2529 = vrsqrt.pop %v2528
        %v2530 = vmul.f32 %v2522, %v2529
        %v2531 = vlaneseq
        %v2532 = vshrl.u32 %v2531, 7
        %v2533 = vsub.s32 2, %v2532
        %v2534 = vrot.slane %v319, %v2533
        %v2535 = vmul.f32 %v2530, %v2534
        %v2536 = vlaneseq
        %v2537 = vshrl.u32 %v2536, 7
        %v2538 = vsub.s32 3, %v2537
        %v2539 = vrot.slane %v319, %v2538
        %v2540 = vadd.f32 %v2535, %v2539
        %v2541 = vxor.u32 %v2540, 2147483648
        %v2542 = vmul.f32 %v2541, 1.442695
        %v2543 = vpow.pop %v2542
        %v2544 = vadd.f32 %v2543, 1.0
        %v2545 = vrcp.pop %v2544
        %v2546 = vmul.f32 1.0, %v2545
        %v2547 = vmul.f32 %v2540, %v2546
        %v2548 = vpack.c.bf16 %v2547, %v2547
        %2549 = vrot.lane.b32.xlu0 %v384, 64
        %v2550 = vpop.permute.xlu0 %2549
        %2551 = vrot.lane.b32.xlu0 %v386, 64
        %v2552 = vpop.permute.xlu0 %2551
        %v2556 = vsel %vm338, %v2548, 0
        %2558 = vmatprep.subr.bf16.mxu0 0
        %2559 = vmatpush1.bf16.msra.mxu0 0
        %2560 = vmatprep.subr.bf16.mxu0 0
        %2561 = vmatpush1.bf16.msra.mxu0 0
        %2562 = vmatprep.subr.bf16.mxu0 0
        %2563 = vmatpush1.bf16.msra.mxu0 0
        %2564 = vmatprep.subr.bf16.mxu0 0
        %2565 = vmatpush1.bf16.msra.mxu0 0
        %2566 = vmatprep.subr.bf16.mxu0 0
        %2567 = vmatpush1.bf16.msra.mxu0 0
        %2568 = vmatprep.subr.bf16.mxu0 0
        %2569 = vmatpush1.bf16.msra.mxu0 0
        %2570 = vmatprep.subr.bf16.mxu0 0
        %2571 = vmatpush1.bf16.msra.mxu0 %v2552
        %2572 = vmatprep.subr.bf16.mxu0 0
        %2573 = vmatpush1.bf16.msra.mxu0 %v2550
        %2574 = vmatprep.subr.bf16.mxu0 0
        %2575 = vmatpush2.bf16.msra.mxu0 0
        %2576 = vmatprep.subr.bf16.mxu0 0
        %2577 = vmatpush2.bf16.msra.mxu0 0
        %2578 = vmatprep.subr.bf16.mxu0 0
        %2579 = vmatpush2.bf16.msra.mxu0 0
        %2580 = vmatprep.subr.bf16.mxu0 0
        %2581 = vmatpush2.bf16.msra.mxu0 0
        %2582 = vmatprep.subr.bf16.mxu0 0
        %2583 = vmatpush2.bf16.msra.mxu0 0
        %2584 = vmatprep.subr.bf16.mxu0 0
        %2585 = vmatpush2.bf16.msra.mxu0 0
        %2586 = vmatprep.subr.bf16.mxu0 0
        %2587 = vmatpush2.bf16.msra.mxu0 0
        %2588 = vmatprep.subr.bf16.mxu0 0
        %2589 = vmatpush2.bf16.msra.mxu0 0
        %2590 = vmatprep.mubr.bf16.mxu0 0
        %2591 = vmatmul.mubr.bf16.gmra.mxu0 %v2556
        %v2592 = vpop.f32.mrf.mxu0
        %v2593 = vadd.f32 0.0, %v2592
        %v2594 = vpop.f32.mrf.mxu0
        %v2595 = vpop.f32.mrf.mxu0
        %v2596 = vpop.f32.mrf.mxu0
        %2597 = vdwg.mxu0
        %v2598 = vadd.f32 %v2398, %v2593
        %v2599 = vsel %vm338, %v2598, 0.0
        %2600 = vadd.xlane.f32.xlu0 %v2599
        %v2601 = vpop.xlane.xlu0 %2600
        %v2602 = vmul.f32 %v2601, %v342
        %v2603 = vsub.f32 %v2598, %v2602
        %v2604 = vmul.f32 %v2603, %v2603
        %v2605 = vsel %vm338, %v2604, 0.0
        %2606 = vadd.xlane.f32.xlu0 %v2605
        %v2607 = vpop.xlane.xlu0 %2606
        %v2608 = vmul.f32 %v2607, %v342
        %v2609 = vadd.f32 %v2608, 1e-05
        %v2610 = vrsqrt.pop %v2609
        %v2611 = vmul.f32 %v2603, %v2610
        %v2612 = vlaneseq
        %v2613 = vshrl.u32 %v2612, 7
        %v2614 = vsub.s32 4, %v2613
        %v2615 = vrot.slane %v319, %v2614
        %v2616 = vmul.f32 %v2611, %v2615
        %v2617 = vlaneseq
        %v2618 = vshrl.u32 %v2617, 7
        %v2619 = vsub.s32 5, %v2618
        %v2620 = vrot.slane %v319, %v2619
        %v2621 = vadd.f32 %v2616, %v2620
        %v2622 = vpack.c.bf16 %v2621, %v2621
        %v2623 = vlaneseq
        %v2624 = vshrl.u32 %v2623, 7
        %v2625 = vsub.s32 6, %v2624
        %v2626 = vrot.slane %v319, %v2625
        %2627 = vrot.lane.b32.xlu0 %v385, 96
        %v2628 = vpop.permute.xlu0 %2627
        %2629 = vrot.lane.b32.xlu0 %v387, 96
        %v2630 = vpop.permute.xlu0 %2629
        %v2634 = vsel %vm338, %v2622, 0
        %2636 = vmatprep.subr.bf16.mxu0 0
        %2637 = vmatpush1.bf16.msra.mxu0 0
        %2638 = vmatprep.subr.bf16.mxu0 0
        %2639 = vmatpush1.bf16.msra.mxu0 0
        %2640 = vmatprep.subr.bf16.mxu0 0
        %2641 = vmatpush1.bf16.msra.mxu0 0
        %2642 = vmatprep.subr.bf16.mxu0 0
        %2643 = vmatpush1.bf16.msra.mxu0 0
        %2644 = vmatprep.subr.bf16.mxu0 0
        %2645 = vmatpush1.bf16.msra.mxu0 0
        %2646 = vmatprep.subr.bf16.mxu0 0
        %2647 = vmatpush1.bf16.msra.mxu0 0
        %2648 = vmatprep.subr.bf16.mxu0 0
        %2649 = vmatpush1.bf16.msra.mxu0 %v2630
        %2650 = vmatprep.subr.bf16.mxu0 0
        %2651 = vmatpush1.bf16.msra.mxu0 %v2628
        %2652 = vmatprep.subr.bf16.mxu0 0
        %2653 = vmatpush2.bf16.msra.mxu0 0
        %2654 = vmatprep.subr.bf16.mxu0 0
        %2655 = vmatpush2.bf16.msra.mxu0 0
        %2656 = vmatprep.subr.bf16.mxu0 0
        %2657 = vmatpush2.bf16.msra.mxu0 0
        %2658 = vmatprep.subr.bf16.mxu0 0
        %2659 = vmatpush2.bf16.msra.mxu0 0
        %2660 = vmatprep.subr.bf16.mxu0 0
        %2661 = vmatpush2.bf16.msra.mxu0 0
        %2662 = vmatprep.subr.bf16.mxu0 0
        %2663 = vmatpush2.bf16.msra.mxu0 0
        %2664 = vmatprep.subr.bf16.mxu0 0
        %2665 = vmatpush2.bf16.msra.mxu0 0
        %2666 = vmatprep.subr.bf16.mxu0 0
        %2667 = vmatpush2.bf16.msra.mxu0 0
        %2668 = vmatprep.mubr.bf16.mxu0 0
        %2669 = vmatmul.mubr.bf16.gmra.mxu0 %v2634
        %v2670 = vpop.f32.mrf.mxu0
        %v2671 = vadd.f32 %v2626, %v2670
        %v2672 = vpop.f32.mrf.mxu0
        %v2673 = vpop.f32.mrf.mxu0
        %v2674 = vpop.f32.mrf.mxu0
        %2675 = vdwg.mxu0
        %v2676 = vxor.u32 %v2671, 2147483648
        %v2677 = vmul.f32 %v2676, 1.442695
        %v2678 = vpow.pop %v2677
        %v2679 = vadd.f32 %v2678, 1.0
        %v2680 = vrcp.pop %v2679
        %v2681 = vmul.f32 1.0, %v2680
        %v2682 = vmul.f32 %v2671, %v2681
        %v2683 = vpack.c.bf16 %v2682, %v2682
        %v2684 = vlaneseq
        %v2685 = vshrl.u32 %v2684, 7
        %v2686 = vsub.s32 7, %v2685
        %v2687 = vrot.slane %v319, %v2686
        %2688 = vrot.lane.b32.xlu0 %v472, 96
        %v2689 = vpop.permute.xlu0 %2688
        %2690 = vrot.lane.b32.xlu0 %v473, 96
        %v2691 = vpop.permute.xlu0 %2690
        %2692 = vrot.lane.b32.xlu0 %v474, 96
        %v2693 = vpop.permute.xlu0 %2692
        %2694 = vrot.lane.b32.xlu0 %v475, 96
        %v2695 = vpop.permute.xlu0 %2694
        %v2701 = vsel %vm480, %v2683, 0
        %2703 = vmatprep.subr.bf16.mxu0 0
        %2704 = vmatpush1.bf16.msra.mxu0 0
        %2705 = vmatprep.subr.bf16.mxu0 0
        %2706 = vmatpush1.bf16.msra.mxu0 0
        %2707 = vmatprep.subr.bf16.mxu0 0
        %2708 = vmatpush1.bf16.msra.mxu0 0
        %2709 = vmatprep.subr.bf16.mxu0 0
        %2710 = vmatpush1.bf16.msra.mxu0 0
        %2711 = vmatprep.subr.bf16.mxu0 0
        %2712 = vmatpush1.bf16.msra.mxu0 %v2695
        %2713 = vmatprep.subr.bf16.mxu0 0
        %2714 = vmatpush1.bf16.msra.mxu0 %v2693
        %2715 = vmatprep.subr.bf16.mxu0 0
        %2716 = vmatpush1.bf16.msra.mxu0 %v2691
        %2717 = vmatprep.subr.bf16.mxu0 0
        %2718 = vmatpush1.bf16.msra.mxu0 %v2689
        %2719 = vmatprep.subr.bf16.mxu0 0
        %2720 = vmatpush2.bf16.msra.mxu0 0
        %2721 = vmatprep.subr.bf16.mxu0 0
        %2722 = vmatpush2.bf16.msra.mxu0 0
        %2723 = vmatprep.subr.bf16.mxu0 0
        %2724 = vmatpush2.bf16.msra.mxu0 0
        %2725 = vmatprep.subr.bf16.mxu0 0
        %2726 = vmatpush2.bf16.msra.mxu0 0
        %2727 = vmatprep.subr.bf16.mxu0 0
        %2728 = vmatpush2.bf16.msra.mxu0 0
        %2729 = vmatprep.subr.bf16.mxu0 0
        %2730 = vmatpush2.bf16.msra.mxu0 0
        %2731 = vmatprep.subr.bf16.mxu0 0
        %2732 = vmatpush2.bf16.msra.mxu0 0
        %2733 = vmatprep.subr.bf16.mxu0 0
        %2734 = vmatpush2.bf16.msra.mxu0 0
        %2735 = vmatprep.mubr.bf16.mxu0 0
        %2736 = vmatmul.mubr.bf16.gmra.mxu0 %v2701
        %v2737 = vpop.f32.mrf.mxu0
        %v2738 = vadd.f32 %v2687, %v2737
        %v2739 = vpop.f32.mrf.mxu0
        %v2740 = vpop.f32.mrf.mxu0
        %v2741 = vpop.f32.mrf.mxu0
        %2742 = vdwg.mxu0
        %v2743 = vmul.f32 %v2738, 0.5
        %v2744 = vadd.f32 %v2598, %v2743
        %v2745 = vsel %vm338, %v2744, 0.0
        %2746 = vadd.xlane.f32.xlu0 %v2745
        %v2747 = vpop.xlane.xlu0 %2746
        %v2748 = vmul.f32 %v2747, %v342
        %v2749 = vsub.f32 %v2744, %v2748
        %v2750 = vmul.f32 %v2749, %v2749
        %v2751 = vsel %vm338, %v2750, 0.0
        %2752 = vadd.xlane.f32.xlu0 %v2751
        %v2753 = vpop.xlane.xlu0 %2752
        %v2754 = vmul.f32 %v2753, %v342
        %v2755 = vadd.f32 %v2754, 1e-05
        %v2756 = vrsqrt.pop %v2755
        %v2757 = vmul.f32 %v2749, %v2756
        %v2758 = vlaneseq
        %v2759 = vshrl.u32 %v2758, 7
        %v2760 = vsub.s32 0, %v2759
        %v2761 = vrot.slane %v320, %v2760
        %v2762 = vmul.f32 %v2757, %v2761
        %v2763 = vlaneseq
        %v2764 = vshrl.u32 %v2763, 7
        %v2765 = vsub.s32 1, %v2764
        %v2766 = vrot.slane %v320, %v2765
        %v2767 = vadd.f32 %v2762, %v2766
        %2768 = vst.msk [vmem:[%s285] sm:$0xff] %vm338, %v2767
        %s2769 = sand.u32 %s169, 1
        %s2770 = scalar_lea.sflag [#allocation4], %s2769
        %s2771 = sand.u32 %s169, 1
        %s2772 = smul.addr %s2771, 8
        %s2773 = scalar_lea.vmem [#allocation3], %s2772
        // Predicated region
        $region45: #{_lambda_.1} parent=39 // pred_check
          %p2774 = pneg %p179
        $region46: #{_lambda_.1} parent=39 // pred_check_branch
          %2776 = sbr.rel (%p2774) target = $region48
        $region47: #{_lambda_.1} parent=39 // pred_region
          %s2778 = ssub.s32 128, 128
          %2779 = vsyncadd %s2770, %s2778
          %s2780 = smul.addr %s23, 128
          %s2781 = scalar_lea.hbm %s5, %s2780
          %s2783 = sshll.u32 %s2773, 4
          %s2784 = int_to_ptr.vmem [resolvable:$true] %s2783
          %2786 = dma.vmem_to_hbm [thread:$0]  %s2784, 128, %s2781, %s2770
        $region48: #{_lambda_.1} parent=39 // pred_fallthru
          _
      $region40: #{_lambda_.1} parent=5 // pred_fallthru
        _
      %p2787 = scmp.le.s32.totalorder 2, %s14
      // Predicated region
      $region49: #{_lambda_.1} parent=5 // pred_check
        %p2788 = pneg %p2787
      $region50: #{_lambda_.1} parent=5 // pred_check_branch
        %2790 = sbr.rel (%p2788) target = $region52
      $region51: #{_lambda_.1} parent=5 // pred_region
        %s2791 = ssub.s32 %s14, 2
        // Predicated region
        $region53: #{_lambda_.1} parent=51 // pred_check
          %p2792 = pneg %p185
        $region54: #{_lambda_.1} parent=51 // pred_check_branch
          %2794 = sbr.rel (%p2792) target = $region56
        $region55: #{_lambda_.1} parent=51 // pred_region
          %s2795 = sand.u32 %s170, 1
          %s2796 = scalar_lea.sflag [#allocation4], %s2795
          %s2797 = sand.u32 %s170, 1
          %s2798 = smul.addr %s2797, 8
          %s2799 = scalar_lea.vmem [#allocation3], %s2798
          %2800 = dma.done %s2796, 128
        $region56: #{_lambda_.1} parent=51 // pred_fallthru
          _
      $region52: #{_lambda_.1} parent=5 // pred_fallthru
        _
    $region6: #{_lambda_.1} parent=1 // loop_footer
      %s18 = sadd.s32 1, %s14
    $region7: #{_lambda_.1} parent=1 // loop_footer_branch
      %13 = sbr.rel target = $region3
    $region8: #{_lambda_.1} parent=1 // loop_exit
      _
    %2801 = vsyncpa [#allocation4], 1
    %s2802 = scalar_lea.sflag [#allocation4], 1
    %2803 = vsyncpa %s2802, 1

</llo_original>
